<compile_context>
chip_gen: v7x
topology: tpu7x:2x2x1
jax: 0.10.0
libtpu: 0.0.40
codegen_flags: <defaults>
</compile_context>

<pallas_src>
import jax
import jax.numpy as jnp
from jax import lax
from jax.experimental import pallas as pl
from jax.experimental.pallas import tpu as pltpu

# ---- "config" (synthetic, small) -------------------------------------------
EMBEDDING_DIM = 32
HIDDEN_SIZE = 32
NUM_LAYERS = 2
BATCH = 2
SEQ = 8


# ---- fused multi-layer GRU kernel (whole sequence, all layers) ---------------
def _make_fused_gru_kernel(num_layers, hidden_size):
    L = num_layers
    H = hidden_size
    H3 = 3 * H

    def kernel(*refs):
        # ref layout: x, w_ih0, b_ih0, w_hh[0..L-1], b_hh[0..L-1],
        #             w_ih[1..L-1], b_ih[1..L-1], out, hidden
        idx = 0
        x_ref = refs[idx]; idx += 1                         # (B, S, D)
        w_ih0_ref = refs[idx]; idx += 1                     # (D, 3H)
        b_ih0_ref = refs[idx]; idx += 1                     # (1, 3H)
        w_hh_refs = refs[idx:idx + L]; idx += L             # each (H, 3H)
        b_hh_refs = refs[idx:idx + L]; idx += L             # each (1, 3H)
        w_ih_refs = refs[idx:idx + L - 1]; idx += L - 1     # each (H, 3H)
        b_ih_refs = refs[idx:idx + L - 1]; idx += L - 1     # each (1, 3H)
        out_ref = refs[idx]; idx += 1                       # (B, S*H)
        hid_ref = refs[idx]                                 # (L, B, H)

        B, S, D = x_ref.shape

        # Load all (tiny) weights once; they stay resident for the recurrence.
        w_hh = [w_hh_refs[l][...] for l in range(L)]
        w_ih = [w_ih_refs[l][...] for l in range(L - 1)]
        # Hoist bias broadcasts out of the unrolled time loop.
        b_hh_b = [jnp.broadcast_to(b_hh_refs[l][...], (B, H3)) for l in range(L)]
        b_ih_b = [jnp.broadcast_to(b_ih_refs[l][...], (B, H3)) for l in range(L - 1)]

        # ---- layer-1 input projection for ALL timesteps: one matmul ---------
        # Off the serial critical path (depends only on x).
        x2 = x_ref[...].reshape(B * S, D)
        gi1 = jnp.dot(x2, w_ih0_ref[...], preferred_element_type=jnp.float32)
        gi1 = gi1 + jnp.broadcast_to(b_ih0_ref[...], (B * S, H3))
        gi1 = gi1.reshape(B, S, H3)                         # layout-preserving split

        def gru_cell(gi, gh, h_prev):
            # PyTorch gate order [r, z, n]; b_hh_n is inside gh so it stays
            # inside the r * (.) term, matching nn.GRU exactly.
            rz = jax.nn.sigmoid(gi[:, :2 * H] + gh[:, :2 * H])
            r = rz[:, :H]
            z = rz[:, H:]
            n = jnp.tanh(gi[:, 2 * H:] + r * gh[:, 2 * H:])
            return (1.0 - z) * n + z * h_prev

        # ---- (t + l) diagonal wavefront over the fully-unrolled recurrence --
        # Wave w: layer l processes timestep t = w - l using only wave-(w-1)
        # results, so the per-wave matmuls are independent (MXU overlap).
        h = [jnp.zeros((B, H), jnp.float32) for _ in range(L)]  # h0 = zeros (nn.GRU default)
        inp = [None] * L     # inp[l]: layer-(l-1) output feeding layer l next wave
        outs = []            # last-layer h_t, in time order

        for w in range(S + L - 1):
            produced = [None] * L
            for l in range(L):
                t = w - l
                if not (0 <= t < S):
                    continue
                if l == 0:
                    gi = gi1[:, t, :]                        # precomputed
                else:
                    gi = jnp.dot(inp[l], w_ih[l - 1],
                                 preferred_element_type=jnp.float32) + b_ih_b[l - 1]
                gh = jnp.dot(h[l], w_hh[l],
                             preferred_element_type=jnp.float32) + b_hh_b[l]
                h_new = gru_cell(gi, gh, h[l])
                h[l] = h_new
                produced[l] = h_new
                if l == L - 1:
                    outs.append(h_new)
            for l in range(L - 1):                           # feed next wave
                if produced[l] is not None:
                    inp[l + 1] = produced[l]

        # ---- single lane-dense store of the whole output block --------------
        # (B, S*H) row-major is bit-identical to (B, S, H); S*H is a multiple
        # of 128 lanes here, so the store is unmasked.
        out_ref[...] = jnp.concatenate(outs, axis=1).astype(out_ref.dtype)
        for l in range(L):
            hid_ref[l] = h[l].astype(hid_ref.dtype)

    return kernel


# ---- Encoder forward (== output, hidden of nn.GRU, batch_first=True) --------
def encoder_forward(params, x_bsd):
    """x_bsd: (batch, seq, embedding_dim).  Returns (output (B,S,H), hidden (L,B,H))."""
    B, S, _ = x_bsd.shape
    L = len(params)
    H = params[0][1].shape[0]  # w_hh is (H, 3H)

    w_ih0, _, b_ih0, _ = params[0]
    inputs = [x_bsd, w_ih0, b_ih0]
    inputs += [p[1] for p in params]              # w_hh, all layers
    inputs += [p[3] for p in params]              # b_hh, all layers
    inputs += [p[0] for p in params[1:]]          # w_ih, layers 2..L
    inputs += [p[2] for p in params[1:]]          # b_ih, layers 2..L

    kernel = _make_fused_gru_kernel(L, H)
    vmem = pl.BlockSpec(memory_space=pltpu.MemorySpace.VMEM)
    # NOTE: whole-sequence VMEM residency is fine at these sizes; tile over S
    # (grid axis marked "arbitrary", hidden carried in scratch) before scaling
    # to production S/B/H, especially on v7x (64 MiB VMEM).
    out_flat, hidden = pl.pallas_call(
        kernel,
        out_shape=(jax.ShapeDtypeStruct((B, S * H), jnp.float32),
                   jax.ShapeDtypeStruct((L, B, H), jnp.float32)),
        in_specs=[vmem] * len(inputs),
        out_specs=(vmem, vmem),
    )(*inputs)

    output = out_flat.reshape(B, S, H)            # metadata-only reshape, no copy
    return output, hidden


encoder_forward_jit = jax.jit(encoder_forward)


# ---- deterministic parameter init (matches PyTorch U(-1/sqrt(H), 1/sqrt(H))) -
# Weights stored pre-concatenated in gate order [r, z, n]:
#   w_ih: (in_dim, 3H)   w_hh: (H, 3H)   b_ih: (1, 3H)   b_hh: (1, 3H)
# (Real nn.GRU checkpoints store (3H, in_dim); transpose when importing.)
def init_params(key, embedding_dim, hidden_size, num_layers):
    k = 1.0 / float(hidden_size) ** 0.5
    params = []
    in_dim = embedding_dim
    for _ in range(num_layers):
        key, k1, k2, k3, k4 = jax.random.split(key, 5)
        w_ih = jax.random.uniform(k1, (in_dim, 3 * hidden_size), jnp.float32, -k, k)
        w_hh = jax.random.uniform(k2, (hidden_size, 3 * hidden_size), jnp.float32, -k, k)
        b_ih = jax.random.uniform(k3, (1, 3 * hidden_size), jnp.float32, -k, k)
        b_hh = jax.random.uniform(k4, (1, 3 * hidden_size), jnp.float32, -k, k)
        params.append((w_ih, w_hh, b_ih, b_hh))
        in_dim = hidden_size
    return params


# ---- pure-JAX reference for validation --------------------------------------
def encoder_reference(params, x_bsd):
    B = x_bsd.shape[0]
    H = params[0][1].shape[0]
    layer_in = jnp.transpose(x_bsd, (1, 0, 2))    # (S, B, D)
    hiddens = []
    for (w_ih, w_hh, b_ih, b_hh) in params:
        def step(h, x_t, w_ih=w_ih, w_hh=w_hh, b_ih=b_ih, b_hh=b_hh):
            gi = x_t @ w_ih + b_ih
            gh = h @ w_hh + b_hh
            r = jax.nn.sigmoid(gi[:, :H] + gh[:, :H])
            z = jax.nn.sigmoid(gi[:, H:2 * H] + gh[:, H:2 * H])
            n = jnp.tanh(gi[:, 2 * H:] + r * gh[:, 2 * H:])
            h_new = (1.0 - z) * n + z * h
            return h_new, h_new

        h0 = jnp.zeros((B, H), jnp.float32)
        h_last, outs = lax.scan(step, h0, layer_in)
        hiddens.append(h_last)
        layer_in = outs
    return jnp.transpose(layer_in, (1, 0, 2)), jnp.stack(hiddens, 0)


if __name__ == "__main__":
    key = jax.random.PRNGKey(0)
    pkey, xkey = jax.random.split(key)
    params = init_params(pkey, EMBEDDING_DIM, HIDDEN_SIZE, NUM_LAYERS)
    x = jax.random.normal(xkey, (BATCH, SEQ, EMBEDDING_DIM), dtype=jnp.float32)

    output, hidden = encoder_forward_jit(params, x)
    jax.block_until_ready((output, hidden))

    ref_out, ref_hid = encoder_reference(params, x)
    assert output.shape == (BATCH, SEQ, HIDDEN_SIZE)
    assert hidden.shape == (NUM_LAYERS, BATCH, HIDDEN_SIZE)
    assert jnp.allclose(output, ref_out, atol=1e-5, rtol=1e-5)
    assert jnp.allclose(hidden, ref_hid, atol=1e-5, rtol=1e-5)

    print("KERNEL_OK")
</pallas_src>

<mosaic_0001>
module attributes {stable_mosaic.version = 11 : i64} {
  func.func @kernel(%arg0: memref<2x8x32xf32, #tpu.memory_space<vmem>>, %arg1: memref<32x96xf32, #tpu.memory_space<vmem>>, %arg2: memref<1x96xf32, #tpu.memory_space<vmem>>, %arg3: memref<32x96xf32, #tpu.memory_space<vmem>>, %arg4: memref<32x96xf32, #tpu.memory_space<vmem>>, %arg5: memref<1x96xf32, #tpu.memory_space<vmem>>, %arg6: memref<1x96xf32, #tpu.memory_space<vmem>>, %arg7: memref<32x96xf32, #tpu.memory_space<vmem>>, %arg8: memref<1x96xf32, #tpu.memory_space<vmem>>, %arg9: memref<2x256xf32, #tpu.memory_space<vmem>>, %arg10: memref<2x2x32xf32, #tpu.memory_space<vmem>>) attributes {dimension_semantics = [], scalar_prefetch = 0 : i64, scratch_operands = 0 : i64, tpu.core_type = #tpu.core_type<tc>} {
    %c0 = arith.constant 0 : index
    %c0_0 = arith.constant 0 : index
    %0 = vector.load %arg3[%c0, %c0_0] : memref<32x96xf32, #tpu.memory_space<vmem>>, vector<32x96xf32>
    %c0_1 = arith.constant 0 : index
    %c0_2 = arith.constant 0 : index
    %1 = vector.load %arg4[%c0_1, %c0_2] : memref<32x96xf32, #tpu.memory_space<vmem>>, vector<32x96xf32>
    %c0_3 = arith.constant 0 : index
    %c0_4 = arith.constant 0 : index
    %2 = vector.load %arg7[%c0_3, %c0_4] : memref<32x96xf32, #tpu.memory_space<vmem>>, vector<32x96xf32>
    %c0_5 = arith.constant 0 : index
    %c0_6 = arith.constant 0 : index
    %3 = vector.load %arg5[%c0_5, %c0_6] : memref<1x96xf32, #tpu.memory_space<vmem>>, vector<1x96xf32>
    %4 = vector.shape_cast %3 : vector<1x96xf32> to vector<1x96xf32>
    %5 = vector.broadcast %4 : vector<1x96xf32> to vector<2x96xf32>
    %c0_7 = arith.constant 0 : index
    %c0_8 = arith.constant 0 : index
    %6 = vector.load %arg6[%c0_7, %c0_8] : memref<1x96xf32, #tpu.memory_space<vmem>>, vector<1x96xf32>
    %7 = vector.shape_cast %6 : vector<1x96xf32> to vector<1x96xf32>
    %8 = vector.broadcast %7 : vector<1x96xf32> to vector<2x96xf32>
    %c0_9 = arith.constant 0 : index
    %c0_10 = arith.constant 0 : index
    %9 = vector.load %arg8[%c0_9, %c0_10] : memref<1x96xf32, #tpu.memory_space<vmem>>, vector<1x96xf32>
    %10 = vector.shape_cast %9 : vector<1x96xf32> to vector<1x96xf32>
    %11 = vector.broadcast %10 : vector<1x96xf32> to vector<2x96xf32>
    %c0_11 = arith.constant 0 : index
    %c0_12 = arith.constant 0 : index
    %c0_13 = arith.constant 0 : index
    %12 = vector.load %arg0[%c0_11, %c0_12, %c0_13] : memref<2x8x32xf32, #tpu.memory_space<vmem>>, vector<2x8x32xf32>
    %13 = vector.shape_cast %12 : vector<2x8x32xf32> to vector<16x32xf32>
    %c0_14 = arith.constant 0 : index
    %c0_15 = arith.constant 0 : index
    %14 = vector.load %arg1[%c0_14, %c0_15] : memref<32x96xf32, #tpu.memory_space<vmem>>, vector<32x96xf32>
    %cst = arith.constant dense<0.000000e+00> : vector<16x96xf32>
    %15 = tpu.matmul %13, %14, %cst {dimension_numbers = #tpu.dot_dimension_numbers<[1], [0], [0], [1], [0, 0, 1, 1], [], []>} : vector<16x32xf32>, vector<32x96xf32>, vector<16x96xf32> -> vector<16x96xf32>
    %c0_16 = arith.constant 0 : index
    %c0_17 = arith.constant 0 : index
    %16 = vector.load %arg2[%c0_16, %c0_17] : memref<1x96xf32, #tpu.memory_space<vmem>>, vector<1x96xf32>
    %17 = vector.shape_cast %16 : vector<1x96xf32> to vector<1x96xf32>
    %18 = vector.broadcast %17 : vector<1x96xf32> to vector<16x96xf32>
    %19 = arith.addf %15, %18 : vector<16x96xf32>
    %20 = vector.shape_cast %19 : vector<16x96xf32> to vector<2x8x96xf32>
    %cst_18 = arith.constant 0.000000e+00 : f32
    %21 = vector.broadcast %cst_18 : f32 to vector<2x32xf32>
    %cst_19 = arith.constant 0.000000e+00 : f32
    %22 = vector.broadcast %cst_19 : f32 to vector<2x32xf32>
    %23 = vector.extract_strided_slice %20 {offsets = [0, 0, 0], sizes = [2, 1, 96], strides = [1, 1, 1]} : vector<2x8x96xf32> to vector<2x1x96xf32>
    %24 = vector.shape_cast %23 : vector<2x1x96xf32> to vector<2x96xf32>
    %cst_20 = arith.constant dense<0.000000e+00> : vector<2x96xf32>
    %25 = tpu.matmul %21, %0, %cst_20 {dimension_numbers = #tpu.dot_dimension_numbers<[1], [0], [0], [1], [0, 0, 1, 1], [], []>} : vector<2x32xf32>, vector<32x96xf32>, vector<2x96xf32> -> vector<2x96xf32>
    %26 = arith.addf %25, %5 : vector<2x96xf32>
    %27 = vector.extract_strided_slice %24 {offsets = [0, 0], sizes = [2, 64], strides = [1, 1]} : vector<2x96xf32> to vector<2x64xf32>
    %28 = vector.extract_strided_slice %26 {offsets = [0, 0], sizes = [2, 64], strides = [1, 1]} : vector<2x96xf32> to vector<2x64xf32>
    %29 = arith.addf %27, %28 : vector<2x64xf32>
    %30 = arith.negf %29 : vector<2x64xf32>
    %31 = math.exp %30 : vector<2x64xf32>
    %cst_21 = arith.constant 1.000000e+00 : f32
    %32 = vector.broadcast %cst_21 : f32 to vector<2x64xf32>
    %33 = arith.addf %32, %31 : vector<2x64xf32>
    %34 = arith.divf %32, %33 : vector<2x64xf32>
    %35 = vector.extract_strided_slice %34 {offsets = [0, 0], sizes = [2, 32], strides = [1, 1]} : vector<2x64xf32> to vector<2x32xf32>
    %36 = vector.extract_strided_slice %34 {offsets = [0, 32], sizes = [2, 32], strides = [1, 1]} : vector<2x64xf32> to vector<2x32xf32>
    %37 = vector.extract_strided_slice %24 {offsets = [0, 64], sizes = [2, 32], strides = [1, 1]} : vector<2x96xf32> to vector<2x32xf32>
    %38 = vector.extract_strided_slice %26 {offsets = [0, 64], sizes = [2, 32], strides = [1, 1]} : vector<2x96xf32> to vector<2x32xf32>
    %39 = arith.mulf %35, %38 : vector<2x32xf32>
    %40 = arith.addf %37, %39 : vector<2x32xf32>
    %41 = math.tanh %40 : vector<2x32xf32>
    %cst_22 = arith.constant 1.000000e+00 : f32
    %42 = vector.broadcast %cst_22 : f32 to vector<2x32xf32>
    %43 = arith.subf %42, %36 : vector<2x32xf32>
    %44 = arith.mulf %43, %41 : vector<2x32xf32>
    %45 = arith.mulf %36, %21 : vector<2x32xf32>
    %46 = arith.addf %44, %45 : vector<2x32xf32>
    %47 = vector.extract_strided_slice %20 {offsets = [0, 1, 0], sizes = [2, 1, 96], strides = [1, 1, 1]} : vector<2x8x96xf32> to vector<2x1x96xf32>
    %48 = vector.shape_cast %47 : vector<2x1x96xf32> to vector<2x96xf32>
    %cst_23 = arith.constant dense<0.000000e+00> : vector<2x96xf32>
    %49 = tpu.matmul %46, %0, %cst_23 {dimension_numbers = #tpu.dot_dimension_numbers<[1], [0], [0], [1], [0, 0, 1, 1], [], []>} : vector<2x32xf32>, vector<32x96xf32>, vector<2x96xf32> -> vector<2x96xf32>
    %50 = arith.addf %49, %5 : vector<2x96xf32>
    %51 = vector.extract_strided_slice %48 {offsets = [0, 0], sizes = [2, 64], strides = [1, 1]} : vector<2x96xf32> to vector<2x64xf32>
    %52 = vector.extract_strided_slice %50 {offsets = [0, 0], sizes = [2, 64], strides = [1, 1]} : vector<2x96xf32> to vector<2x64xf32>
    %53 = arith.addf %51, %52 : vector<2x64xf32>
    %54 = arith.negf %53 : vector<2x64xf32>
    %55 = math.exp %54 : vector<2x64xf32>
    %cst_24 = arith.constant 1.000000e+00 : f32
    %56 = vector.broadcast %cst_24 : f32 to vector<2x64xf32>
    %57 = arith.addf %56, %55 : vector<2x64xf32>
    %58 = arith.divf %56, %57 : vector<2x64xf32>
    %59 = vector.extract_strided_slice %58 {offsets = [0, 0], sizes = [2, 32], strides = [1, 1]} : vector<2x64xf32> to vector<2x32xf32>
    %60 = vector.extract_strided_slice %58 {offsets = [0, 32], sizes = [2, 32], strides = [1, 1]} : vector<2x64xf32> to vector<2x32xf32>
    %61 = vector.extract_strided_slice %48 {offsets = [0, 64], sizes = [2, 32], strides = [1, 1]} : vector<2x96xf32> to vector<2x32xf32>
    %62 = vector.extract_strided_slice %50 {offsets = [0, 64], sizes = [2, 32], strides = [1, 1]} : vector<2x96xf32> to vector<2x32xf32>
    %63 = arith.mulf %59, %62 : vector<2x32xf32>
    %64 = arith.addf %61, %63 : vector<2x32xf32>
    %65 = math.tanh %64 : vector<2x32xf32>
    %cst_25 = arith.constant 1.000000e+00 : f32
    %66 = vector.broadcast %cst_25 : f32 to vector<2x32xf32>
    %67 = arith.subf %66, %60 : vector<2x32xf32>
    %68 = arith.mulf %67, %65 : vector<2x32xf32>
    %69 = arith.mulf %60, %46 : vector<2x32xf32>
    %70 = arith.addf %68, %69 : vector<2x32xf32>
    %cst_26 = arith.constant dense<0.000000e+00> : vector<2x96xf32>
    %71 = tpu.matmul %46, %2, %cst_26 {dimension_numbers = #tpu.dot_dimension_numbers<[1], [0], [0], [1], [0, 0, 1, 1], [], []>} : vector<2x32xf32>, vector<32x96xf32>, vector<2x96xf32> -> vector<2x96xf32>
    %72 = arith.addf %71, %11 : vector<2x96xf32>
    %cst_27 = arith.constant dense<0.000000e+00> : vector<2x96xf32>
    %73 = tpu.matmul %22, %1, %cst_27 {dimension_numbers = #tpu.dot_dimension_numbers<[1], [0], [0], [1], [0, 0, 1, 1], [], []>} : vector<2x32xf32>, vector<32x96xf32>, vector<2x96xf32> -> vector<2x96xf32>
    %74 = arith.addf %73, %8 : vector<2x96xf32>
    %75 = vector.extract_strided_slice %72 {offsets = [0, 0], sizes = [2, 64], strides = [1, 1]} : vector<2x96xf32> to vector<2x64xf32>
    %76 = vector.extract_strided_slice %74 {offsets = [0, 0], sizes = [2, 64], strides = [1, 1]} : vector<2x96xf32> to vector<2x64xf32>
    %77 = arith.addf %75, %76 : vector<2x64xf32>
    %78 = arith.negf %77 : vector<2x64xf32>
    %79 = math.exp %78 : vector<2x64xf32>
    %cst_28 = arith.constant 1.000000e+00 : f32
    %80 = vector.broadcast %cst_28 : f32 to vector<2x64xf32>
    %81 = arith.addf %80, %79 : vector<2x64xf32>
    %82 = arith.divf %80, %81 : vector<2x64xf32>
    %83 = vector.extract_strided_slice %82 {offsets = [0, 0], sizes = [2, 32], strides = [1, 1]} : vector<2x64xf32> to vector<2x32xf32>
    %84 = vector.extract_strided_slice %82 {offsets = [0, 32], sizes = [2, 32], strides = [1, 1]} : vector<2x64xf32> to vector<2x32xf32>
    %85 = vector.extract_strided_slice %72 {offsets = [0, 64], sizes = [2, 32], strides = [1, 1]} : vector<2x96xf32> to vector<2x32xf32>
    %86 = vector.extract_strided_slice %74 {offsets = [0, 64], sizes = [2, 32], strides = [1, 1]} : vector<2x96xf32> to vector<2x32xf32>
    %87 = arith.mulf %83, %86 : vector<2x32xf32>
    %88 = arith.addf %85, %87 : vector<2x32xf32>
    %89 = math.tanh %88 : vector<2x32xf32>
    %cst_29 = arith.constant 1.000000e+00 : f32
    %90 = vector.broadcast %cst_29 : f32 to vector<2x32xf32>
    %91 = arith.subf %90, %84 : vector<2x32xf32>
    %92 = arith.mulf %91, %89 : vector<2x32xf32>
    %93 = arith.mulf %84, %22 : vector<2x32xf32>
    %94 = arith.addf %92, %93 : vector<2x32xf32>
    %95 = vector.extract_strided_slice %20 {offsets = [0, 2, 0], sizes = [2, 1, 96], strides = [1, 1, 1]} : vector<2x8x96xf32> to vector<2x1x96xf32>
    %96 = vector.shape_cast %95 : vector<2x1x96xf32> to vector<2x96xf32>
    %cst_30 = arith.constant dense<0.000000e+00> : vector<2x96xf32>
    %97 = tpu.matmul %70, %0, %cst_30 {dimension_numbers = #tpu.dot_dimension_numbers<[1], [0], [0], [1], [0, 0, 1, 1], [], []>} : vector<2x32xf32>, vector<32x96xf32>, vector<2x96xf32> -> vector<2x96xf32>
    %98 = arith.addf %97, %5 : vector<2x96xf32>
    %99 = vector.extract_strided_slice %96 {offsets = [0, 0], sizes = [2, 64], strides = [1, 1]} : vector<2x96xf32> to vector<2x64xf32>
    %100 = vector.extract_strided_slice %98 {offsets = [0, 0], sizes = [2, 64], strides = [1, 1]} : vector<2x96xf32> to vector<2x64xf32>
    %101 = arith.addf %99, %100 : vector<2x64xf32>
    %102 = arith.negf %101 : vector<2x64xf32>
    %103 = math.exp %102 : vector<2x64xf32>
    %cst_31 = arith.constant 1.000000e+00 : f32
    %104 = vector.broadcast %cst_31 : f32 to vector<2x64xf32>
    %105 = arith.addf %104, %103 : vector<2x64xf32>
    %106 = arith.divf %104, %105 : vector<2x64xf32>
    %107 = vector.extract_strided_slice %106 {offsets = [0, 0], sizes = [2, 32], strides = [1, 1]} : vector<2x64xf32> to vector<2x32xf32>
    %108 = vector.extract_strided_slice %106 {offsets = [0, 32], sizes = [2, 32], strides = [1, 1]} : vector<2x64xf32> to vector<2x32xf32>
    %109 = vector.extract_strided_slice %96 {offsets = [0, 64], sizes = [2, 32], strides = [1, 1]} : vector<2x96xf32> to vector<2x32xf32>
    %110 = vector.extract_strided_slice %98 {offsets = [0, 64], sizes = [2, 32], strides = [1, 1]} : vector<2x96xf32> to vector<2x32xf32>
    %111 = arith.mulf %107, %110 : vector<2x32xf32>
    %112 = arith.addf %109, %111 : vector<2x32xf32>
    %113 = math.tanh %112 : vector<2x32xf32>
    %cst_32 = arith.constant 1.000000e+00 : f32
    %114 = vector.broadcast %cst_32 : f32 to vector<2x32xf32>
    %115 = arith.subf %114, %108 : vector<2x32xf32>
    %116 = arith.mulf %115, %113 : vector<2x32xf32>
    %117 = arith.mulf %108, %70 : vector<2x32xf32>
    %118 = arith.addf %116, %117 : vector<2x32xf32>
    %cst_33 = arith.constant dense<0.000000e+00> : vector<2x96xf32>
    %119 = tpu.matmul %70, %2, %cst_33 {dimension_numbers = #tpu.dot_dimension_numbers<[1], [0], [0], [1], [0, 0, 1, 1], [], []>} : vector<2x32xf32>, vector<32x96xf32>, vector<2x96xf32> -> vector<2x96xf32>
    %120 = arith.addf %119, %11 : vector<2x96xf32>
    %cst_34 = arith.constant dense<0.000000e+00> : vector<2x96xf32>
    %121 = tpu.matmul %94, %1, %cst_34 {dimension_numbers = #tpu.dot_dimension_numbers<[1], [0], [0], [1], [0, 0, 1, 1], [], []>} : vector<2x32xf32>, vector<32x96xf32>, vector<2x96xf32> -> vector<2x96xf32>
    %122 = arith.addf %121, %8 : vector<2x96xf32>
    %123 = vector.extract_strided_slice %120 {offsets = [0, 0], sizes = [2, 64], strides = [1, 1]} : vector<2x96xf32> to vector<2x64xf32>
    %124 = vector.extract_strided_slice %122 {offsets = [0, 0], sizes = [2, 64], strides = [1, 1]} : vector<2x96xf32> to vector<2x64xf32>
    %125 = arith.addf %123, %124 : vector<2x64xf32>
    %126 = arith.negf %125 : vector<2x64xf32>
    %127 = math.exp %126 : vector<2x64xf32>
    %cst_35 = arith.constant 1.000000e+00 : f32
    %128 = vector.broadcast %cst_35 : f32 to vector<2x64xf32>
    %129 = arith.addf %128, %127 : vector<2x64xf32>
    %130 = arith.divf %128, %129 : vector<2x64xf32>
    %131 = vector.extract_strided_slice %130 {offsets = [0, 0], sizes = [2, 32], strides = [1, 1]} : vector<2x64xf32> to vector<2x32xf32>
    %132 = vector.extract_strided_slice %130 {offsets = [0, 32], sizes = [2, 32], strides = [1, 1]} : vector<2x64xf32> to vector<2x32xf32>
    %133 = vector.extract_strided_slice %120 {offsets = [0, 64], sizes = [2, 32], strides = [1, 1]} : vector<2x96xf32> to vector<2x32xf32>
    %134 = vector.extract_strided_slice %122 {offsets = [0, 64], sizes = [2, 32], strides = [1, 1]} : vector<2x96xf32> to vector<2x32xf32>
    %135 = arith.mulf %131, %134 : vector<2x32xf32>
    %136 = arith.addf %133, %135 : vector<2x32xf32>
    %137 = math.tanh %136 : vector<2x32xf32>
    %cst_36 = arith.constant 1.000000e+00 : f32
    %138 = vector.broadcast %cst_36 : f32 to vector<2x32xf32>
    %139 = arith.subf %138, %132 : vector<2x32xf32>
    %140 = arith.mulf %139, %137 : vector<2x32xf32>
    %141 = arith.mulf %132, %94 : vector<2x32xf32>
    %142 = arith.addf %140, %141 : vector<2x32xf32>
    %143 = vector.extract_strided_slice %20 {offsets = [0, 3, 0], sizes = [2, 1, 96], strides = [1, 1, 1]} : vector<2x8x96xf32> to vector<2x1x96xf32>
    %144 = vector.shape_cast %143 : vector<2x1x96xf32> to vector<2x96xf32>
    %cst_37 = arith.constant dense<0.000000e+00> : vector<2x96xf32>
    %145 = tpu.matmul %118, %0, %cst_37 {dimension_numbers = #tpu.dot_dimension_numbers<[1], [0], [0], [1], [0, 0, 1, 1], [], []>} : vector<2x32xf32>, vector<32x96xf32>, vector<2x96xf32> -> vector<2x96xf32>
    %146 = arith.addf %145, %5 : vector<2x96xf32>
    %147 = vector.extract_strided_slice %144 {offsets = [0, 0], sizes = [2, 64], strides = [1, 1]} : vector<2x96xf32> to vector<2x64xf32>
    %148 = vector.extract_strided_slice %146 {offsets = [0, 0], sizes = [2, 64], strides = [1, 1]} : vector<2x96xf32> to vector<2x64xf32>
    %149 = arith.addf %147, %148 : vector<2x64xf32>
    %150 = arith.negf %149 : vector<2x64xf32>
    %151 = math.exp %150 : vector<2x64xf32>
    %cst_38 = arith.constant 1.000000e+00 : f32
    %152 = vector.broadcast %cst_38 : f32 to vector<2x64xf32>
    %153 = arith.addf %152, %151 : vector<2x64xf32>
    %154 = arith.divf %152, %153 : vector<2x64xf32>
    %155 = vector.extract_strided_slice %154 {offsets = [0, 0], sizes = [2, 32], strides = [1, 1]} : vector<2x64xf32> to vector<2x32xf32>
    %156 = vector.extract_strided_slice %154 {offsets = [0, 32], sizes = [2, 32], strides = [1, 1]} : vector<2x64xf32> to vector<2x32xf32>
    %157 = vector.extract_strided_slice %144 {offsets = [0, 64], sizes = [2, 32], strides = [1, 1]} : vector<2x96xf32> to vector<2x32xf32>
    %158 = vector.extract_strided_slice %146 {offsets = [0, 64], sizes = [2, 32], strides = [1, 1]} : vector<2x96xf32> to vector<2x32xf32>
    %159 = arith.mulf %155, %158 : vector<2x32xf32>
    %160 = arith.addf %157, %159 : vector<2x32xf32>
    %161 = math.tanh %160 : vector<2x32xf32>
    %cst_39 = arith.constant 1.000000e+00 : f32
    %162 = vector.broadcast %cst_39 : f32 to vector<2x32xf32>
    %163 = arith.subf %162, %156 : vector<2x32xf32>
    %164 = arith.mulf %163, %161 : vector<2x32xf32>
    %165 = arith.mulf %156, %118 : vector<2x32xf32>
    %166 = arith.addf %164, %165 : vector<2x32xf32>
    %cst_40 = arith.constant dense<0.000000e+00> : vector<2x96xf32>
    %167 = tpu.matmul %118, %2, %cst_40 {dimension_numbers = #tpu.dot_dimension_numbers<[1], [0], [0], [1], [0, 0, 1, 1], [], []>} : vector<2x32xf32>, vector<32x96xf32>, vector<2x96xf32> -> vector<2x96xf32>
    %168 = arith.addf %167, %11 : vector<2x96xf32>
    %cst_41 = arith.constant dense<0.000000e+00> : vector<2x96xf32>
    %169 = tpu.matmul %142, %1, %cst_41 {dimension_numbers = #tpu.dot_dimension_numbers<[1], [0], [0], [1], [0, 0, 1, 1], [], []>} : vector<2x32xf32>, vector<32x96xf32>, vector<2x96xf32> -> vector<2x96xf32>
    %170 = arith.addf %169, %8 : vector<2x96xf32>
    %171 = vector.extract_strided_slice %168 {offsets = [0, 0], sizes = [2, 64], strides = [1, 1]} : vector<2x96xf32> to vector<2x64xf32>
    %172 = vector.extract_strided_slice %170 {offsets = [0, 0], sizes = [2, 64], strides = [1, 1]} : vector<2x96xf32> to vector<2x64xf32>
    %173 = arith.addf %171, %172 : vector<2x64xf32>
    %174 = arith.negf %173 : vector<2x64xf32>
    %175 = math.exp %174 : vector<2x64xf32>
    %cst_42 = arith.constant 1.000000e+00 : f32
    %176 = vector.broadcast %cst_42 : f32 to vector<2x64xf32>
    %177 = arith.addf %176, %175 : vector<2x64xf32>
    %178 = arith.divf %176, %177 : vector<2x64xf32>
    %179 = vector.extract_strided_slice %178 {offsets = [0, 0], sizes = [2, 32], strides = [1, 1]} : vector<2x64xf32> to vector<2x32xf32>
    %180 = vector.extract_strided_slice %178 {offsets = [0, 32], sizes = [2, 32], strides = [1, 1]} : vector<2x64xf32> to vector<2x32xf32>
    %181 = vector.extract_strided_slice %168 {offsets = [0, 64], sizes = [2, 32], strides = [1, 1]} : vector<2x96xf32> to vector<2x32xf32>
    %182 = vector.extract_strided_slice %170 {offsets = [0, 64], sizes = [2, 32], strides = [1, 1]} : vector<2x96xf32> to vector<2x32xf32>
    %183 = arith.mulf %179, %182 : vector<2x32xf32>
    %184 = arith.addf %181, %183 : vector<2x32xf32>
    %185 = math.tanh %184 : vector<2x32xf32>
    %cst_43 = arith.constant 1.000000e+00 : f32
    %186 = vector.broadcast %cst_43 : f32 to vector<2x32xf32>
    %187 = arith.subf %186, %180 : vector<2x32xf32>
    %188 = arith.mulf %187, %185 : vector<2x32xf32>
    %189 = arith.mulf %180, %142 : vector<2x32xf32>
    %190 = arith.addf %188, %189 : vector<2x32xf32>
    %191 = vector.extract_strided_slice %20 {offsets = [0, 4, 0], sizes = [2, 1, 96], strides = [1, 1, 1]} : vector<2x8x96xf32> to vector<2x1x96xf32>
    %192 = vector.shape_cast %191 : vector<2x1x96xf32> to vector<2x96xf32>
    %cst_44 = arith.constant dense<0.000000e+00> : vector<2x96xf32>
    %193 = tpu.matmul %166, %0, %cst_44 {dimension_numbers = #tpu.dot_dimension_numbers<[1], [0], [0], [1], [0, 0, 1, 1], [], []>} : vector<2x32xf32>, vector<32x96xf32>, vector<2x96xf32> -> vector<2x96xf32>
    %194 = arith.addf %193, %5 : vector<2x96xf32>
    %195 = vector.extract_strided_slice %192 {offsets = [0, 0], sizes = [2, 64], strides = [1, 1]} : vector<2x96xf32> to vector<2x64xf32>
    %196 = vector.extract_strided_slice %194 {offsets = [0, 0], sizes = [2, 64], strides = [1, 1]} : vector<2x96xf32> to vector<2x64xf32>
    %197 = arith.addf %195, %196 : vector<2x64xf32>
    %198 = arith.negf %197 : vector<2x64xf32>
    %199 = math.exp %198 : vector<2x64xf32>
    %cst_45 = arith.constant 1.000000e+00 : f32
    %200 = vector.broadcast %cst_45 : f32 to vector<2x64xf32>
    %201 = arith.addf %200, %199 : vector<2x64xf32>
    %202 = arith.divf %200, %201 : vector<2x64xf32>
    %203 = vector.extract_strided_slice %202 {offsets = [0, 0], sizes = [2, 32], strides = [1, 1]} : vector<2x64xf32> to vector<2x32xf32>
    %204 = vector.extract_strided_slice %202 {offsets = [0, 32], sizes = [2, 32], strides = [1, 1]} : vector<2x64xf32> to vector<2x32xf32>
    %205 = vector.extract_strided_slice %192 {offsets = [0, 64], sizes = [2, 32], strides = [1, 1]} : vector<2x96xf32> to vector<2x32xf32>
    %206 = vector.extract_strided_slice %194 {offsets = [0, 64], sizes = [2, 32], strides = [1, 1]} : vector<2x96xf32> to vector<2x32xf32>
    %207 = arith.mulf %203, %206 : vector<2x32xf32>
    %208 = arith.addf %205, %207 : vector<2x32xf32>
    %209 = math.tanh %208 : vector<2x32xf32>
    %cst_46 = arith.constant 1.000000e+00 : f32
    %210 = vector.broadcast %cst_46 : f32 to vector<2x32xf32>
    %211 = arith.subf %210, %204 : vector<2x32xf32>
    %212 = arith.mulf %211, %209 : vector<2x32xf32>
    %213 = arith.mulf %204, %166 : vector<2x32xf32>
    %214 = arith.addf %212, %213 : vector<2x32xf32>
    %cst_47 = arith.constant dense<0.000000e+00> : vector<2x96xf32>
    %215 = tpu.matmul %166, %2, %cst_47 {dimension_numbers = #tpu.dot_dimension_numbers<[1], [0], [0], [1], [0, 0, 1, 1], [], []>} : vector<2x32xf32>, vector<32x96xf32>, vector<2x96xf32> -> vector<2x96xf32>
    %216 = arith.addf %215, %11 : vector<2x96xf32>
    %cst_48 = arith.constant dense<0.000000e+00> : vector<2x96xf32>
    %217 = tpu.matmul %190, %1, %cst_48 {dimension_numbers = #tpu.dot_dimension_numbers<[1], [0], [0], [1], [0, 0, 1, 1], [], []>} : vector<2x32xf32>, vector<32x96xf32>, vector<2x96xf32> -> vector<2x96xf32>
    %218 = arith.addf %217, %8 : vector<2x96xf32>
    %219 = vector.extract_strided_slice %216 {offsets = [0, 0], sizes = [2, 64], strides = [1, 1]} : vector<2x96xf32> to vector<2x64xf32>
    %220 = vector.extract_strided_slice %218 {offsets = [0, 0], sizes = [2, 64], strides = [1, 1]} : vector<2x96xf32> to vector<2x64xf32>
    %221 = arith.addf %219, %220 : vector<2x64xf32>
    %222 = arith.negf %221 : vector<2x64xf32>
    %223 = math.exp %222 : vector<2x64xf32>
    %cst_49 = arith.constant 1.000000e+00 : f32
    %224 = vector.broadcast %cst_49 : f32 to vector<2x64xf32>
    %225 = arith.addf %224, %223 : vector<2x64xf32>
    %226 = arith.divf %224, %225 : vector<2x64xf32>
    %227 = vector.extract_strided_slice %226 {offsets = [0, 0], sizes = [2, 32], strides = [1, 1]} : vector<2x64xf32> to vector<2x32xf32>
    %228 = vector.extract_strided_slice %226 {offsets = [0, 32], sizes = [2, 32], strides = [1, 1]} : vector<2x64xf32> to vector<2x32xf32>
    %229 = vector.extract_strided_slice %216 {offsets = [0, 64], sizes = [2, 32], strides = [1, 1]} : vector<2x96xf32> to vector<2x32xf32>
    %230 = vector.extract_strided_slice %218 {offsets = [0, 64], sizes = [2, 32], strides = [1, 1]} : vector<2x96xf32> to vector<2x32xf32>
    %231 = arith.mulf %227, %230 : vector<2x32xf32>
    %232 = arith.addf %229, %231 : vector<2x32xf32>
    %233 = math.tanh %232 : vector<2x32xf32>
    %cst_50 = arith.constant 1.000000e+00 : f32
    %234 = vector.broadcast %cst_50 : f32 to vector<2x32xf32>
    %235 = arith.subf %234, %228 : vector<2x32xf32>
    %236 = arith.mulf %235, %233 : vector<2x32xf32>
    %237 = arith.mulf %228, %190 : vector<2x32xf32>
    %238 = arith.addf %236, %237 : vector<2x32xf32>
    %239 = vector.extract_strided_slice %20 {offsets = [0, 5, 0], sizes = [2, 1, 96], strides = [1, 1, 1]} : vector<2x8x96xf32> to vector<2x1x96xf32>
    %240 = vector.shape_cast %239 : vector<2x1x96xf32> to vector<2x96xf32>
    %cst_51 = arith.constant dense<0.000000e+00> : vector<2x96xf32>
    %241 = tpu.matmul %214, %0, %cst_51 {dimension_numbers = #tpu.dot_dimension_numbers<[1], [0], [0], [1], [0, 0, 1, 1], [], []>} : vector<2x32xf32>, vector<32x96xf32>, vector<2x96xf32> -> vector<2x96xf32>
    %242 = arith.addf %241, %5 : vector<2x96xf32>
    %243 = vector.extract_strided_slice %240 {offsets = [0, 0], sizes = [2, 64], strides = [1, 1]} : vector<2x96xf32> to vector<2x64xf32>
    %244 = vector.extract_strided_slice %242 {offsets = [0, 0], sizes = [2, 64], strides = [1, 1]} : vector<2x96xf32> to vector<2x64xf32>
    %245 = arith.addf %243, %244 : vector<2x64xf32>
    %246 = arith.negf %245 : vector<2x64xf32>
    %247 = math.exp %246 : vector<2x64xf32>
    %cst_52 = arith.constant 1.000000e+00 : f32
    %248 = vector.broadcast %cst_52 : f32 to vector<2x64xf32>
    %249 = arith.addf %248, %247 : vector<2x64xf32>
    %250 = arith.divf %248, %249 : vector<2x64xf32>
    %251 = vector.extract_strided_slice %250 {offsets = [0, 0], sizes = [2, 32], strides = [1, 1]} : vector<2x64xf32> to vector<2x32xf32>
    %252 = vector.extract_strided_slice %250 {offsets = [0, 32], sizes = [2, 32], strides = [1, 1]} : vector<2x64xf32> to vector<2x32xf32>
    %253 = vector.extract_strided_slice %240 {offsets = [0, 64], sizes = [2, 32], strides = [1, 1]} : vector<2x96xf32> to vector<2x32xf32>
    %254 = vector.extract_strided_slice %242 {offsets = [0, 64], sizes = [2, 32], strides = [1, 1]} : vector<2x96xf32> to vector<2x32xf32>
    %255 = arith.mulf %251, %254 : vector<2x32xf32>
    %256 = arith.addf %253, %255 : vector<2x32xf32>
    %257 = math.tanh %256 : vector<2x32xf32>
    %cst_53 = arith.constant 1.000000e+00 : f32
    %258 = vector.broadcast %cst_53 : f32 to vector<2x32xf32>
    %259 = arith.subf %258, %252 : vector<2x32xf32>
    %260 = arith.mulf %259, %257 : vector<2x32xf32>
    %261 = arith.mulf %252, %214 : vector<2x32xf32>
    %262 = arith.addf %260, %261 : vector<2x32xf32>
    %cst_54 = arith.constant dense<0.000000e+00> : vector<2x96xf32>
    %263 = tpu.matmul %214, %2, %cst_54 {dimension_numbers = #tpu.dot_dimension_numbers<[1], [0], [0], [1], [0, 0, 1, 1], [], []>} : vector<2x32xf32>, vector<32x96xf32>, vector<2x96xf32> -> vector<2x96xf32>
    %264 = arith.addf %263, %11 : vector<2x96xf32>
    %cst_55 = arith.constant dense<0.000000e+00> : vector<2x96xf32>
    %265 = tpu.matmul %238, %1, %cst_55 {dimension_numbers = #tpu.dot_dimension_numbers<[1], [0], [0], [1], [0, 0, 1, 1], [], []>} : vector<2x32xf32>, vector<32x96xf32>, vector<2x96xf32> -> vector<2x96xf32>
    %266 = arith.addf %265, %8 : vector<2x96xf32>
    %267 = vector.extract_strided_slice %264 {offsets = [0, 0], sizes = [2, 64], strides = [1, 1]} : vector<2x96xf32> to vector<2x64xf32>
    %268 = vector.extract_strided_slice %266 {offsets = [0, 0], sizes = [2, 64], strides = [1, 1]} : vector<2x96xf32> to vector<2x64xf32>
    %269 = arith.addf %267, %268 : vector<2x64xf32>
    %270 = arith.negf %269 : vector<2x64xf32>
    %271 = math.exp %270 : vector<2x64xf32>
    %cst_56 = arith.constant 1.000000e+00 : f32
    %272 = vector.broadcast %cst_56 : f32 to vector<2x64xf32>
    %273 = arith.addf %272, %271 : vector<2x64xf32>
    %274 = arith.divf %272, %273 : vector<2x64xf32>
    %275 = vector.extract_strided_slice %274 {offsets = [0, 0], sizes = [2, 32], strides = [1, 1]} : vector<2x64xf32> to vector<2x32xf32>
    %276 = vector.extract_strided_slice %274 {offsets = [0, 32], sizes = [2, 32], strides = [1, 1]} : vector<2x64xf32> to vector<2x32xf32>
    %277 = vector.extract_strided_slice %264 {offsets = [0, 64], sizes = [2, 32], strides = [1, 1]} : vector<2x96xf32> to vector<2x32xf32>
    %278 = vector.extract_strided_slice %266 {offsets = [0, 64], sizes = [2, 32], strides = [1, 1]} : vector<2x96xf32> to vector<2x32xf32>
    %279 = arith.mulf %275, %278 : vector<2x32xf32>
    %280 = arith.addf %277, %279 : vector<2x32xf32>
    %281 = math.tanh %280 : vector<2x32xf32>
    %cst_57 = arith.constant 1.000000e+00 : f32
    %282 = vector.broadcast %cst_57 : f32 to vector<2x32xf32>
    %283 = arith.subf %282, %276 : vector<2x32xf32>
    %284 = arith.mulf %283, %281 : vector<2x32xf32>
    %285 = arith.mulf %276, %238 : vector<2x32xf32>
    %286 = arith.addf %284, %285 : vector<2x32xf32>
    %287 = vector.extract_strided_slice %20 {offsets = [0, 6, 0], sizes = [2, 1, 96], strides = [1, 1, 1]} : vector<2x8x96xf32> to vector<2x1x96xf32>
    %288 = vector.shape_cast %287 : vector<2x1x96xf32> to vector<2x96xf32>
    %cst_58 = arith.constant dense<0.000000e+00> : vector<2x96xf32>
    %289 = tpu.matmul %262, %0, %cst_58 {dimension_numbers = #tpu.dot_dimension_numbers<[1], [0], [0], [1], [0, 0, 1, 1], [], []>} : vector<2x32xf32>, vector<32x96xf32>, vector<2x96xf32> -> vector<2x96xf32>
    %290 = arith.addf %289, %5 : vector<2x96xf32>
    %291 = vector.extract_strided_slice %288 {offsets = [0, 0], sizes = [2, 64], strides = [1, 1]} : vector<2x96xf32> to vector<2x64xf32>
    %292 = vector.extract_strided_slice %290 {offsets = [0, 0], sizes = [2, 64], strides = [1, 1]} : vector<2x96xf32> to vector<2x64xf32>
    %293 = arith.addf %291, %292 : vector<2x64xf32>
    %294 = arith.negf %293 : vector<2x64xf32>
    %295 = math.exp %294 : vector<2x64xf32>
    %cst_59 = arith.constant 1.000000e+00 : f32
    %296 = vector.broadcast %cst_59 : f32 to vector<2x64xf32>
    %297 = arith.addf %296, %295 : vector<2x64xf32>
    %298 = arith.divf %296, %297 : vector<2x64xf32>
    %299 = vector.extract_strided_slice %298 {offsets = [0, 0], sizes = [2, 32], strides = [1, 1]} : vector<2x64xf32> to vector<2x32xf32>
    %300 = vector.extract_strided_slice %298 {offsets = [0, 32], sizes = [2, 32], strides = [1, 1]} : vector<2x64xf32> to vector<2x32xf32>
    %301 = vector.extract_strided_slice %288 {offsets = [0, 64], sizes = [2, 32], strides = [1, 1]} : vector<2x96xf32> to vector<2x32xf32>
    %302 = vector.extract_strided_slice %290 {offsets = [0, 64], sizes = [2, 32], strides = [1, 1]} : vector<2x96xf32> to vector<2x32xf32>
    %303 = arith.mulf %299, %302 : vector<2x32xf32>
    %304 = arith.addf %301, %303 : vector<2x32xf32>
    %305 = math.tanh %304 : vector<2x32xf32>
    %cst_60 = arith.constant 1.000000e+00 : f32
    %306 = vector.broadcast %cst_60 : f32 to vector<2x32xf32>
    %307 = arith.subf %306, %300 : vector<2x32xf32>
    %308 = arith.mulf %307, %305 : vector<2x32xf32>
    %309 = arith.mulf %300, %262 : vector<2x32xf32>
    %310 = arith.addf %308, %309 : vector<2x32xf32>
    %cst_61 = arith.constant dense<0.000000e+00> : vector<2x96xf32>
    %311 = tpu.matmul %262, %2, %cst_61 {dimension_numbers = #tpu.dot_dimension_numbers<[1], [0], [0], [1], [0, 0, 1, 1], [], []>} : vector<2x32xf32>, vector<32x96xf32>, vector<2x96xf32> -> vector<2x96xf32>
    %312 = arith.addf %311, %11 : vector<2x96xf32>
    %cst_62 = arith.constant dense<0.000000e+00> : vector<2x96xf32>
    %313 = tpu.matmul %286, %1, %cst_62 {dimension_numbers = #tpu.dot_dimension_numbers<[1], [0], [0], [1], [0, 0, 1, 1], [], []>} : vector<2x32xf32>, vector<32x96xf32>, vector<2x96xf32> -> vector<2x96xf32>
    %314 = arith.addf %313, %8 : vector<2x96xf32>
    %315 = vector.extract_strided_slice %312 {offsets = [0, 0], sizes = [2, 64], strides = [1, 1]} : vector<2x96xf32> to vector<2x64xf32>
    %316 = vector.extract_strided_slice %314 {offsets = [0, 0], sizes = [2, 64], strides = [1, 1]} : vector<2x96xf32> to vector<2x64xf32>
    %317 = arith.addf %315, %316 : vector<2x64xf32>
    %318 = arith.negf %317 : vector<2x64xf32>
    %319 = math.exp %318 : vector<2x64xf32>
    %cst_63 = arith.constant 1.000000e+00 : f32
    %320 = vector.broadcast %cst_63 : f32 to vector<2x64xf32>
    %321 = arith.addf %320, %319 : vector<2x64xf32>
    %322 = arith.divf %320, %321 : vector<2x64xf32>
    %323 = vector.extract_strided_slice %322 {offsets = [0, 0], sizes = [2, 32], strides = [1, 1]} : vector<2x64xf32> to vector<2x32xf32>
    %324 = vector.extract_strided_slice %322 {offsets = [0, 32], sizes = [2, 32], strides = [1, 1]} : vector<2x64xf32> to vector<2x32xf32>
    %325 = vector.extract_strided_slice %312 {offsets = [0, 64], sizes = [2, 32], strides = [1, 1]} : vector<2x96xf32> to vector<2x32xf32>
    %326 = vector.extract_strided_slice %314 {offsets = [0, 64], sizes = [2, 32], strides = [1, 1]} : vector<2x96xf32> to vector<2x32xf32>
    %327 = arith.mulf %323, %326 : vector<2x32xf32>
    %328 = arith.addf %325, %327 : vector<2x32xf32>
    %329 = math.tanh %328 : vector<2x32xf32>
    %cst_64 = arith.constant 1.000000e+00 : f32
    %330 = vector.broadcast %cst_64 : f32 to vector<2x32xf32>
    %331 = arith.subf %330, %324 : vector<2x32xf32>
    %332 = arith.mulf %331, %329 : vector<2x32xf32>
    %333 = arith.mulf %324, %286 : vector<2x32xf32>
    %334 = arith.addf %332, %333 : vector<2x32xf32>
    %335 = vector.extract_strided_slice %20 {offsets = [0, 7, 0], sizes = [2, 1, 96], strides = [1, 1, 1]} : vector<2x8x96xf32> to vector<2x1x96xf32>
    %336 = vector.shape_cast %335 : vector<2x1x96xf32> to vector<2x96xf32>
    %cst_65 = arith.constant dense<0.000000e+00> : vector<2x96xf32>
    %337 = tpu.matmul %310, %0, %cst_65 {dimension_numbers = #tpu.dot_dimension_numbers<[1], [0], [0], [1], [0, 0, 1, 1], [], []>} : vector<2x32xf32>, vector<32x96xf32>, vector<2x96xf32> -> vector<2x96xf32>
    %338 = arith.addf %337, %5 : vector<2x96xf32>
    %339 = vector.extract_strided_slice %336 {offsets = [0, 0], sizes = [2, 64], strides = [1, 1]} : vector<2x96xf32> to vector<2x64xf32>
    %340 = vector.extract_strided_slice %338 {offsets = [0, 0], sizes = [2, 64], strides = [1, 1]} : vector<2x96xf32> to vector<2x64xf32>
    %341 = arith.addf %339, %340 : vector<2x64xf32>
    %342 = arith.negf %341 : vector<2x64xf32>
    %343 = math.exp %342 : vector<2x64xf32>
    %cst_66 = arith.constant 1.000000e+00 : f32
    %344 = vector.broadcast %cst_66 : f32 to vector<2x64xf32>
    %345 = arith.addf %344, %343 : vector<2x64xf32>
    %346 = arith.divf %344, %345 : vector<2x64xf32>
    %347 = vector.extract_strided_slice %346 {offsets = [0, 0], sizes = [2, 32], strides = [1, 1]} : vector<2x64xf32> to vector<2x32xf32>
    %348 = vector.extract_strided_slice %346 {offsets = [0, 32], sizes = [2, 32], strides = [1, 1]} : vector<2x64xf32> to vector<2x32xf32>
    %349 = vector.extract_strided_slice %336 {offsets = [0, 64], sizes = [2, 32], strides = [1, 1]} : vector<2x96xf32> to vector<2x32xf32>
    %350 = vector.extract_strided_slice %338 {offsets = [0, 64], sizes = [2, 32], strides = [1, 1]} : vector<2x96xf32> to vector<2x32xf32>
    %351 = arith.mulf %347, %350 : vector<2x32xf32>
    %352 = arith.addf %349, %351 : vector<2x32xf32>
    %353 = math.tanh %352 : vector<2x32xf32>
    %cst_67 = arith.constant 1.000000e+00 : f32
    %354 = vector.broadcast %cst_67 : f32 to vector<2x32xf32>
    %355 = arith.subf %354, %348 : vector<2x32xf32>
    %356 = arith.mulf %355, %353 : vector<2x32xf32>
    %357 = arith.mulf %348, %310 : vector<2x32xf32>
    %358 = arith.addf %356, %357 : vector<2x32xf32>
    %cst_68 = arith.constant dense<0.000000e+00> : vector<2x96xf32>
    %359 = tpu.matmul %310, %2, %cst_68 {dimension_numbers = #tpu.dot_dimension_numbers<[1], [0], [0], [1], [0, 0, 1, 1], [], []>} : vector<2x32xf32>, vector<32x96xf32>, vector<2x96xf32> -> vector<2x96xf32>
    %360 = arith.addf %359, %11 : vector<2x96xf32>
    %cst_69 = arith.constant dense<0.000000e+00> : vector<2x96xf32>
    %361 = tpu.matmul %334, %1, %cst_69 {dimension_numbers = #tpu.dot_dimension_numbers<[1], [0], [0], [1], [0, 0, 1, 1], [], []>} : vector<2x32xf32>, vector<32x96xf32>, vector<2x96xf32> -> vector<2x96xf32>
    %362 = arith.addf %361, %8 : vector<2x96xf32>
    %363 = vector.extract_strided_slice %360 {offsets = [0, 0], sizes = [2, 64], strides = [1, 1]} : vector<2x96xf32> to vector<2x64xf32>
    %364 = vector.extract_strided_slice %362 {offsets = [0, 0], sizes = [2, 64], strides = [1, 1]} : vector<2x96xf32> to vector<2x64xf32>
    %365 = arith.addf %363, %364 : vector<2x64xf32>
    %366 = arith.negf %365 : vector<2x64xf32>
    %367 = math.exp %366 : vector<2x64xf32>
    %cst_70 = arith.constant 1.000000e+00 : f32
    %368 = vector.broadcast %cst_70 : f32 to vector<2x64xf32>
    %369 = arith.addf %368, %367 : vector<2x64xf32>
    %370 = arith.divf %368, %369 : vector<2x64xf32>
    %371 = vector.extract_strided_slice %370 {offsets = [0, 0], sizes = [2, 32], strides = [1, 1]} : vector<2x64xf32> to vector<2x32xf32>
    %372 = vector.extract_strided_slice %370 {offsets = [0, 32], sizes = [2, 32], strides = [1, 1]} : vector<2x64xf32> to vector<2x32xf32>
    %373 = vector.extract_strided_slice %360 {offsets = [0, 64], sizes = [2, 32], strides = [1, 1]} : vector<2x96xf32> to vector<2x32xf32>
    %374 = vector.extract_strided_slice %362 {offsets = [0, 64], sizes = [2, 32], strides = [1, 1]} : vector<2x96xf32> to vector<2x32xf32>
    %375 = arith.mulf %371, %374 : vector<2x32xf32>
    %376 = arith.addf %373, %375 : vector<2x32xf32>
    %377 = math.tanh %376 : vector<2x32xf32>
    %cst_71 = arith.constant 1.000000e+00 : f32
    %378 = vector.broadcast %cst_71 : f32 to vector<2x32xf32>
    %379 = arith.subf %378, %372 : vector<2x32xf32>
    %380 = arith.mulf %379, %377 : vector<2x32xf32>
    %381 = arith.mulf %372, %334 : vector<2x32xf32>
    %382 = arith.addf %380, %381 : vector<2x32xf32>
    %cst_72 = arith.constant dense<0.000000e+00> : vector<2x96xf32>
    %383 = tpu.matmul %358, %2, %cst_72 {dimension_numbers = #tpu.dot_dimension_numbers<[1], [0], [0], [1], [0, 0, 1, 1], [], []>} : vector<2x32xf32>, vector<32x96xf32>, vector<2x96xf32> -> vector<2x96xf32>
    %384 = arith.addf %383, %11 : vector<2x96xf32>
    %cst_73 = arith.constant dense<0.000000e+00> : vector<2x96xf32>
    %385 = tpu.matmul %382, %1, %cst_73 {dimension_numbers = #tpu.dot_dimension_numbers<[1], [0], [0], [1], [0, 0, 1, 1], [], []>} : vector<2x32xf32>, vector<32x96xf32>, vector<2x96xf32> -> vector<2x96xf32>
    %386 = arith.addf %385, %8 : vector<2x96xf32>
    %387 = vector.extract_strided_slice %384 {offsets = [0, 0], sizes = [2, 64], strides = [1, 1]} : vector<2x96xf32> to vector<2x64xf32>
    %388 = vector.extract_strided_slice %386 {offsets = [0, 0], sizes = [2, 64], strides = [1, 1]} : vector<2x96xf32> to vector<2x64xf32>
    %389 = arith.addf %387, %388 : vector<2x64xf32>
    %390 = arith.negf %389 : vector<2x64xf32>
    %391 = math.exp %390 : vector<2x64xf32>
    %cst_74 = arith.constant 1.000000e+00 : f32
    %392 = vector.broadcast %cst_74 : f32 to vector<2x64xf32>
    %393 = arith.addf %392, %391 : vector<2x64xf32>
    %394 = arith.divf %392, %393 : vector<2x64xf32>
    %395 = vector.extract_strided_slice %394 {offsets = [0, 0], sizes = [2, 32], strides = [1, 1]} : vector<2x64xf32> to vector<2x32xf32>
    %396 = vector.extract_strided_slice %394 {offsets = [0, 32], sizes = [2, 32], strides = [1, 1]} : vector<2x64xf32> to vector<2x32xf32>
    %397 = vector.extract_strided_slice %384 {offsets = [0, 64], sizes = [2, 32], strides = [1, 1]} : vector<2x96xf32> to vector<2x32xf32>
    %398 = vector.extract_strided_slice %386 {offsets = [0, 64], sizes = [2, 32], strides = [1, 1]} : vector<2x96xf32> to vector<2x32xf32>
    %399 = arith.mulf %395, %398 : vector<2x32xf32>
    %400 = arith.addf %397, %399 : vector<2x32xf32>
    %401 = math.tanh %400 : vector<2x32xf32>
    %cst_75 = arith.constant 1.000000e+00 : f32
    %402 = vector.broadcast %cst_75 : f32 to vector<2x32xf32>
    %403 = arith.subf %402, %396 : vector<2x32xf32>
    %404 = arith.mulf %403, %401 : vector<2x32xf32>
    %405 = arith.mulf %396, %382 : vector<2x32xf32>
    %406 = arith.addf %404, %405 : vector<2x32xf32>
    %407 = tpu.concatenate %94, %142, %190, %238, %286, %334, %382, %406 in 1 : vector<2x32xf32>, vector<2x32xf32>, vector<2x32xf32>, vector<2x32xf32>, vector<2x32xf32>, vector<2x32xf32>, vector<2x32xf32>, vector<2x32xf32> -> vector<2x256xf32>
    %c0_76 = arith.constant 0 : index
    %c0_77 = arith.constant 0 : index
    %408 = vector.load %arg9[%c0_76, %c0_77] : memref<2x256xf32, #tpu.memory_space<vmem>>, vector<2x256xf32>
    tpu.vector_store %arg9[%c0_76, %c0_77], %407 {strides = array<i32>} : memref<2x256xf32, #tpu.memory_space<vmem>>, vector<2x256xf32>,
    %c0_78 = arith.constant 0 : index
    %c0_79 = arith.constant 0 : index
    %c0_80 = arith.constant 0 : index
    %409 = vector.load %arg10[%c0_78, %c0_79, %c0_80] : memref<2x2x32xf32, #tpu.memory_space<vmem>>, vector<1x2x32xf32>
    %410 = vector.shape_cast %409 : vector<1x2x32xf32> to vector<2x32xf32>
    %411 = vector.shape_cast %358 : vector<2x32xf32> to vector<1x2x32xf32>
    tpu.vector_store %arg10[%c0_78, %c0_79, %c0_80], %411 {strides = array<i32>} : memref<2x2x32xf32, #tpu.memory_space<vmem>>, vector<1x2x32xf32>,
    %c1 = arith.constant 1 : index
    %c0_81 = arith.constant 0 : index
    %c0_82 = arith.constant 0 : index
    %412 = vector.load %arg10[%c1, %c0_81, %c0_82] : memref<2x2x32xf32, #tpu.memory_space<vmem>>, vector<1x2x32xf32>
    %413 = vector.shape_cast %412 : vector<1x2x32xf32> to vector<2x32xf32>
    %414 = vector.shape_cast %406 : vector<2x32xf32> to vector<1x2x32xf32>
    tpu.vector_store %arg10[%c1, %c0_81, %c0_82], %414 {strides = array<i32>} : memref<2x2x32xf32, #tpu.memory_space<vmem>>, vector<1x2x32xf32>,
    return
  }
}

</mosaic_0001>

<llo_original>
// kernel: encoder_forward.1
$region0: #{encoder_forward.1}
  #allocation0 [shape = 'u32[]', space=smem, size = 0x4, offset = 0x4, fixed_abs, tag = 'smem constant byte address 0x4 - core index']
  #allocation1 [shape = 'u32[144,128]{1,0:T(1,128)}', space=vmem, size = 0x12000, scoped, tag = 'internal scratch']
  %s0 = inlined_call_operand.vmem [shape: f32[2,8,32], index: 0, kind: input, shape index: {}]
  %s1 = inlined_call_operand.hbm [shape: f32[32,96], index: 1, kind: input, shape index: {}]
  %s2 = inlined_call_operand.vmem [shape: f32[1,96], index: 2, kind: input, shape index: {}]
  %s3 = inlined_call_operand.hbm [shape: f32[32,96], index: 3, kind: input, shape index: {}]
  %s4 = inlined_call_operand.hbm [shape: f32[32,96], index: 4, kind: input, shape index: {}]
  %s5 = inlined_call_operand.vmem [shape: f32[1,96], index: 5, kind: input, shape index: {}]
  %s6 = inlined_call_operand.vmem [shape: f32[1,96], index: 6, kind: input, shape index: {}]
  %s7 = inlined_call_operand.hbm [shape: f32[32,96], index: 7, kind: input, shape index: {}]
  %s8 = inlined_call_operand.vmem [shape: f32[1,96], index: 8, kind: input, shape index: {}]
  %s9 = inlined_call_operand.vmem [shape: f32[2,256], index: 9, kind: output, shape index: {0}]
  %s10 = inlined_call_operand.hbm [shape: f32[2,2,32], index: 10, kind: output, shape index: {1}]
  %11 = xla_tuple %s9, %s10
  %s12 = sld [smem:[#allocation0]]
  $region70: #{encoder_forward.1} parent=0
    _
  %s14 = ssub.s32 1, %s12
  %s15 = scalar_select 0, %s14, %s12
  $region1: #{encoder_forward.1} parent=0
    #allocation2 [shape = 'u8[16384]{0}', space=vmem, size = 0x4000, scoped, tag = 'input window, operand 1, single buffered']
    #allocation3 [shape = 's32[1]{0}', space=sflag, size = 0x4, scoped, tag = 'scoped memory for encoder_forward.1']
    #allocation4 [shape = 's32[1]{0}', space=sflag, size = 0x4, scoped, tag = 'scoped memory for encoder_forward.1']
    #allocation5 [shape = 'u8[16384]{0}', space=vmem, size = 0x4000, scoped, tag = 'input window, operand 3, single buffered']
    #allocation6 [shape = 's32[1]{0}', space=sflag, size = 0x4, scoped, tag = 'scoped memory for encoder_forward.1']
    #allocation7 [shape = 'u8[16384]{0}', space=vmem, size = 0x4000, scoped, tag = 'input window, operand 4, single buffered']
    #allocation8 [shape = 'u8[16384]{0}', space=vmem, size = 0x4000, scoped, tag = 'input window, operand 7, single buffered']
    #allocation9 [shape = 's32[1]{0}', space=sflag, size = 0x4, scoped, tag = 'scoped memory for encoder_forward.1']
    #allocation10 [shape = 'u8[2048]{0}', space=vmem, size = 0x800, scoped, tag = 'output window, operand 1, single buffered']
    %16 = vsyncpa [#allocation3], 0
    %17 = vsyncpa [#allocation6], 0
    %18 = vsyncpa [#allocation9], 0
    %19 = vsyncpa [#allocation4], 0
    // Predicated region
    $region2: #{encoder_forward.1} parent=1 // pred_check
      _
    $region3: #{encoder_forward.1} parent=1 // pred_check_branch
      %21 = sbr.rel (0) target = $region5
    $region4: #{encoder_forward.1} parent=1 // pred_region
      _
    $region5: #{encoder_forward.1} parent=1 // pred_fallthru
      _
    // Predicated region
    $region6: #{encoder_forward.1} parent=1 // pred_check
      _
    $region7: #{encoder_forward.1} parent=1 // pred_check_branch
      %23 = sbr.rel (0) target = $region9
    $region8: #{encoder_forward.1} parent=1 // pred_region
      %s25 = ssub.s32 512, 512
      %26 = vsyncadd [#allocation3], %s25
      %s27 = sshll.u32 [#allocation2], 4
      %s28 = int_to_ptr.vmem [resolvable:$true] %s27
      %33 = dma.hbm_to_vmem [thread:$0]  %s1, 512, %s28, [#allocation3], 128, 128, 8
    $region9: #{encoder_forward.1} parent=1 // pred_fallthru
      _
    // Predicated region
    $region10: #{encoder_forward.1} parent=1 // pred_check
      _
    $region11: #{encoder_forward.1} parent=1 // pred_check_branch
      %35 = sbr.rel (0) target = $region13
    $region12: #{encoder_forward.1} parent=1 // pred_region
      _
    $region13: #{encoder_forward.1} parent=1 // pred_fallthru
      _
    // Predicated region
    $region14: #{encoder_forward.1} parent=1 // pred_check
      _
    $region15: #{encoder_forward.1} parent=1 // pred_check_branch
      %37 = sbr.rel (0) target = $region17
    $region16: #{encoder_forward.1} parent=1 // pred_region
      %s39 = ssub.s32 512, 512
      %40 = vsyncadd [#allocation6], %s39
      %s41 = sshll.u32 [#allocation5], 4
      %s42 = int_to_ptr.vmem [resolvable:$true] %s41
      %47 = dma.hbm_to_vmem [thread:$0]  %s3, 512, %s42, [#allocation6], 128, 128, 8
    $region17: #{encoder_forward.1} parent=1 // pred_fallthru
      _
    // Predicated region
    $region18: #{encoder_forward.1} parent=1 // pred_check
      _
    $region19: #{encoder_forward.1} parent=1 // pred_check_branch
      %49 = sbr.rel (0) target = $region21
    $region20: #{encoder_forward.1} parent=1 // pred_region
      %s51 = ssub.s32 512, 512
      %52 = vsyncadd [#allocation6], %s51
      %s53 = sshll.u32 [#allocation7], 4
      %s54 = int_to_ptr.vmem [resolvable:$true] %s53
      %59 = dma.hbm_to_vmem [thread:$0]  %s4, 512, %s54, [#allocation6], 128, 128, 8
    $region21: #{encoder_forward.1} parent=1 // pred_fallthru
      _
    // Predicated region
    $region22: #{encoder_forward.1} parent=1 // pred_check
      _
    $region23: #{encoder_forward.1} parent=1 // pred_check_branch
      %61 = sbr.rel (0) target = $region25
    $region24: #{encoder_forward.1} parent=1 // pred_region
      _
    $region25: #{encoder_forward.1} parent=1 // pred_fallthru
      _
    // Predicated region
    $region26: #{encoder_forward.1} parent=1 // pred_check
      _
    $region27: #{encoder_forward.1} parent=1 // pred_check_branch
      %63 = sbr.rel (0) target = $region29
    $region28: #{encoder_forward.1} parent=1 // pred_region
      _
    $region29: #{encoder_forward.1} parent=1 // pred_fallthru
      _
    // Predicated region
    $region30: #{encoder_forward.1} parent=1 // pred_check
      _
    $region31: #{encoder_forward.1} parent=1 // pred_check_branch
      %65 = sbr.rel (0) target = $region33
    $region32: #{encoder_forward.1} parent=1 // pred_region
      %s67 = ssub.s32 512, 512
      %68 = vsyncadd [#allocation9], %s67
      %s69 = sshll.u32 [#allocation8], 4
      %s70 = int_to_ptr.vmem [resolvable:$true] %s69
      %75 = dma.hbm_to_vmem [thread:$0]  %s7, 512, %s70, [#allocation9], 128, 128, 8
    $region33: #{encoder_forward.1} parent=1 // pred_fallthru
      _
    // Predicated region
    $region34: #{encoder_forward.1} parent=1 // pred_check
      _
    $region35: #{encoder_forward.1} parent=1 // pred_check_branch
      %77 = sbr.rel (0) target = $region37
    $region36: #{encoder_forward.1} parent=1 // pred_region
      _
    $region37: #{encoder_forward.1} parent=1 // pred_fallthru
      _
    // Predicated region
    $region38: #{encoder_forward.1} parent=1 // pred_check
      _
    $region39: #{encoder_forward.1} parent=1 // pred_check_branch
      %79 = sbr.rel (0) target = $region41
    $region40: #{encoder_forward.1} parent=1 // pred_region
      %80 = dma.done [#allocation3], 512
    $region41: #{encoder_forward.1} parent=1 // pred_fallthru
      _
    // Predicated region
    $region42: #{encoder_forward.1} parent=1 // pred_check
      _
    $region43: #{encoder_forward.1} parent=1 // pred_check_branch
      %82 = sbr.rel (0) target = $region45
    $region44: #{encoder_forward.1} parent=1 // pred_region
      %83 = dma.done [#allocation6], 512
    $region45: #{encoder_forward.1} parent=1 // pred_fallthru
      _
    // Predicated region
    $region46: #{encoder_forward.1} parent=1 // pred_check
      _
    $region47: #{encoder_forward.1} parent=1 // pred_check_branch
      %85 = sbr.rel (0) target = $region49
    $region48: #{encoder_forward.1} parent=1 // pred_region
      %86 = dma.done [#allocation6], 512
    $region49: #{encoder_forward.1} parent=1 // pred_fallthru
      _
    // Predicated region
    $region50: #{encoder_forward.1} parent=1 // pred_check
      _
    $region51: #{encoder_forward.1} parent=1 // pred_check_branch
      %88 = sbr.rel (0) target = $region53
    $region52: #{encoder_forward.1} parent=1 // pred_region
      %89 = dma.done [#allocation9], 512
    $region53: #{encoder_forward.1} parent=1 // pred_fallthru
      _
    %v90 = vld [vmem:[#allocation5] sm:$0xff]
    %v91 = vld [vmem:[#allocation5 + $0x8] sm:$0xff]
    %v92 = vld [vmem:[#allocation5 + $0x10] sm:$0xff]
    %v93 = vld [vmem:[#allocation5 + $0x18] sm:$0xff]
    %v94 = vld [vmem:[#allocation7] sm:$0xff]
    %v95 = vld [vmem:[#allocation7 + $0x8] sm:$0xff]
    %v96 = vld [vmem:[#allocation7 + $0x10] sm:$0xff]
    %v97 = vld [vmem:[#allocation7 + $0x18] sm:$0xff]
    %v98 = vld [vmem:[#allocation8] sm:$0xff]
    %v99 = vld [vmem:[#allocation8 + $0x8] sm:$0xff]
    %v100 = vld [vmem:[#allocation8 + $0x10] sm:$0xff]
    %v101 = vld [vmem:[#allocation8 + $0x18] sm:$0xff]
    %v102 = vld [vmem:[%s5] sm:$0x1]
    %v104 = vlaneseq
    %v105 = vshrl.u32 %v104, 7
    %v106 = vsub.s32 0, %v105
    %v107 = vrot.slane %v102, %v106
    %v109 = vld [vmem:[%s6] sm:$0x1]
    %v111 = vlaneseq
    %v112 = vshrl.u32 %v111, 7
    %v113 = vsub.s32 0, %v112
    %v114 = vrot.slane %v109, %v113
    %v116 = vld [vmem:[%s8] sm:$0x1]
    %v118 = vlaneseq
    %v119 = vshrl.u32 %v118, 7
    %v120 = vsub.s32 0, %v119
    %v121 = vrot.slane %v116, %v120
    %v123 = vld [vmem:[%s0] sm:$0xff]
    %v124 = vld [vmem:[%s0 + $0x8] sm:$0xff]
    %v125 = vld [vmem:[#allocation2] sm:$0xff]
    %v126 = vld [vmem:[#allocation2 + $0x8] sm:$0xff]
    %v127 = vld [vmem:[#allocation2 + $0x10] sm:$0xff]
    %v128 = vld [vmem:[#allocation2 + $0x18] sm:$0xff]
    %v129 = vld [vmem:[%s2] sm:$0x1]
    %v131 = vlaneseq
    %v132 = vshrl.u32 %v131, 7
    %v133 = vsub.s32 0, %v132
    %v134 = vrot.slane %v129, %v133
    %vm136 = vcmask 261120
    %v138 = vsel %vm136, %v123, 0
    %v141 = vsel %vm136, %v124, 0
    %143 = vmatprep.subr.mxu0 0.0
    %144 = vmatpush1.msra.mxu0 %v125
    %145 = vmatprep.subr.mxu0 0.0
    %146 = vmatpush1.msra.mxu0 %v126
    %147 = vmatprep.subr.mxu0 0.0
    %148 = vmatpush1.msra.mxu0 %v127
    %149 = vmatprep.subr.mxu0 0.0
    %150 = vmatpush1.msra.mxu0 %v128
    %151 = vmatprep.subr.mxu0 0.0
    %152 = vmatpush1.msra.mxu0 0.0
    %153 = vmatprep.subr.mxu0 0.0
    %154 = vmatpush1.msra.mxu0 0.0
    %155 = vmatprep.subr.mxu0 0.0
    %156 = vmatpush1.msra.mxu0 0.0
    %157 = vmatprep.subr.mxu0 0.0
    %158 = vmatpush1.msra.mxu0 0.0
    %159 = vmatprep.subr.mxu0 0.0
    %160 = vmatpush1.msra.mxu0 0.0
    %161 = vmatprep.subr.mxu0 0.0
    %162 = vmatpush1.msra.mxu0 0.0
    %163 = vmatprep.subr.mxu0 0.0
    %164 = vmatpush1.msra.mxu0 0.0
    %165 = vmatprep.subr.mxu0 0.0
    %166 = vmatpush1.msra.mxu0 0.0
    %167 = vmatprep.subr.mxu0 0.0
    %168 = vmatpush1.msra.mxu0 0.0
    %169 = vmatprep.subr.mxu0 0.0
    %170 = vmatpush1.msra.mxu0 0.0
    %171 = vmatprep.subr.mxu0 0.0
    %172 = vmatpush1.msra.mxu0 0.0
    %173 = vmatprep.subr.mxu0 0.0
    %174 = vmatpush1.msra.mxu0 0.0
    %175 = vmatprep.subr.mxu0 0.0
    %176 = vmatpush1.msra.mxu0 0.0
    %177 = vmatprep.subr.mxu0 0.0
    %178 = vmatpush1.msra.mxu0 0.0
    %179 = vmatprep.subr.mxu0 0.0
    %180 = vmatpush1.msra.mxu0 0.0
    %181 = vmatprep.subr.mxu0 0.0
    %182 = vmatpush1.msra.mxu0 0.0
    %183 = vmatprep.subr.mxu0 0.0
    %184 = vmatpush1.msra.mxu0 0.0
    %185 = vmatprep.subr.mxu0 0.0
    %186 = vmatpush1.msra.mxu0 0.0
    %187 = vmatprep.subr.mxu0 0.0
    %188 = vmatpush1.msra.mxu0 0.0
    %189 = vmatprep.subr.mxu0 0.0
    %190 = vmatpush1.msra.mxu0 0.0
    %191 = vmatprep.subr.mxu0 0.0
    %192 = vmatpush1.msra.mxu0 0.0
    %193 = vmatprep.subr.mxu0 0.0
    %194 = vmatpush1.msra.mxu0 0.0
    %195 = vmatprep.subr.mxu0 0.0
    %196 = vmatpush1.msra.mxu0 0.0
    %197 = vmatprep.subr.mxu0 0.0
    %198 = vmatpush1.msra.mxu0 0.0
    %199 = vmatprep.subr.mxu0 0.0
    %200 = vmatpush1.msra.mxu0 0.0
    %201 = vmatprep.subr.mxu0 0.0
    %202 = vmatpush1.msra.mxu0 0.0
    %203 = vmatprep.subr.mxu0 0.0
    %204 = vmatpush1.msra.mxu0 0.0
    %205 = vmatprep.subr.mxu0 0.0
    %206 = vmatpush1.msra.mxu0 0.0
    %207 = vmatprep.mubr.f32.mxu0 0.0
    %208 = vmatmul.mubr.f32.gmra.mrb[0].mxu0 %v138
    %v209 = vpop.f32.mrb[0].mxu0
    %v210 = vadd.f32 %v134, %v209
    %v211 = vpop.f32.mrb[0].mxu0
    %212 = vmatprep.mubr.f32.mxu0 0.0
    %213 = vmatmul.mubr.f32.gmra.mrb[0].mxu0 %v141
    %v214 = vpop.f32.mrb[0].mxu0
    %v215 = vadd.f32 %v134, %v214
    %v216 = vpop.f32.mrb[0].mxu0
    %217 = vdwg.mxu0
    %v219 = vsel %vm136, 0.0, 0
    %221 = vmatprep.subr.mxu0 0.0
    %222 = vmatpush1.msra.mxu0 %v90
    %223 = vmatprep.subr.mxu0 0.0
    %224 = vmatpush1.msra.mxu0 %v91
    %225 = vmatprep.subr.mxu0 0.0
    %226 = vmatpush1.msra.mxu0 %v92
    %227 = vmatprep.subr.mxu0 0.0
    %228 = vmatpush1.msra.mxu0 %v93
    %229 = vmatprep.subr.mxu0 0.0
    %230 = vmatpush1.msra.mxu0 0.0
    %231 = vmatprep.subr.mxu0 0.0
    %232 = vmatpush1.msra.mxu0 0.0
    %233 = vmatprep.subr.mxu0 0.0
    %234 = vmatpush1.msra.mxu0 0.0
    %235 = vmatprep.subr.mxu0 0.0
    %236 = vmatpush1.msra.mxu0 0.0
    %237 = vmatprep.subr.mxu0 0.0
    %238 = vmatpush1.msra.mxu0 0.0
    %239 = vmatprep.subr.mxu0 0.0
    %240 = vmatpush1.msra.mxu0 0.0
    %241 = vmatprep.subr.mxu0 0.0
    %242 = vmatpush1.msra.mxu0 0.0
    %243 = vmatprep.subr.mxu0 0.0
    %244 = vmatpush1.msra.mxu0 0.0
    %245 = vmatprep.subr.mxu0 0.0
    %246 = vmatpush1.msra.mxu0 0.0
    %247 = vmatprep.subr.mxu0 0.0
    %248 = vmatpush1.msra.mxu0 0.0
    %249 = vmatprep.subr.mxu0 0.0
    %250 = vmatpush1.msra.mxu0 0.0
    %251 = vmatprep.subr.mxu0 0.0
    %252 = vmatpush1.msra.mxu0 0.0
    %253 = vmatprep.subr.mxu0 0.0
    %254 = vmatpush1.msra.mxu0 0.0
    %255 = vmatprep.subr.mxu0 0.0
    %256 = vmatpush1.msra.mxu0 0.0
    %257 = vmatprep.subr.mxu0 0.0
    %258 = vmatpush1.msra.mxu0 0.0
    %259 = vmatprep.subr.mxu0 0.0
    %260 = vmatpush1.msra.mxu0 0.0
    %261 = vmatprep.subr.mxu0 0.0
    %262 = vmatpush1.msra.mxu0 0.0
    %263 = vmatprep.subr.mxu0 0.0
    %264 = vmatpush1.msra.mxu0 0.0
    %265 = vmatprep.subr.mxu0 0.0
    %266 = vmatpush1.msra.mxu0 0.0
    %267 = vmatprep.subr.mxu0 0.0
    %268 = vmatpush1.msra.mxu0 0.0
    %269 = vmatprep.subr.mxu0 0.0
    %270 = vmatpush1.msra.mxu0 0.0
    %271 = vmatprep.subr.mxu0 0.0
    %272 = vmatpush1.msra.mxu0 0.0
    %273 = vmatprep.subr.mxu0 0.0
    %274 = vmatpush1.msra.mxu0 0.0
    %275 = vmatprep.subr.mxu0 0.0
    %276 = vmatpush1.msra.mxu0 0.0
    %277 = vmatprep.subr.mxu0 0.0
    %278 = vmatpush1.msra.mxu0 0.0
    %279 = vmatprep.subr.mxu0 0.0
    %280 = vmatpush1.msra.mxu0 0.0
    %281 = vmatprep.subr.mxu0 0.0
    %282 = vmatpush1.msra.mxu0 0.0
    %283 = vmatprep.subr.mxu0 0.0
    %284 = vmatpush1.msra.mxu0 0.0
    %285 = vmatprep.mubr.f32.mxu0 0.0
    %286 = vmatmul.mubr.f32.gmra.mrb[0].mxu0 %v219
    %v287 = vpop.f32.mrb[0].mxu0
    %v288 = vadd.f32 %v107, %v287
    %v289 = vpop.f32.mrb[0].mxu0
    %290 = vdwg.mxu0
    %v292 = vrot.slane %v288, 1
    %v295 = vadd.f32 %v210, %v288
    %v296 = vadd.f32 %v215, %v292
    %v297 = vxor.u32 %v295, 2147483648
    %v298 = vxor.u32 %v296, 2147483648
    %v299 = vmul.f32 %v297, 1.442695
    %v300 = vpow.pop %v299
    %v301 = vmul.f32 %v298, 1.442695
    %v302 = vpow.pop %v301
    %v303 = vadd.f32 %v300, 1.0
    %v304 = vadd.f32 %v302, 1.0
    %v305 = vrcp.pop %v303
    %v306 = vmul.f32 1.0, %v305
    %v307 = vrcp.pop %v304
    %v308 = vmul.f32 1.0, %v307
    %309 = vrot.lane.b32.xlu0 %v288, 64
    %v310 = vpop.permute.xlu0 %309
    %311 = vrot.lane.b32.xlu0 %v292, 64
    %v312 = vpop.permute.xlu0 %311
    %v315 = vmul.f32 %v306, %v310
    %v316 = vmul.f32 %v308, %v312
    %319 = vrot.lane.b32.xlu0 %v315, 64
    %v320 = vpop.permute.xlu0 %319
    %321 = vrot.lane.b32.xlu0 %v316, 64
    %v322 = vpop.permute.xlu0 %321
    %v325 = vadd.f32 %v210, %v320
    %v326 = vadd.f32 %v215, %v322
    %v327 = vtanh.pop %v325
    %v328 = vtanh.pop %v326
    %v329 = vsub.f32 1.0, %v306
    %v330 = vsub.f32 1.0, %v308
    %333 = vrot.lane.b32.xlu0 %v327, 96
    %v334 = vpop.permute.xlu0 %333
    %335 = vrot.lane.b32.xlu0 %v328, 96
    %v336 = vpop.permute.xlu0 %335
    %v339 = vmul.f32 %v329, %v334
    %v340 = vmul.f32 %v330, %v336
    %v341 = vmul.f32 %v306, 0.0
    %v342 = vmul.f32 %v308, 0.0
    %v343 = vadd.f32 %v339, %v341
    %v344 = vadd.f32 %v340, %v342
    %v347 = vrot.slane %v344, 7
    %vm348 = vcmask 1041409
    %v349 = vsel %vm348, %v347, %v343
    %350 = vrot.lane.b32.xlu0 %v349, 96
    %v351 = vpop.permute.xlu0 %350
    %v352 = vsel %vm136, %v351, 0
    %354 = vmatprep.subr.mxu0 0.0
    %355 = vmatpush1.msra.mxu0 %v90
    %356 = vmatprep.subr.mxu0 0.0
    %357 = vmatpush1.msra.mxu0 %v91
    %358 = vmatprep.subr.mxu0 0.0
    %359 = vmatpush1.msra.mxu0 %v92
    %360 = vmatprep.subr.mxu0 0.0
    %361 = vmatpush1.msra.mxu0 %v93
    %362 = vmatprep.subr.mxu0 0.0
    %363 = vmatpush1.msra.mxu0 0.0
    %364 = vmatprep.subr.mxu0 0.0
    %365 = vmatpush1.msra.mxu0 0.0
    %366 = vmatprep.subr.mxu0 0.0
    %367 = vmatpush1.msra.mxu0 0.0
    %368 = vmatprep.subr.mxu0 0.0
    %369 = vmatpush1.msra.mxu0 0.0
    %370 = vmatprep.subr.mxu0 0.0
    %371 = vmatpush1.msra.mxu0 0.0
    %372 = vmatprep.subr.mxu0 0.0
    %373 = vmatpush1.msra.mxu0 0.0
    %374 = vmatprep.subr.mxu0 0.0
    %375 = vmatpush1.msra.mxu0 0.0
    %376 = vmatprep.subr.mxu0 0.0
    %377 = vmatpush1.msra.mxu0 0.0
    %378 = vmatprep.subr.mxu0 0.0
    %379 = vmatpush1.msra.mxu0 0.0
    %380 = vmatprep.subr.mxu0 0.0
    %381 = vmatpush1.msra.mxu0 0.0
    %382 = vmatprep.subr.mxu0 0.0
    %383 = vmatpush1.msra.mxu0 0.0
    %384 = vmatprep.subr.mxu0 0.0
    %385 = vmatpush1.msra.mxu0 0.0
    %386 = vmatprep.subr.mxu0 0.0
    %387 = vmatpush1.msra.mxu0 0.0
    %388 = vmatprep.subr.mxu0 0.0
    %389 = vmatpush1.msra.mxu0 0.0
    %390 = vmatprep.subr.mxu0 0.0
    %391 = vmatpush1.msra.mxu0 0.0
    %392 = vmatprep.subr.mxu0 0.0
    %393 = vmatpush1.msra.mxu0 0.0
    %394 = vmatprep.subr.mxu0 0.0
    %395 = vmatpush1.msra.mxu0 0.0
    %396 = vmatprep.subr.mxu0 0.0
    %397 = vmatpush1.msra.mxu0 0.0
    %398 = vmatprep.subr.mxu0 0.0
    %399 = vmatpush1.msra.mxu0 0.0
    %400 = vmatprep.subr.mxu0 0.0
    %401 = vmatpush1.msra.mxu0 0.0
    %402 = vmatprep.subr.mxu0 0.0
    %403 = vmatpush1.msra.mxu0 0.0
    %404 = vmatprep.subr.mxu0 0.0
    %405 = vmatpush1.msra.mxu0 0.0
    %406 = vmatprep.subr.mxu0 0.0
    %407 = vmatpush1.msra.mxu0 0.0
    %408 = vmatprep.subr.mxu0 0.0
    %409 = vmatpush1.msra.mxu0 0.0
    %410 = vmatprep.subr.mxu0 0.0
    %411 = vmatpush1.msra.mxu0 0.0
    %412 = vmatprep.subr.mxu0 0.0
    %413 = vmatpush1.msra.mxu0 0.0
    %414 = vmatprep.subr.mxu0 0.0
    %415 = vmatpush1.msra.mxu0 0.0
    %416 = vmatprep.subr.mxu0 0.0
    %417 = vmatpush1.msra.mxu0 0.0
    %418 = vmatprep.mubr.f32.mxu0 0.0
    %419 = vmatmul.mubr.f32.gmra.mrb[0].mxu0 %v352
    %v420 = vpop.f32.mrb[0].mxu0
    %v421 = vadd.f32 %v107, %v420
    %v422 = vpop.f32.mrb[0].mxu0
    %423 = vdwg.mxu0
    %v425 = vrot.slane %v421, 7
    %v428 = vadd.f32 %v210, %v425
    %v429 = vadd.f32 %v215, %v421
    %v430 = vxor.u32 %v428, 2147483648
    %v431 = vxor.u32 %v429, 2147483648
    %v432 = vmul.f32 %v430, 1.442695
    %v433 = vpow.pop %v432
    %v434 = vmul.f32 %v431, 1.442695
    %v435 = vpow.pop %v434
    %v436 = vadd.f32 %v433, 1.0
    %v437 = vadd.f32 %v435, 1.0
    %v438 = vrcp.pop %v436
    %v439 = vmul.f32 1.0, %v438
    %v440 = vrcp.pop %v437
    %v441 = vmul.f32 1.0, %v440
    %442 = vrot.lane.b32.xlu0 %v425, 64
    %v443 = vpop.permute.xlu0 %442
    %444 = vrot.lane.b32.xlu0 %v421, 64
    %v445 = vpop.permute.xlu0 %444
    %v448 = vmul.f32 %v439, %v443
    %v449 = vmul.f32 %v441, %v445
    %452 = vrot.lane.b32.xlu0 %v448, 64
    %v453 = vpop.permute.xlu0 %452
    %454 = vrot.lane.b32.xlu0 %v449, 64
    %v455 = vpop.permute.xlu0 %454
    %v458 = vadd.f32 %v210, %v453
    %v459 = vadd.f32 %v215, %v455
    %v460 = vtanh.pop %v458
    %v461 = vtanh.pop %v459
    %v462 = vsub.f32 1.0, %v439
    %v463 = vsub.f32 1.0, %v441
    %466 = vrot.lane.b32.xlu0 %v460, 96
    %v467 = vpop.permute.xlu0 %466
    %468 = vrot.lane.b32.xlu0 %v461, 96
    %v469 = vpop.permute.xlu0 %468
    %v472 = vmul.f32 %v462, %v467
    %v473 = vmul.f32 %v463, %v469
    %v474 = vrot.slane %v343, 7
    %v477 = vmul.f32 %v439, %v474
    %v478 = vmul.f32 %v441, %v347
    %v479 = vadd.f32 %v472, %v477
    %v480 = vadd.f32 %v473, %v478
    %481 = vmatprep.subr.mxu0 0.0
    %482 = vmatpush1.msra.mxu0 %v98
    %483 = vmatprep.subr.mxu0 0.0
    %484 = vmatpush1.msra.mxu0 %v99
    %485 = vmatprep.subr.mxu0 0.0
    %486 = vmatpush1.msra.mxu0 %v100
    %487 = vmatprep.subr.mxu0 0.0
    %488 = vmatpush1.msra.mxu0 %v101
    %489 = vmatprep.subr.mxu0 0.0
    %490 = vmatpush1.msra.mxu0 0.0
    %491 = vmatprep.subr.mxu0 0.0
    %492 = vmatpush1.msra.mxu0 0.0
    %493 = vmatprep.subr.mxu0 0.0
    %494 = vmatpush1.msra.mxu0 0.0
    %495 = vmatprep.subr.mxu0 0.0
    %496 = vmatpush1.msra.mxu0 0.0
    %497 = vmatprep.subr.mxu0 0.0
    %498 = vmatpush1.msra.mxu0 0.0
    %499 = vmatprep.subr.mxu0 0.0
    %500 = vmatpush1.msra.mxu0 0.0
    %501 = vmatprep.subr.mxu0 0.0
    %502 = vmatpush1.msra.mxu0 0.0
    %503 = vmatprep.subr.mxu0 0.0
    %504 = vmatpush1.msra.mxu0 0.0
    %505 = vmatprep.subr.mxu0 0.0
    %506 = vmatpush1.msra.mxu0 0.0
    %507 = vmatprep.subr.mxu0 0.0
    %508 = vmatpush1.msra.mxu0 0.0
    %509 = vmatprep.subr.mxu0 0.0
    %510 = vmatpush1.msra.mxu0 0.0
    %511 = vmatprep.subr.mxu0 0.0
    %512 = vmatpush1.msra.mxu0 0.0
    %513 = vmatprep.subr.mxu0 0.0
    %514 = vmatpush1.msra.mxu0 0.0
    %515 = vmatprep.subr.mxu0 0.0
    %516 = vmatpush1.msra.mxu0 0.0
    %517 = vmatprep.subr.mxu0 0.0
    %518 = vmatpush1.msra.mxu0 0.0
    %519 = vmatprep.subr.mxu0 0.0
    %520 = vmatpush1.msra.mxu0 0.0
    %521 = vmatprep.subr.mxu0 0.0
    %522 = vmatpush1.msra.mxu0 0.0
    %523 = vmatprep.subr.mxu0 0.0
    %524 = vmatpush1.msra.mxu0 0.0
    %525 = vmatprep.subr.mxu0 0.0
    %526 = vmatpush1.msra.mxu0 0.0
    %527 = vmatprep.subr.mxu0 0.0
    %528 = vmatpush1.msra.mxu0 0.0
    %529 = vmatprep.subr.mxu0 0.0
    %530 = vmatpush1.msra.mxu0 0.0
    %531 = vmatprep.subr.mxu0 0.0
    %532 = vmatpush1.msra.mxu0 0.0
    %533 = vmatprep.subr.mxu0 0.0
    %534 = vmatpush1.msra.mxu0 0.0
    %535 = vmatprep.subr.mxu0 0.0
    %536 = vmatpush1.msra.mxu0 0.0
    %537 = vmatprep.subr.mxu0 0.0
    %538 = vmatpush1.msra.mxu0 0.0
    %539 = vmatprep.subr.mxu0 0.0
    %540 = vmatpush1.msra.mxu0 0.0
    %541 = vmatprep.subr.mxu0 0.0
    %542 = vmatpush1.msra.mxu0 0.0
    %543 = vmatprep.subr.mxu0 0.0
    %544 = vmatpush1.msra.mxu0 0.0
    %545 = vmatprep.mubr.f32.mxu0 0.0
    %546 = vmatmul.mubr.f32.gmra.mrb[0].mxu0 %v352
    %v547 = vpop.f32.mrb[0].mxu0
    %v548 = vadd.f32 %v121, %v547
    %v549 = vpop.f32.mrb[0].mxu0
    %550 = vdwg.mxu0
    %551 = vmatprep.subr.mxu0 0.0
    %552 = vmatpush1.msra.mxu0 %v94
    %553 = vmatprep.subr.mxu0 0.0
    %554 = vmatpush1.msra.mxu0 %v95
    %555 = vmatprep.subr.mxu0 0.0
    %556 = vmatpush1.msra.mxu0 %v96
    %557 = vmatprep.subr.mxu0 0.0
    %558 = vmatpush1.msra.mxu0 %v97
    %559 = vmatprep.subr.mxu0 0.0
    %560 = vmatpush1.msra.mxu0 0.0
    %561 = vmatprep.subr.mxu0 0.0
    %562 = vmatpush1.msra.mxu0 0.0
    %563 = vmatprep.subr.mxu0 0.0
    %564 = vmatpush1.msra.mxu0 0.0
    %565 = vmatprep.subr.mxu0 0.0
    %566 = vmatpush1.msra.mxu0 0.0
    %567 = vmatprep.subr.mxu0 0.0
    %568 = vmatpush1.msra.mxu0 0.0
    %569 = vmatprep.subr.mxu0 0.0
    %570 = vmatpush1.msra.mxu0 0.0
    %571 = vmatprep.subr.mxu0 0.0
    %572 = vmatpush1.msra.mxu0 0.0
    %573 = vmatprep.subr.mxu0 0.0
    %574 = vmatpush1.msra.mxu0 0.0
    %575 = vmatprep.subr.mxu0 0.0
    %576 = vmatpush1.msra.mxu0 0.0
    %577 = vmatprep.subr.mxu0 0.0
    %578 = vmatpush1.msra.mxu0 0.0
    %579 = vmatprep.subr.mxu0 0.0
    %580 = vmatpush1.msra.mxu0 0.0
    %581 = vmatprep.subr.mxu0 0.0
    %582 = vmatpush1.msra.mxu0 0.0
    %583 = vmatprep.subr.mxu0 0.0
    %584 = vmatpush1.msra.mxu0 0.0
    %585 = vmatprep.subr.mxu0 0.0
    %586 = vmatpush1.msra.mxu0 0.0
    %587 = vmatprep.subr.mxu0 0.0
    %588 = vmatpush1.msra.mxu0 0.0
    %589 = vmatprep.subr.mxu0 0.0
    %590 = vmatpush1.msra.mxu0 0.0
    %591 = vmatprep.subr.mxu0 0.0
    %592 = vmatpush1.msra.mxu0 0.0
    %593 = vmatprep.subr.mxu0 0.0
    %594 = vmatpush1.msra.mxu0 0.0
    %595 = vmatprep.subr.mxu0 0.0
    %596 = vmatpush1.msra.mxu0 0.0
    %597 = vmatprep.subr.mxu0 0.0
    %598 = vmatpush1.msra.mxu0 0.0
    %599 = vmatprep.subr.mxu0 0.0
    %600 = vmatpush1.msra.mxu0 0.0
    %601 = vmatprep.subr.mxu0 0.0
    %602 = vmatpush1.msra.mxu0 0.0
    %603 = vmatprep.subr.mxu0 0.0
    %604 = vmatpush1.msra.mxu0 0.0
    %605 = vmatprep.subr.mxu0 0.0
    %606 = vmatpush1.msra.mxu0 0.0
    %607 = vmatprep.subr.mxu0 0.0
    %608 = vmatpush1.msra.mxu0 0.0
    %609 = vmatprep.subr.mxu0 0.0
    %610 = vmatpush1.msra.mxu0 0.0
    %611 = vmatprep.subr.mxu0 0.0
    %612 = vmatpush1.msra.mxu0 0.0
    %613 = vmatprep.subr.mxu0 0.0
    %614 = vmatpush1.msra.mxu0 0.0
    %615 = vmatprep.mubr.f32.mxu0 0.0
    %616 = vmatmul.mubr.f32.gmra.mrb[0].mxu0 %v219
    %v617 = vpop.f32.mrb[0].mxu0
    %v618 = vadd.f32 %v114, %v617
    %v619 = vpop.f32.mrb[0].mxu0
    %620 = vdwg.mxu0
    %v621 = vadd.f32 %v548, %v618
    %v622 = vxor.u32 %v621, 2147483648
    %v623 = vmul.f32 %v622, 1.442695
    %v624 = vpow.pop %v623
    %v625 = vadd.f32 %v624, 1.0
    %v626 = vrcp.pop %v625
    %v627 = vmul.f32 1.0, %v626
    %629 = vrot.lane.b32.xlu0 %v618, 64
    %v630 = vpop.permute.xlu0 %629
    %v632 = vmul.f32 %v627, %v630
    %634 = vrot.lane.b32.xlu0 %v632, 64
    %v635 = vpop.permute.xlu0 %634
    %v637 = vadd.f32 %v548, %v635
    %v638 = vtanh.pop %v637
    %v639 = vsub.f32 1.0, %v627
    %641 = vrot.lane.b32.xlu0 %v638, 96
    %v642 = vpop.permute.xlu0 %641
    %v644 = vmul.f32 %v639, %v642
    %v645 = vmul.f32 %v627, 0.0
    %v646 = vadd.f32 %v644, %v645
    %v649 = vrot.slane %v479, 1
    %v650 = vsel %vm348, %v480, %v649
    %651 = vrot.lane.b32.xlu0 %v650, 96
    %v652 = vpop.permute.xlu0 %651
    %v653 = vsel %vm136, %v652, 0
    %655 = vmatprep.subr.mxu0 0.0
    %656 = vmatpush1.msra.mxu0 %v90
    %657 = vmatprep.subr.mxu0 0.0
    %658 = vmatpush1.msra.mxu0 %v91
    %659 = vmatprep.subr.mxu0 0.0
    %660 = vmatpush1.msra.mxu0 %v92
    %661 = vmatprep.subr.mxu0 0.0
    %662 = vmatpush1.msra.mxu0 %v93
    %663 = vmatprep.subr.mxu0 0.0
    %664 = vmatpush1.msra.mxu0 0.0
    %665 = vmatprep.subr.mxu0 0.0
    %666 = vmatpush1.msra.mxu0 0.0
    %667 = vmatprep.subr.mxu0 0.0
    %668 = vmatpush1.msra.mxu0 0.0
    %669 = vmatprep.subr.mxu0 0.0
    %670 = vmatpush1.msra.mxu0 0.0
    %671 = vmatprep.subr.mxu0 0.0
    %672 = vmatpush1.msra.mxu0 0.0
    %673 = vmatprep.subr.mxu0 0.0
    %674 = vmatpush1.msra.mxu0 0.0
    %675 = vmatprep.subr.mxu0 0.0
    %676 = vmatpush1.msra.mxu0 0.0
    %677 = vmatprep.subr.mxu0 0.0
    %678 = vmatpush1.msra.mxu0 0.0
    %679 = vmatprep.subr.mxu0 0.0
    %680 = vmatpush1.msra.mxu0 0.0
    %681 = vmatprep.subr.mxu0 0.0
    %682 = vmatpush1.msra.mxu0 0.0
    %683 = vmatprep.subr.mxu0 0.0
    %684 = vmatpush1.msra.mxu0 0.0
    %685 = vmatprep.subr.mxu0 0.0
    %686 = vmatpush1.msra.mxu0 0.0
    %687 = vmatprep.subr.mxu0 0.0
    %688 = vmatpush1.msra.mxu0 0.0
    %689 = vmatprep.subr.mxu0 0.0
    %690 = vmatpush1.msra.mxu0 0.0
    %691 = vmatprep.subr.mxu0 0.0
    %692 = vmatpush1.msra.mxu0 0.0
    %693 = vmatprep.subr.mxu0 0.0
    %694 = vmatpush1.msra.mxu0 0.0
    %695 = vmatprep.subr.mxu0 0.0
    %696 = vmatpush1.msra.mxu0 0.0
    %697 = vmatprep.subr.mxu0 0.0
    %698 = vmatpush1.msra.mxu0 0.0
    %699 = vmatprep.subr.mxu0 0.0
    %700 = vmatpush1.msra.mxu0 0.0
    %701 = vmatprep.subr.mxu0 0.0
    %702 = vmatpush1.msra.mxu0 0.0
    %703 = vmatprep.subr.mxu0 0.0
    %704 = vmatpush1.msra.mxu0 0.0
    %705 = vmatprep.subr.mxu0 0.0
    %706 = vmatpush1.msra.mxu0 0.0
    %707 = vmatprep.subr.mxu0 0.0
    %708 = vmatpush1.msra.mxu0 0.0
    %709 = vmatprep.subr.mxu0 0.0
    %710 = vmatpush1.msra.mxu0 0.0
    %711 = vmatprep.subr.mxu0 0.0
    %712 = vmatpush1.msra.mxu0 0.0
    %713 = vmatprep.subr.mxu0 0.0
    %714 = vmatpush1.msra.mxu0 0.0
    %715 = vmatprep.subr.mxu0 0.0
    %716 = vmatpush1.msra.mxu0 0.0
    %717 = vmatprep.subr.mxu0 0.0
    %718 = vmatpush1.msra.mxu0 0.0
    %719 = vmatprep.mubr.f32.mxu0 0.0
    %720 = vmatmul.mubr.f32.gmra.mrb[0].mxu0 %v653
    %v721 = vpop.f32.mrb[0].mxu0
    %v722 = vadd.f32 %v107, %v721
    %v723 = vpop.f32.mrb[0].mxu0
    %724 = vdwg.mxu0
    %v726 = vrot.slane %v722, 6
    %v727 = vrot.slane %v722, 7
    %v730 = vadd.f32 %v210, %v726
    %v731 = vadd.f32 %v215, %v727
    %v732 = vxor.u32 %v730, 2147483648
    %v733 = vxor.u32 %v731, 2147483648
    %v734 = vmul.f32 %v732, 1.442695
    %v735 = vpow.pop %v734
    %v736 = vmul.f32 %v733, 1.442695
    %v737 = vpow.pop %v736
    %v738 = vadd.f32 %v735, 1.0
    %v739 = vadd.f32 %v737, 1.0
    %v740 = vrcp.pop %v738
    %v741 = vmul.f32 1.0, %v740
    %v742 = vrcp.pop %v739
    %v743 = vmul.f32 1.0, %v742
    %744 = vrot.lane.b32.xlu0 %v726, 64
    %v745 = vpop.permute.xlu0 %744
    %746 = vrot.lane.b32.xlu0 %v727, 64
    %v747 = vpop.permute.xlu0 %746
    %v750 = vmul.f32 %v741, %v745
    %v751 = vmul.f32 %v743, %v747
    %754 = vrot.lane.b32.xlu0 %v750, 64
    %v755 = vpop.permute.xlu0 %754
    %756 = vrot.lane.b32.xlu0 %v751, 64
    %v757 = vpop.permute.xlu0 %756
    %v760 = vadd.f32 %v210, %v755
    %v761 = vadd.f32 %v215, %v757
    %v762 = vtanh.pop %v760
    %v763 = vtanh.pop %v761
    %v764 = vsub.f32 1.0, %v741
    %v765 = vsub.f32 1.0, %v743
    %768 = vrot.lane.b32.xlu0 %v762, 96
    %v769 = vpop.permute.xlu0 %768
    %770 = vrot.lane.b32.xlu0 %v763, 96
    %v771 = vpop.permute.xlu0 %770
    %v774 = vmul.f32 %v764, %v769
    %v775 = vmul.f32 %v765, %v771
    %v776 = vrot.slane %v479, 7
    %v777 = vrot.slane %v480, 7
    %v780 = vmul.f32 %v741, %v776
    %v781 = vmul.f32 %v743, %v777
    %v782 = vadd.f32 %v774, %v780
    %v783 = vadd.f32 %v775, %v781
    %784 = vmatprep.subr.mxu0 0.0
    %785 = vmatpush1.msra.mxu0 %v98
    %786 = vmatprep.subr.mxu0 0.0
    %787 = vmatpush1.msra.mxu0 %v99
    %788 = vmatprep.subr.mxu0 0.0
    %789 = vmatpush1.msra.mxu0 %v100
    %790 = vmatprep.subr.mxu0 0.0
    %791 = vmatpush1.msra.mxu0 %v101
    %792 = vmatprep.subr.mxu0 0.0
    %793 = vmatpush1.msra.mxu0 0.0
    %794 = vmatprep.subr.mxu0 0.0
    %795 = vmatpush1.msra.mxu0 0.0
    %796 = vmatprep.subr.mxu0 0.0
    %797 = vmatpush1.msra.mxu0 0.0
    %798 = vmatprep.subr.mxu0 0.0
    %799 = vmatpush1.msra.mxu0 0.0
    %800 = vmatprep.subr.mxu0 0.0
    %801 = vmatpush1.msra.mxu0 0.0
    %802 = vmatprep.subr.mxu0 0.0
    %803 = vmatpush1.msra.mxu0 0.0
    %804 = vmatprep.subr.mxu0 0.0
    %805 = vmatpush1.msra.mxu0 0.0
    %806 = vmatprep.subr.mxu0 0.0
    %807 = vmatpush1.msra.mxu0 0.0
    %808 = vmatprep.subr.mxu0 0.0
    %809 = vmatpush1.msra.mxu0 0.0
    %810 = vmatprep.subr.mxu0 0.0
    %811 = vmatpush1.msra.mxu0 0.0
    %812 = vmatprep.subr.mxu0 0.0
    %813 = vmatpush1.msra.mxu0 0.0
    %814 = vmatprep.subr.mxu0 0.0
    %815 = vmatpush1.msra.mxu0 0.0
    %816 = vmatprep.subr.mxu0 0.0
    %817 = vmatpush1.msra.mxu0 0.0
    %818 = vmatprep.subr.mxu0 0.0
    %819 = vmatpush1.msra.mxu0 0.0
    %820 = vmatprep.subr.mxu0 0.0
    %821 = vmatpush1.msra.mxu0 0.0
    %822 = vmatprep.subr.mxu0 0.0
    %823 = vmatpush1.msra.mxu0 0.0
    %824 = vmatprep.subr.mxu0 0.0
    %825 = vmatpush1.msra.mxu0 0.0
    %826 = vmatprep.subr.mxu0 0.0
    %827 = vmatpush1.msra.mxu0 0.0
    %828 = vmatprep.subr.mxu0 0.0
    %829 = vmatpush1.msra.mxu0 0.0
    %830 = vmatprep.subr.mxu0 0.0
    %831 = vmatpush1.msra.mxu0 0.0
    %832 = vmatprep.subr.mxu0 0.0
    %833 = vmatpush1.msra.mxu0 0.0
    %834 = vmatprep.subr.mxu0 0.0
    %835 = vmatpush1.msra.mxu0 0.0
    %836 = vmatprep.subr.mxu0 0.0
    %837 = vmatpush1.msra.mxu0 0.0
    %838 = vmatprep.subr.mxu0 0.0
    %839 = vmatpush1.msra.mxu0 0.0
    %840 = vmatprep.subr.mxu0 0.0
    %841 = vmatpush1.msra.mxu0 0.0
    %842 = vmatprep.subr.mxu0 0.0
    %843 = vmatpush1.msra.mxu0 0.0
    %844 = vmatprep.subr.mxu0 0.0
    %845 = vmatpush1.msra.mxu0 0.0
    %846 = vmatprep.subr.mxu0 0.0
    %847 = vmatpush1.msra.mxu0 0.0
    %848 = vmatprep.mubr.f32.mxu0 0.0
    %849 = vmatmul.mubr.f32.gmra.mrb[0].mxu0 %v653
    %v850 = vpop.f32.mrb[0].mxu0
    %v851 = vadd.f32 %v121, %v850
    %v852 = vpop.f32.mrb[0].mxu0
    %853 = vdwg.mxu0
    %855 = vrot.lane.b32.xlu0 %v646, 96
    %v856 = vpop.permute.xlu0 %855
    %v857 = vsel %vm136, %v856, 0
    %859 = vmatprep.subr.mxu0 0.0
    %860 = vmatpush1.msra.mxu0 %v94
    %861 = vmatprep.subr.mxu0 0.0
    %862 = vmatpush1.msra.mxu0 %v95
    %863 = vmatprep.subr.mxu0 0.0
    %864 = vmatpush1.msra.mxu0 %v96
    %865 = vmatprep.subr.mxu0 0.0
    %866 = vmatpush1.msra.mxu0 %v97
    %867 = vmatprep.subr.mxu0 0.0
    %868 = vmatpush1.msra.mxu0 0.0
    %869 = vmatprep.subr.mxu0 0.0
    %870 = vmatpush1.msra.mxu0 0.0
    %871 = vmatprep.subr.mxu0 0.0
    %872 = vmatpush1.msra.mxu0 0.0
    %873 = vmatprep.subr.mxu0 0.0
    %874 = vmatpush1.msra.mxu0 0.0
    %875 = vmatprep.subr.mxu0 0.0
    %876 = vmatpush1.msra.mxu0 0.0
    %877 = vmatprep.subr.mxu0 0.0
    %878 = vmatpush1.msra.mxu0 0.0
    %879 = vmatprep.subr.mxu0 0.0
    %880 = vmatpush1.msra.mxu0 0.0
    %881 = vmatprep.subr.mxu0 0.0
    %882 = vmatpush1.msra.mxu0 0.0
    %883 = vmatprep.subr.mxu0 0.0
    %884 = vmatpush1.msra.mxu0 0.0
    %885 = vmatprep.subr.mxu0 0.0
    %886 = vmatpush1.msra.mxu0 0.0
    %887 = vmatprep.subr.mxu0 0.0
    %888 = vmatpush1.msra.mxu0 0.0
    %889 = vmatprep.subr.mxu0 0.0
    %890 = vmatpush1.msra.mxu0 0.0
    %891 = vmatprep.subr.mxu0 0.0
    %892 = vmatpush1.msra.mxu0 0.0
    %893 = vmatprep.subr.mxu0 0.0
    %894 = vmatpush1.msra.mxu0 0.0
    %895 = vmatprep.subr.mxu0 0.0
    %896 = vmatpush1.msra.mxu0 0.0
    %897 = vmatprep.subr.mxu0 0.0
    %898 = vmatpush1.msra.mxu0 0.0
    %899 = vmatprep.subr.mxu0 0.0
    %900 = vmatpush1.msra.mxu0 0.0
    %901 = vmatprep.subr.mxu0 0.0
    %902 = vmatpush1.msra.mxu0 0.0
    %903 = vmatprep.subr.mxu0 0.0
    %904 = vmatpush1.msra.mxu0 0.0
    %905 = vmatprep.subr.mxu0 0.0
    %906 = vmatpush1.msra.mxu0 0.0
    %907 = vmatprep.subr.mxu0 0.0
    %908 = vmatpush1.msra.mxu0 0.0
    %909 = vmatprep.subr.mxu0 0.0
    %910 = vmatpush1.msra.mxu0 0.0
    %911 = vmatprep.subr.mxu0 0.0
    %912 = vmatpush1.msra.mxu0 0.0
    %913 = vmatprep.subr.mxu0 0.0
    %914 = vmatpush1.msra.mxu0 0.0
    %915 = vmatprep.subr.mxu0 0.0
    %916 = vmatpush1.msra.mxu0 0.0
    %917 = vmatprep.subr.mxu0 0.0
    %918 = vmatpush1.msra.mxu0 0.0
    %919 = vmatprep.subr.mxu0 0.0
    %920 = vmatpush1.msra.mxu0 0.0
    %921 = vmatprep.subr.mxu0 0.0
    %922 = vmatpush1.msra.mxu0 0.0
    %923 = vmatprep.mubr.f32.mxu0 0.0
    %924 = vmatmul.mubr.f32.gmra.mrb[0].mxu0 %v857
    %v925 = vpop.f32.mrb[0].mxu0
    %v926 = vadd.f32 %v114, %v925
    %v927 = vpop.f32.mrb[0].mxu0
    %928 = vdwg.mxu0
    %v929 = vadd.f32 %v851, %v926
    %v930 = vxor.u32 %v929, 2147483648
    %v931 = vmul.f32 %v930, 1.442695
    %v932 = vpow.pop %v931
    %v933 = vadd.f32 %v932, 1.0
    %v934 = vrcp.pop %v933
    %v935 = vmul.f32 1.0, %v934
    %937 = vrot.lane.b32.xlu0 %v926, 64
    %v938 = vpop.permute.xlu0 %937
    %v940 = vmul.f32 %v935, %v938
    %942 = vrot.lane.b32.xlu0 %v940, 64
    %v943 = vpop.permute.xlu0 %942
    %v945 = vadd.f32 %v851, %v943
    %v946 = vtanh.pop %v945
    %v947 = vsub.f32 1.0, %v935
    %949 = vrot.lane.b32.xlu0 %v946, 96
    %v950 = vpop.permute.xlu0 %949
    %v952 = vmul.f32 %v947, %v950
    %v953 = vmul.f32 %v935, %v646
    %v954 = vadd.f32 %v952, %v953
    %v957 = vrot.slane %v782, 2
    %v958 = vrot.slane %v783, 1
    %v959 = vsel %vm348, %v958, %v957
    %960 = vrot.lane.b32.xlu0 %v959, 96
    %v961 = vpop.permute.xlu0 %960
    %v962 = vsel %vm136, %v961, 0
    %964 = vmatprep.subr.mxu0 0.0
    %965 = vmatpush1.msra.mxu0 %v90
    %966 = vmatprep.subr.mxu0 0.0
    %967 = vmatpush1.msra.mxu0 %v91
    %968 = vmatprep.subr.mxu0 0.0
    %969 = vmatpush1.msra.mxu0 %v92
    %970 = vmatprep.subr.mxu0 0.0
    %971 = vmatpush1.msra.mxu0 %v93
    %972 = vmatprep.subr.mxu0 0.0
    %973 = vmatpush1.msra.mxu0 0.0
    %974 = vmatprep.subr.mxu0 0.0
    %975 = vmatpush1.msra.mxu0 0.0
    %976 = vmatprep.subr.mxu0 0.0
    %977 = vmatpush1.msra.mxu0 0.0
    %978 = vmatprep.subr.mxu0 0.0
    %979 = vmatpush1.msra.mxu0 0.0
    %980 = vmatprep.subr.mxu0 0.0
    %981 = vmatpush1.msra.mxu0 0.0
    %982 = vmatprep.subr.mxu0 0.0
    %983 = vmatpush1.msra.mxu0 0.0
    %984 = vmatprep.subr.mxu0 0.0
    %985 = vmatpush1.msra.mxu0 0.0
    %986 = vmatprep.subr.mxu0 0.0
    %987 = vmatpush1.msra.mxu0 0.0
    %988 = vmatprep.subr.mxu0 0.0
    %989 = vmatpush1.msra.mxu0 0.0
    %990 = vmatprep.subr.mxu0 0.0
    %991 = vmatpush1.msra.mxu0 0.0
    %992 = vmatprep.subr.mxu0 0.0
    %993 = vmatpush1.msra.mxu0 0.0
    %994 = vmatprep.subr.mxu0 0.0
    %995 = vmatpush1.msra.mxu0 0.0
    %996 = vmatprep.subr.mxu0 0.0
    %997 = vmatpush1.msra.mxu0 0.0
    %998 = vmatprep.subr.mxu0 0.0
    %999 = vmatpush1.msra.mxu0 0.0
    %1000 = vmatprep.subr.mxu0 0.0
    %1001 = vmatpush1.msra.mxu0 0.0
    %1002 = vmatprep.subr.mxu0 0.0
    %1003 = vmatpush1.msra.mxu0 0.0
    %1004 = vmatprep.subr.mxu0 0.0
    %1005 = vmatpush1.msra.mxu0 0.0
    %1006 = vmatprep.subr.mxu0 0.0
    %1007 = vmatpush1.msra.mxu0 0.0
    %1008 = vmatprep.subr.mxu0 0.0
    %1009 = vmatpush1.msra.mxu0 0.0
    %1010 = vmatprep.subr.mxu0 0.0
    %1011 = vmatpush1.msra.mxu0 0.0
    %1012 = vmatprep.subr.mxu0 0.0
    %1013 = vmatpush1.msra.mxu0 0.0
    %1014 = vmatprep.subr.mxu0 0.0
    %1015 = vmatpush1.msra.mxu0 0.0
    %1016 = vmatprep.subr.mxu0 0.0
    %1017 = vmatpush1.msra.mxu0 0.0
    %1018 = vmatprep.subr.mxu0 0.0
    %1019 = vmatpush1.msra.mxu0 0.0
    %1020 = vmatprep.subr.mxu0 0.0
    %1021 = vmatpush1.msra.mxu0 0.0
    %1022 = vmatprep.subr.mxu0 0.0
    %1023 = vmatpush1.msra.mxu0 0.0
    %1024 = vmatprep.subr.mxu0 0.0
    %1025 = vmatpush1.msra.mxu0 0.0
    %1026 = vmatprep.subr.mxu0 0.0
    %1027 = vmatpush1.msra.mxu0 0.0
    %1028 = vmatprep.mubr.f32.mxu0 0.0
    %1029 = vmatmul.mubr.f32.gmra.mrb[0].mxu0 %v962
    %v1030 = vpop.f32.mrb[0].mxu0
    %v1031 = vadd.f32 %v107, %v1030
    %v1032 = vpop.f32.mrb[0].mxu0
    %1033 = vdwg.mxu0
    %v1035 = vrot.slane %v1031, 5
    %v1036 = vrot.slane %v1031, 6
    %v1039 = vadd.f32 %v210, %v1035
    %v1040 = vadd.f32 %v215, %v1036
    %v1041 = vxor.u32 %v1039, 2147483648
    %v1042 = vxor.u32 %v1040, 2147483648
    %v1043 = vmul.f32 %v1041, 1.442695
    %v1044 = vpow.pop %v1043
    %v1045 = vmul.f32 %v1042, 1.442695
    %v1046 = vpow.pop %v1045
    %v1047 = vadd.f32 %v1044, 1.0
    %v1048 = vadd.f32 %v1046, 1.0
    %v1049 = vrcp.pop %v1047
    %v1050 = vmul.f32 1.0, %v1049
    %v1051 = vrcp.pop %v1048
    %v1052 = vmul.f32 1.0, %v1051
    %1053 = vrot.lane.b32.xlu0 %v1035, 64
    %v1054 = vpop.permute.xlu0 %1053
    %1055 = vrot.lane.b32.xlu0 %v1036, 64
    %v1056 = vpop.permute.xlu0 %1055
    %v1059 = vmul.f32 %v1050, %v1054
    %v1060 = vmul.f32 %v1052, %v1056
    %1063 = vrot.lane.b32.xlu0 %v1059, 64
    %v1064 = vpop.permute.xlu0 %1063
    %1065 = vrot.lane.b32.xlu0 %v1060, 64
    %v1066 = vpop.permute.xlu0 %1065
    %v1069 = vadd.f32 %v210, %v1064
    %v1070 = vadd.f32 %v215, %v1066
    %v1071 = vtanh.pop %v1069
    %v1072 = vtanh.pop %v1070
    %v1073 = vsub.f32 1.0, %v1050
    %v1074 = vsub.f32 1.0, %v1052
    %1077 = vrot.lane.b32.xlu0 %v1071, 96
    %v1078 = vpop.permute.xlu0 %1077
    %1079 = vrot.lane.b32.xlu0 %v1072, 96
    %v1080 = vpop.permute.xlu0 %1079
    %v1083 = vmul.f32 %v1073, %v1078
    %v1084 = vmul.f32 %v1074, %v1080
    %v1085 = vrot.slane %v782, 7
    %v1086 = vrot.slane %v783, 7
    %v1089 = vmul.f32 %v1050, %v1085
    %v1090 = vmul.f32 %v1052, %v1086
    %v1091 = vadd.f32 %v1083, %v1089
    %v1092 = vadd.f32 %v1084, %v1090
    %1093 = vmatprep.subr.mxu0 0.0
    %1094 = vmatpush1.msra.mxu0 %v98
    %1095 = vmatprep.subr.mxu0 0.0
    %1096 = vmatpush1.msra.mxu0 %v99
    %1097 = vmatprep.subr.mxu0 0.0
    %1098 = vmatpush1.msra.mxu0 %v100
    %1099 = vmatprep.subr.mxu0 0.0
    %1100 = vmatpush1.msra.mxu0 %v101
    %1101 = vmatprep.subr.mxu0 0.0
    %1102 = vmatpush1.msra.mxu0 0.0
    %1103 = vmatprep.subr.mxu0 0.0
    %1104 = vmatpush1.msra.mxu0 0.0
    %1105 = vmatprep.subr.mxu0 0.0
    %1106 = vmatpush1.msra.mxu0 0.0
    %1107 = vmatprep.subr.mxu0 0.0
    %1108 = vmatpush1.msra.mxu0 0.0
    %1109 = vmatprep.subr.mxu0 0.0
    %1110 = vmatpush1.msra.mxu0 0.0
    %1111 = vmatprep.subr.mxu0 0.0
    %1112 = vmatpush1.msra.mxu0 0.0
    %1113 = vmatprep.subr.mxu0 0.0
    %1114 = vmatpush1.msra.mxu0 0.0
    %1115 = vmatprep.subr.mxu0 0.0
    %1116 = vmatpush1.msra.mxu0 0.0
    %1117 = vmatprep.subr.mxu0 0.0
    %1118 = vmatpush1.msra.mxu0 0.0
    %1119 = vmatprep.subr.mxu0 0.0
    %1120 = vmatpush1.msra.mxu0 0.0
    %1121 = vmatprep.subr.mxu0 0.0
    %1122 = vmatpush1.msra.mxu0 0.0
    %1123 = vmatprep.subr.mxu0 0.0
    %1124 = vmatpush1.msra.mxu0 0.0
    %1125 = vmatprep.subr.mxu0 0.0
    %1126 = vmatpush1.msra.mxu0 0.0
    %1127 = vmatprep.subr.mxu0 0.0
    %1128 = vmatpush1.msra.mxu0 0.0
    %1129 = vmatprep.subr.mxu0 0.0
    %1130 = vmatpush1.msra.mxu0 0.0
    %1131 = vmatprep.subr.mxu0 0.0
    %1132 = vmatpush1.msra.mxu0 0.0
    %1133 = vmatprep.subr.mxu0 0.0
    %1134 = vmatpush1.msra.mxu0 0.0
    %1135 = vmatprep.subr.mxu0 0.0
    %1136 = vmatpush1.msra.mxu0 0.0
    %1137 = vmatprep.subr.mxu0 0.0
    %1138 = vmatpush1.msra.mxu0 0.0
    %1139 = vmatprep.subr.mxu0 0.0
    %1140 = vmatpush1.msra.mxu0 0.0
    %1141 = vmatprep.subr.mxu0 0.0
    %1142 = vmatpush1.msra.mxu0 0.0
    %1143 = vmatprep.subr.mxu0 0.0
    %1144 = vmatpush1.msra.mxu0 0.0
    %1145 = vmatprep.subr.mxu0 0.0
    %1146 = vmatpush1.msra.mxu0 0.0
    %1147 = vmatprep.subr.mxu0 0.0
    %1148 = vmatpush1.msra.mxu0 0.0
    %1149 = vmatprep.subr.mxu0 0.0
    %1150 = vmatpush1.msra.mxu0 0.0
    %1151 = vmatprep.subr.mxu0 0.0
    %1152 = vmatpush1.msra.mxu0 0.0
    %1153 = vmatprep.subr.mxu0 0.0
    %1154 = vmatpush1.msra.mxu0 0.0
    %1155 = vmatprep.subr.mxu0 0.0
    %1156 = vmatpush1.msra.mxu0 0.0
    %1157 = vmatprep.mubr.f32.mxu0 0.0
    %1158 = vmatmul.mubr.f32.gmra.mrb[0].mxu0 %v962
    %v1159 = vpop.f32.mrb[0].mxu0
    %v1160 = vadd.f32 %v121, %v1159
    %v1161 = vpop.f32.mrb[0].mxu0
    %1162 = vdwg.mxu0
    %1164 = vrot.lane.b32.xlu0 %v954, 96
    %v1165 = vpop.permute.xlu0 %1164
    %v1166 = vsel %vm136, %v1165, 0
    %1168 = vmatprep.subr.mxu0 0.0
    %1169 = vmatpush1.msra.mxu0 %v94
    %1170 = vmatprep.subr.mxu0 0.0
    %1171 = vmatpush1.msra.mxu0 %v95
    %1172 = vmatprep.subr.mxu0 0.0
    %1173 = vmatpush1.msra.mxu0 %v96
    %1174 = vmatprep.subr.mxu0 0.0
    %1175 = vmatpush1.msra.mxu0 %v97
    %1176 = vmatprep.subr.mxu0 0.0
    %1177 = vmatpush1.msra.mxu0 0.0
    %1178 = vmatprep.subr.mxu0 0.0
    %1179 = vmatpush1.msra.mxu0 0.0
    %1180 = vmatprep.subr.mxu0 0.0
    %1181 = vmatpush1.msra.mxu0 0.0
    %1182 = vmatprep.subr.mxu0 0.0
    %1183 = vmatpush1.msra.mxu0 0.0
    %1184 = vmatprep.subr.mxu0 0.0
    %1185 = vmatpush1.msra.mxu0 0.0
    %1186 = vmatprep.subr.mxu0 0.0
    %1187 = vmatpush1.msra.mxu0 0.0
    %1188 = vmatprep.subr.mxu0 0.0
    %1189 = vmatpush1.msra.mxu0 0.0
    %1190 = vmatprep.subr.mxu0 0.0
    %1191 = vmatpush1.msra.mxu0 0.0
    %1192 = vmatprep.subr.mxu0 0.0
    %1193 = vmatpush1.msra.mxu0 0.0
    %1194 = vmatprep.subr.mxu0 0.0
    %1195 = vmatpush1.msra.mxu0 0.0
    %1196 = vmatprep.subr.mxu0 0.0
    %1197 = vmatpush1.msra.mxu0 0.0
    %1198 = vmatprep.subr.mxu0 0.0
    %1199 = vmatpush1.msra.mxu0 0.0
    %1200 = vmatprep.subr.mxu0 0.0
    %1201 = vmatpush1.msra.mxu0 0.0
    %1202 = vmatprep.subr.mxu0 0.0
    %1203 = vmatpush1.msra.mxu0 0.0
    %1204 = vmatprep.subr.mxu0 0.0
    %1205 = vmatpush1.msra.mxu0 0.0
    %1206 = vmatprep.subr.mxu0 0.0
    %1207 = vmatpush1.msra.mxu0 0.0
    %1208 = vmatprep.subr.mxu0 0.0
    %1209 = vmatpush1.msra.mxu0 0.0
    %1210 = vmatprep.subr.mxu0 0.0
    %1211 = vmatpush1.msra.mxu0 0.0
    %1212 = vmatprep.subr.mxu0 0.0
    %1213 = vmatpush1.msra.mxu0 0.0
    %1214 = vmatprep.subr.mxu0 0.0
    %1215 = vmatpush1.msra.mxu0 0.0
    %1216 = vmatprep.subr.mxu0 0.0
    %1217 = vmatpush1.msra.mxu0 0.0
    %1218 = vmatprep.subr.mxu0 0.0
    %1219 = vmatpush1.msra.mxu0 0.0
    %1220 = vmatprep.subr.mxu0 0.0
    %1221 = vmatpush1.msra.mxu0 0.0
    %1222 = vmatprep.subr.mxu0 0.0
    %1223 = vmatpush1.msra.mxu0 0.0
    %1224 = vmatprep.subr.mxu0 0.0
    %1225 = vmatpush1.msra.mxu0 0.0
    %1226 = vmatprep.subr.mxu0 0.0
    %1227 = vmatpush1.msra.mxu0 0.0
    %1228 = vmatprep.subr.mxu0 0.0
    %1229 = vmatpush1.msra.mxu0 0.0
    %1230 = vmatprep.subr.mxu0 0.0
    %1231 = vmatpush1.msra.mxu0 0.0
    %1232 = vmatprep.mubr.f32.mxu0 0.0
    %1233 = vmatmul.mubr.f32.gmra.mrb[0].mxu0 %v1166
    %v1234 = vpop.f32.mrb[0].mxu0
    %v1235 = vadd.f32 %v114, %v1234
    %v1236 = vpop.f32.mrb[0].mxu0
    %1237 = vdwg.mxu0
    %v1238 = vadd.f32 %v1160, %v1235
    %v1239 = vxor.u32 %v1238, 2147483648
    %v1240 = vmul.f32 %v1239, 1.442695
    %v1241 = vpow.pop %v1240
    %v1242 = vadd.f32 %v1241, 1.0
    %v1243 = vrcp.pop %v1242
    %v1244 = vmul.f32 1.0, %v1243
    %1246 = vrot.lane.b32.xlu0 %v1235, 64
    %v1247 = vpop.permute.xlu0 %1246
    %v1249 = vmul.f32 %v1244, %v1247
    %1251 = vrot.lane.b32.xlu0 %v1249, 64
    %v1252 = vpop.permute.xlu0 %1251
    %v1254 = vadd.f32 %v1160, %v1252
    %v1255 = vtanh.pop %v1254
    %v1256 = vsub.f32 1.0, %v1244
    %1258 = vrot.lane.b32.xlu0 %v1255, 96
    %v1259 = vpop.permute.xlu0 %1258
    %v1261 = vmul.f32 %v1256, %v1259
    %v1262 = vmul.f32 %v1244, %v954
    %v1263 = vadd.f32 %v1261, %v1262
    %v1266 = vrot.slane %v1091, 3
    %v1267 = vrot.slane %v1092, 2
    %v1268 = vsel %vm348, %v1267, %v1266
    %1269 = vrot.lane.b32.xlu0 %v1268, 96
    %v1270 = vpop.permute.xlu0 %1269
    %v1271 = vsel %vm136, %v1270, 0
    %1273 = vmatprep.subr.mxu0 0.0
    %1274 = vmatpush1.msra.mxu0 %v90
    %1275 = vmatprep.subr.mxu0 0.0
    %1276 = vmatpush1.msra.mxu0 %v91
    %1277 = vmatprep.subr.mxu0 0.0
    %1278 = vmatpush1.msra.mxu0 %v92
    %1279 = vmatprep.subr.mxu0 0.0
    %1280 = vmatpush1.msra.mxu0 %v93
    %1281 = vmatprep.subr.mxu0 0.0
    %1282 = vmatpush1.msra.mxu0 0.0
    %1283 = vmatprep.subr.mxu0 0.0
    %1284 = vmatpush1.msra.mxu0 0.0
    %1285 = vmatprep.subr.mxu0 0.0
    %1286 = vmatpush1.msra.mxu0 0.0
    %1287 = vmatprep.subr.mxu0 0.0
    %1288 = vmatpush1.msra.mxu0 0.0
    %1289 = vmatprep.subr.mxu0 0.0
    %1290 = vmatpush1.msra.mxu0 0.0
    %1291 = vmatprep.subr.mxu0 0.0
    %1292 = vmatpush1.msra.mxu0 0.0
    %1293 = vmatprep.subr.mxu0 0.0
    %1294 = vmatpush1.msra.mxu0 0.0
    %1295 = vmatprep.subr.mxu0 0.0
    %1296 = vmatpush1.msra.mxu0 0.0
    %1297 = vmatprep.subr.mxu0 0.0
    %1298 = vmatpush1.msra.mxu0 0.0
    %1299 = vmatprep.subr.mxu0 0.0
    %1300 = vmatpush1.msra.mxu0 0.0
    %1301 = vmatprep.subr.mxu0 0.0
    %1302 = vmatpush1.msra.mxu0 0.0
    %1303 = vmatprep.subr.mxu0 0.0
    %1304 = vmatpush1.msra.mxu0 0.0
    %1305 = vmatprep.subr.mxu0 0.0
    %1306 = vmatpush1.msra.mxu0 0.0
    %1307 = vmatprep.subr.mxu0 0.0
    %1308 = vmatpush1.msra.mxu0 0.0
    %1309 = vmatprep.subr.mxu0 0.0
    %1310 = vmatpush1.msra.mxu0 0.0
    %1311 = vmatprep.subr.mxu0 0.0
    %1312 = vmatpush1.msra.mxu0 0.0
    %1313 = vmatprep.subr.mxu0 0.0
    %1314 = vmatpush1.msra.mxu0 0.0
    %1315 = vmatprep.subr.mxu0 0.0
    %1316 = vmatpush1.msra.mxu0 0.0
    %1317 = vmatprep.subr.mxu0 0.0
    %1318 = vmatpush1.msra.mxu0 0.0
    %1319 = vmatprep.subr.mxu0 0.0
    %1320 = vmatpush1.msra.mxu0 0.0
    %1321 = vmatprep.subr.mxu0 0.0
    %1322 = vmatpush1.msra.mxu0 0.0
    %1323 = vmatprep.subr.mxu0 0.0
    %1324 = vmatpush1.msra.mxu0 0.0
    %1325 = vmatprep.subr.mxu0 0.0
    %1326 = vmatpush1.msra.mxu0 0.0
    %1327 = vmatprep.subr.mxu0 0.0
    %1328 = vmatpush1.msra.mxu0 0.0
    %1329 = vmatprep.subr.mxu0 0.0
    %1330 = vmatpush1.msra.mxu0 0.0
    %1331 = vmatprep.subr.mxu0 0.0
    %1332 = vmatpush1.msra.mxu0 0.0
    %1333 = vmatprep.subr.mxu0 0.0
    %1334 = vmatpush1.msra.mxu0 0.0
    %1335 = vmatprep.subr.mxu0 0.0
    %1336 = vmatpush1.msra.mxu0 0.0
    %1337 = vmatprep.mubr.f32.mxu0 0.0
    %1338 = vmatmul.mubr.f32.gmra.mrb[0].mxu0 %v1271
    %v1339 = vpop.f32.mrb[0].mxu0
    %v1340 = vadd.f32 %v107, %v1339
    %v1341 = vpop.f32.mrb[0].mxu0
    %1342 = vdwg.mxu0
    %v1344 = vrot.slane %v1340, 4
    %v1345 = vrot.slane %v1340, 5
    %v1348 = vadd.f32 %v210, %v1344
    %v1349 = vadd.f32 %v215, %v1345
    %v1350 = vxor.u32 %v1348, 2147483648
    %v1351 = vxor.u32 %v1349, 2147483648
    %v1352 = vmul.f32 %v1350, 1.442695
    %v1353 = vpow.pop %v1352
    %v1354 = vmul.f32 %v1351, 1.442695
    %v1355 = vpow.pop %v1354
    %v1356 = vadd.f32 %v1353, 1.0
    %v1357 = vadd.f32 %v1355, 1.0
    %v1358 = vrcp.pop %v1356
    %v1359 = vmul.f32 1.0, %v1358
    %v1360 = vrcp.pop %v1357
    %v1361 = vmul.f32 1.0, %v1360
    %1362 = vrot.lane.b32.xlu0 %v1344, 64
    %v1363 = vpop.permute.xlu0 %1362
    %1364 = vrot.lane.b32.xlu0 %v1345, 64
    %v1365 = vpop.permute.xlu0 %1364
    %v1368 = vmul.f32 %v1359, %v1363
    %v1369 = vmul.f32 %v1361, %v1365
    %1372 = vrot.lane.b32.xlu0 %v1368, 64
    %v1373 = vpop.permute.xlu0 %1372
    %1374 = vrot.lane.b32.xlu0 %v1369, 64
    %v1375 = vpop.permute.xlu0 %1374
    %v1378 = vadd.f32 %v210, %v1373
    %v1379 = vadd.f32 %v215, %v1375
    %v1380 = vtanh.pop %v1378
    %v1381 = vtanh.pop %v1379
    %v1382 = vsub.f32 1.0, %v1359
    %v1383 = vsub.f32 1.0, %v1361
    %1386 = vrot.lane.b32.xlu0 %v1380, 96
    %v1387 = vpop.permute.xlu0 %1386
    %1388 = vrot.lane.b32.xlu0 %v1381, 96
    %v1389 = vpop.permute.xlu0 %1388
    %v1392 = vmul.f32 %v1382, %v1387
    %v1393 = vmul.f32 %v1383, %v1389
    %v1394 = vrot.slane %v1091, 7
    %v1395 = vrot.slane %v1092, 7
    %v1398 = vmul.f32 %v1359, %v1394
    %v1399 = vmul.f32 %v1361, %v1395
    %v1400 = vadd.f32 %v1392, %v1398
    %v1401 = vadd.f32 %v1393, %v1399
    %1402 = vmatprep.subr.mxu0 0.0
    %1403 = vmatpush1.msra.mxu0 %v98
    %1404 = vmatprep.subr.mxu0 0.0
    %1405 = vmatpush1.msra.mxu0 %v99
    %1406 = vmatprep.subr.mxu0 0.0
    %1407 = vmatpush1.msra.mxu0 %v100
    %1408 = vmatprep.subr.mxu0 0.0
    %1409 = vmatpush1.msra.mxu0 %v101
    %1410 = vmatprep.subr.mxu0 0.0
    %1411 = vmatpush1.msra.mxu0 0.0
    %1412 = vmatprep.subr.mxu0 0.0
    %1413 = vmatpush1.msra.mxu0 0.0
    %1414 = vmatprep.subr.mxu0 0.0
    %1415 = vmatpush1.msra.mxu0 0.0
    %1416 = vmatprep.subr.mxu0 0.0
    %1417 = vmatpush1.msra.mxu0 0.0
    %1418 = vmatprep.subr.mxu0 0.0
    %1419 = vmatpush1.msra.mxu0 0.0
    %1420 = vmatprep.subr.mxu0 0.0
    %1421 = vmatpush1.msra.mxu0 0.0
    %1422 = vmatprep.subr.mxu0 0.0
    %1423 = vmatpush1.msra.mxu0 0.0
    %1424 = vmatprep.subr.mxu0 0.0
    %1425 = vmatpush1.msra.mxu0 0.0
    %1426 = vmatprep.subr.mxu0 0.0
    %1427 = vmatpush1.msra.mxu0 0.0
    %1428 = vmatprep.subr.mxu0 0.0
    %1429 = vmatpush1.msra.mxu0 0.0
    %1430 = vmatprep.subr.mxu0 0.0
    %1431 = vmatpush1.msra.mxu0 0.0
    %1432 = vmatprep.subr.mxu0 0.0
    %1433 = vmatpush1.msra.mxu0 0.0
    %1434 = vmatprep.subr.mxu0 0.0
    %1435 = vmatpush1.msra.mxu0 0.0
    %1436 = vmatprep.subr.mxu0 0.0
    %1437 = vmatpush1.msra.mxu0 0.0
    %1438 = vmatprep.subr.mxu0 0.0
    %1439 = vmatpush1.msra.mxu0 0.0
    %1440 = vmatprep.subr.mxu0 0.0
    %1441 = vmatpush1.msra.mxu0 0.0
    %1442 = vmatprep.subr.mxu0 0.0
    %1443 = vmatpush1.msra.mxu0 0.0
    %1444 = vmatprep.subr.mxu0 0.0
    %1445 = vmatpush1.msra.mxu0 0.0
    %1446 = vmatprep.subr.mxu0 0.0
    %1447 = vmatpush1.msra.mxu0 0.0
    %1448 = vmatprep.subr.mxu0 0.0
    %1449 = vmatpush1.msra.mxu0 0.0
    %1450 = vmatprep.subr.mxu0 0.0
    %1451 = vmatpush1.msra.mxu0 0.0
    %1452 = vmatprep.subr.mxu0 0.0
    %1453 = vmatpush1.msra.mxu0 0.0
    %1454 = vmatprep.subr.mxu0 0.0
    %1455 = vmatpush1.msra.mxu0 0.0
    %1456 = vmatprep.subr.mxu0 0.0
    %1457 = vmatpush1.msra.mxu0 0.0
    %1458 = vmatprep.subr.mxu0 0.0
    %1459 = vmatpush1.msra.mxu0 0.0
    %1460 = vmatprep.subr.mxu0 0.0
    %1461 = vmatpush1.msra.mxu0 0.0
    %1462 = vmatprep.subr.mxu0 0.0
    %1463 = vmatpush1.msra.mxu0 0.0
    %1464 = vmatprep.subr.mxu0 0.0
    %1465 = vmatpush1.msra.mxu0 0.0
    %1466 = vmatprep.mubr.f32.mxu0 0.0
    %1467 = vmatmul.mubr.f32.gmra.mrb[0].mxu0 %v1271
    %v1468 = vpop.f32.mrb[0].mxu0
    %v1469 = vadd.f32 %v121, %v1468
    %v1470 = vpop.f32.mrb[0].mxu0
    %1471 = vdwg.mxu0
    %1473 = vrot.lane.b32.xlu0 %v1263, 96
    %v1474 = vpop.permute.xlu0 %1473
    %v1475 = vsel %vm136, %v1474, 0
    %1477 = vmatprep.subr.mxu0 0.0
    %1478 = vmatpush1.msra.mxu0 %v94
    %1479 = vmatprep.subr.mxu0 0.0
    %1480 = vmatpush1.msra.mxu0 %v95
    %1481 = vmatprep.subr.mxu0 0.0
    %1482 = vmatpush1.msra.mxu0 %v96
    %1483 = vmatprep.subr.mxu0 0.0
    %1484 = vmatpush1.msra.mxu0 %v97
    %1485 = vmatprep.subr.mxu0 0.0
    %1486 = vmatpush1.msra.mxu0 0.0
    %1487 = vmatprep.subr.mxu0 0.0
    %1488 = vmatpush1.msra.mxu0 0.0
    %1489 = vmatprep.subr.mxu0 0.0
    %1490 = vmatpush1.msra.mxu0 0.0
    %1491 = vmatprep.subr.mxu0 0.0
    %1492 = vmatpush1.msra.mxu0 0.0
    %1493 = vmatprep.subr.mxu0 0.0
    %1494 = vmatpush1.msra.mxu0 0.0
    %1495 = vmatprep.subr.mxu0 0.0
    %1496 = vmatpush1.msra.mxu0 0.0
    %1497 = vmatprep.subr.mxu0 0.0
    %1498 = vmatpush1.msra.mxu0 0.0
    %1499 = vmatprep.subr.mxu0 0.0
    %1500 = vmatpush1.msra.mxu0 0.0
    %1501 = vmatprep.subr.mxu0 0.0
    %1502 = vmatpush1.msra.mxu0 0.0
    %1503 = vmatprep.subr.mxu0 0.0
    %1504 = vmatpush1.msra.mxu0 0.0
    %1505 = vmatprep.subr.mxu0 0.0
    %1506 = vmatpush1.msra.mxu0 0.0
    %1507 = vmatprep.subr.mxu0 0.0
    %1508 = vmatpush1.msra.mxu0 0.0
    %1509 = vmatprep.subr.mxu0 0.0
    %1510 = vmatpush1.msra.mxu0 0.0
    %1511 = vmatprep.subr.mxu0 0.0
    %1512 = vmatpush1.msra.mxu0 0.0
    %1513 = vmatprep.subr.mxu0 0.0
    %1514 = vmatpush1.msra.mxu0 0.0
    %1515 = vmatprep.subr.mxu0 0.0
    %1516 = vmatpush1.msra.mxu0 0.0
    %1517 = vmatprep.subr.mxu0 0.0
    %1518 = vmatpush1.msra.mxu0 0.0
    %1519 = vmatprep.subr.mxu0 0.0
    %1520 = vmatpush1.msra.mxu0 0.0
    %1521 = vmatprep.subr.mxu0 0.0
    %1522 = vmatpush1.msra.mxu0 0.0
    %1523 = vmatprep.subr.mxu0 0.0
    %1524 = vmatpush1.msra.mxu0 0.0
    %1525 = vmatprep.subr.mxu0 0.0
    %1526 = vmatpush1.msra.mxu0 0.0
    %1527 = vmatprep.subr.mxu0 0.0
    %1528 = vmatpush1.msra.mxu0 0.0
    %1529 = vmatprep.subr.mxu0 0.0
    %1530 = vmatpush1.msra.mxu0 0.0
    %1531 = vmatprep.subr.mxu0 0.0
    %1532 = vmatpush1.msra.mxu0 0.0
    %1533 = vmatprep.subr.mxu0 0.0
    %1534 = vmatpush1.msra.mxu0 0.0
    %1535 = vmatprep.subr.mxu0 0.0
    %1536 = vmatpush1.msra.mxu0 0.0
    %1537 = vmatprep.subr.mxu0 0.0
    %1538 = vmatpush1.msra.mxu0 0.0
    %1539 = vmatprep.subr.mxu0 0.0
    %1540 = vmatpush1.msra.mxu0 0.0
    %1541 = vmatprep.mubr.f32.mxu0 0.0
    %1542 = vmatmul.mubr.f32.gmra.mrb[0].mxu0 %v1475
    %v1543 = vpop.f32.mrb[0].mxu0
    %v1544 = vadd.f32 %v114, %v1543
    %v1545 = vpop.f32.mrb[0].mxu0
    %1546 = vdwg.mxu0
    %v1547 = vadd.f32 %v1469, %v1544
    %v1548 = vxor.u32 %v1547, 2147483648
    %v1549 = vmul.f32 %v1548, 1.442695
    %v1550 = vpow.pop %v1549
    %v1551 = vadd.f32 %v1550, 1.0
    %v1552 = vrcp.pop %v1551
    %v1553 = vmul.f32 1.0, %v1552
    %1555 = vrot.lane.b32.xlu0 %v1544, 64
    %v1556 = vpop.permute.xlu0 %1555
    %v1558 = vmul.f32 %v1553, %v1556
    %1560 = vrot.lane.b32.xlu0 %v1558, 64
    %v1561 = vpop.permute.xlu0 %1560
    %v1563 = vadd.f32 %v1469, %v1561
    %v1564 = vtanh.pop %v1563
    %v1565 = vsub.f32 1.0, %v1553
    %1567 = vrot.lane.b32.xlu0 %v1564, 96
    %v1568 = vpop.permute.xlu0 %1567
    %v1570 = vmul.f32 %v1565, %v1568
    %v1571 = vmul.f32 %v1553, %v1263
    %v1572 = vadd.f32 %v1570, %v1571
    %v1575 = vrot.slane %v1400, 4
    %v1576 = vrot.slane %v1401, 3
    %v1577 = vsel %vm348, %v1576, %v1575
    %1578 = vrot.lane.b32.xlu0 %v1577, 96
    %v1579 = vpop.permute.xlu0 %1578
    %v1580 = vsel %vm136, %v1579, 0
    %1582 = vmatprep.subr.mxu0 0.0
    %1583 = vmatpush1.msra.mxu0 %v90
    %1584 = vmatprep.subr.mxu0 0.0
    %1585 = vmatpush1.msra.mxu0 %v91
    %1586 = vmatprep.subr.mxu0 0.0
    %1587 = vmatpush1.msra.mxu0 %v92
    %1588 = vmatprep.subr.mxu0 0.0
    %1589 = vmatpush1.msra.mxu0 %v93
    %1590 = vmatprep.subr.mxu0 0.0
    %1591 = vmatpush1.msra.mxu0 0.0
    %1592 = vmatprep.subr.mxu0 0.0
    %1593 = vmatpush1.msra.mxu0 0.0
    %1594 = vmatprep.subr.mxu0 0.0
    %1595 = vmatpush1.msra.mxu0 0.0
    %1596 = vmatprep.subr.mxu0 0.0
    %1597 = vmatpush1.msra.mxu0 0.0
    %1598 = vmatprep.subr.mxu0 0.0
    %1599 = vmatpush1.msra.mxu0 0.0
    %1600 = vmatprep.subr.mxu0 0.0
    %1601 = vmatpush1.msra.mxu0 0.0
    %1602 = vmatprep.subr.mxu0 0.0
    %1603 = vmatpush1.msra.mxu0 0.0
    %1604 = vmatprep.subr.mxu0 0.0
    %1605 = vmatpush1.msra.mxu0 0.0
    %1606 = vmatprep.subr.mxu0 0.0
    %1607 = vmatpush1.msra.mxu0 0.0
    %1608 = vmatprep.subr.mxu0 0.0
    %1609 = vmatpush1.msra.mxu0 0.0
    %1610 = vmatprep.subr.mxu0 0.0
    %1611 = vmatpush1.msra.mxu0 0.0
    %1612 = vmatprep.subr.mxu0 0.0
    %1613 = vmatpush1.msra.mxu0 0.0
    %1614 = vmatprep.subr.mxu0 0.0
    %1615 = vmatpush1.msra.mxu0 0.0
    %1616 = vmatprep.subr.mxu0 0.0
    %1617 = vmatpush1.msra.mxu0 0.0
    %1618 = vmatprep.subr.mxu0 0.0
    %1619 = vmatpush1.msra.mxu0 0.0
    %1620 = vmatprep.subr.mxu0 0.0
    %1621 = vmatpush1.msra.mxu0 0.0
    %1622 = vmatprep.subr.mxu0 0.0
    %1623 = vmatpush1.msra.mxu0 0.0
    %1624 = vmatprep.subr.mxu0 0.0
    %1625 = vmatpush1.msra.mxu0 0.0
    %1626 = vmatprep.subr.mxu0 0.0
    %1627 = vmatpush1.msra.mxu0 0.0
    %1628 = vmatprep.subr.mxu0 0.0
    %1629 = vmatpush1.msra.mxu0 0.0
    %1630 = vmatprep.subr.mxu0 0.0
    %1631 = vmatpush1.msra.mxu0 0.0
    %1632 = vmatprep.subr.mxu0 0.0
    %1633 = vmatpush1.msra.mxu0 0.0
    %1634 = vmatprep.subr.mxu0 0.0
    %1635 = vmatpush1.msra.mxu0 0.0
    %1636 = vmatprep.subr.mxu0 0.0
    %1637 = vmatpush1.msra.mxu0 0.0
    %1638 = vmatprep.subr.mxu0 0.0
    %1639 = vmatpush1.msra.mxu0 0.0
    %1640 = vmatprep.subr.mxu0 0.0
    %1641 = vmatpush1.msra.mxu0 0.0
    %1642 = vmatprep.subr.mxu0 0.0
    %1643 = vmatpush1.msra.mxu0 0.0
    %1644 = vmatprep.subr.mxu0 0.0
    %1645 = vmatpush1.msra.mxu0 0.0
    %1646 = vmatprep.mubr.f32.mxu0 0.0
    %1647 = vmatmul.mubr.f32.gmra.mrb[0].mxu0 %v1580
    %v1648 = vpop.f32.mrb[0].mxu0
    %v1649 = vadd.f32 %v107, %v1648
    %v1650 = vpop.f32.mrb[0].mxu0
    %1651 = vdwg.mxu0
    %v1653 = vrot.slane %v1649, 3
    %v1654 = vrot.slane %v1649, 4
    %v1657 = vadd.f32 %v210, %v1653
    %v1658 = vadd.f32 %v215, %v1654
    %v1659 = vxor.u32 %v1657, 2147483648
    %v1660 = vxor.u32 %v1658, 2147483648
    %v1661 = vmul.f32 %v1659, 1.442695
    %v1662 = vpow.pop %v1661
    %v1663 = vmul.f32 %v1660, 1.442695
    %v1664 = vpow.pop %v1663
    %v1665 = vadd.f32 %v1662, 1.0
    %v1666 = vadd.f32 %v1664, 1.0
    %v1667 = vrcp.pop %v1665
    %v1668 = vmul.f32 1.0, %v1667
    %v1669 = vrcp.pop %v1666
    %v1670 = vmul.f32 1.0, %v1669
    %1671 = vrot.lane.b32.xlu0 %v1653, 64
    %v1672 = vpop.permute.xlu0 %1671
    %1673 = vrot.lane.b32.xlu0 %v1654, 64
    %v1674 = vpop.permute.xlu0 %1673
    %v1677 = vmul.f32 %v1668, %v1672
    %v1678 = vmul.f32 %v1670, %v1674
    %1681 = vrot.lane.b32.xlu0 %v1677, 64
    %v1682 = vpop.permute.xlu0 %1681
    %1683 = vrot.lane.b32.xlu0 %v1678, 64
    %v1684 = vpop.permute.xlu0 %1683
    %v1687 = vadd.f32 %v210, %v1682
    %v1688 = vadd.f32 %v215, %v1684
    %v1689 = vtanh.pop %v1687
    %v1690 = vtanh.pop %v1688
    %v1691 = vsub.f32 1.0, %v1668
    %v1692 = vsub.f32 1.0, %v1670
    %1695 = vrot.lane.b32.xlu0 %v1689, 96
    %v1696 = vpop.permute.xlu0 %1695
    %1697 = vrot.lane.b32.xlu0 %v1690, 96
    %v1698 = vpop.permute.xlu0 %1697
    %v1701 = vmul.f32 %v1691, %v1696
    %v1702 = vmul.f32 %v1692, %v1698
    %v1703 = vrot.slane %v1400, 7
    %v1704 = vrot.slane %v1401, 7
    %v1707 = vmul.f32 %v1668, %v1703
    %v1708 = vmul.f32 %v1670, %v1704
    %v1709 = vadd.f32 %v1701, %v1707
    %v1710 = vadd.f32 %v1702, %v1708
    %1711 = vmatprep.subr.mxu0 0.0
    %1712 = vmatpush1.msra.mxu0 %v98
    %1713 = vmatprep.subr.mxu0 0.0
    %1714 = vmatpush1.msra.mxu0 %v99
    %1715 = vmatprep.subr.mxu0 0.0
    %1716 = vmatpush1.msra.mxu0 %v100
    %1717 = vmatprep.subr.mxu0 0.0
    %1718 = vmatpush1.msra.mxu0 %v101
    %1719 = vmatprep.subr.mxu0 0.0
    %1720 = vmatpush1.msra.mxu0 0.0
    %1721 = vmatprep.subr.mxu0 0.0
    %1722 = vmatpush1.msra.mxu0 0.0
    %1723 = vmatprep.subr.mxu0 0.0
    %1724 = vmatpush1.msra.mxu0 0.0
    %1725 = vmatprep.subr.mxu0 0.0
    %1726 = vmatpush1.msra.mxu0 0.0
    %1727 = vmatprep.subr.mxu0 0.0
    %1728 = vmatpush1.msra.mxu0 0.0
    %1729 = vmatprep.subr.mxu0 0.0
    %1730 = vmatpush1.msra.mxu0 0.0
    %1731 = vmatprep.subr.mxu0 0.0
    %1732 = vmatpush1.msra.mxu0 0.0
    %1733 = vmatprep.subr.mxu0 0.0
    %1734 = vmatpush1.msra.mxu0 0.0
    %1735 = vmatprep.subr.mxu0 0.0
    %1736 = vmatpush1.msra.mxu0 0.0
    %1737 = vmatprep.subr.mxu0 0.0
    %1738 = vmatpush1.msra.mxu0 0.0
    %1739 = vmatprep.subr.mxu0 0.0
    %1740 = vmatpush1.msra.mxu0 0.0
    %1741 = vmatprep.subr.mxu0 0.0
    %1742 = vmatpush1.msra.mxu0 0.0
    %1743 = vmatprep.subr.mxu0 0.0
    %1744 = vmatpush1.msra.mxu0 0.0
    %1745 = vmatprep.subr.mxu0 0.0
    %1746 = vmatpush1.msra.mxu0 0.0
    %1747 = vmatprep.subr.mxu0 0.0
    %1748 = vmatpush1.msra.mxu0 0.0
    %1749 = vmatprep.subr.mxu0 0.0
    %1750 = vmatpush1.msra.mxu0 0.0
    %1751 = vmatprep.subr.mxu0 0.0
    %1752 = vmatpush1.msra.mxu0 0.0
    %1753 = vmatprep.subr.mxu0 0.0
    %1754 = vmatpush1.msra.mxu0 0.0
    %1755 = vmatprep.subr.mxu0 0.0
    %1756 = vmatpush1.msra.mxu0 0.0
    %1757 = vmatprep.subr.mxu0 0.0
    %1758 = vmatpush1.msra.mxu0 0.0
    %1759 = vmatprep.subr.mxu0 0.0
    %1760 = vmatpush1.msra.mxu0 0.0
    %1761 = vmatprep.subr.mxu0 0.0
    %1762 = vmatpush1.msra.mxu0 0.0
    %1763 = vmatprep.subr.mxu0 0.0
    %1764 = vmatpush1.msra.mxu0 0.0
    %1765 = vmatprep.subr.mxu0 0.0
    %1766 = vmatpush1.msra.mxu0 0.0
    %1767 = vmatprep.subr.mxu0 0.0
    %1768 = vmatpush1.msra.mxu0 0.0
    %1769 = vmatprep.subr.mxu0 0.0
    %1770 = vmatpush1.msra.mxu0 0.0
    %1771 = vmatprep.subr.mxu0 0.0
    %1772 = vmatpush1.msra.mxu0 0.0
    %1773 = vmatprep.subr.mxu0 0.0
    %1774 = vmatpush1.msra.mxu0 0.0
    %1775 = vmatprep.mubr.f32.mxu0 0.0
    %1776 = vmatmul.mubr.f32.gmra.mrb[0].mxu0 %v1580
    %v1777 = vpop.f32.mrb[0].mxu0
    %v1778 = vadd.f32 %v121, %v1777
    %v1779 = vpop.f32.mrb[0].mxu0
    %1780 = vdwg.mxu0
    %1782 = vrot.lane.b32.xlu0 %v1572, 96
    %v1783 = vpop.permute.xlu0 %1782
    %v1784 = vsel %vm136, %v1783, 0
    %1786 = vmatprep.subr.mxu0 0.0
    %1787 = vmatpush1.msra.mxu0 %v94
    %1788 = vmatprep.subr.mxu0 0.0
    %1789 = vmatpush1.msra.mxu0 %v95
    %1790 = vmatprep.subr.mxu0 0.0
    %1791 = vmatpush1.msra.mxu0 %v96
    %1792 = vmatprep.subr.mxu0 0.0
    %1793 = vmatpush1.msra.mxu0 %v97
    %1794 = vmatprep.subr.mxu0 0.0
    %1795 = vmatpush1.msra.mxu0 0.0
    %1796 = vmatprep.subr.mxu0 0.0
    %1797 = vmatpush1.msra.mxu0 0.0
    %1798 = vmatprep.subr.mxu0 0.0
    %1799 = vmatpush1.msra.mxu0 0.0
    %1800 = vmatprep.subr.mxu0 0.0
    %1801 = vmatpush1.msra.mxu0 0.0
    %1802 = vmatprep.subr.mxu0 0.0
    %1803 = vmatpush1.msra.mxu0 0.0
    %1804 = vmatprep.subr.mxu0 0.0
    %1805 = vmatpush1.msra.mxu0 0.0
    %1806 = vmatprep.subr.mxu0 0.0
    %1807 = vmatpush1.msra.mxu0 0.0
    %1808 = vmatprep.subr.mxu0 0.0
    %1809 = vmatpush1.msra.mxu0 0.0
    %1810 = vmatprep.subr.mxu0 0.0
    %1811 = vmatpush1.msra.mxu0 0.0
    %1812 = vmatprep.subr.mxu0 0.0
    %1813 = vmatpush1.msra.mxu0 0.0
    %1814 = vmatprep.subr.mxu0 0.0
    %1815 = vmatpush1.msra.mxu0 0.0
    %1816 = vmatprep.subr.mxu0 0.0
    %1817 = vmatpush1.msra.mxu0 0.0
    %1818 = vmatprep.subr.mxu0 0.0
    %1819 = vmatpush1.msra.mxu0 0.0
    %1820 = vmatprep.subr.mxu0 0.0
    %1821 = vmatpush1.msra.mxu0 0.0
    %1822 = vmatprep.subr.mxu0 0.0
    %1823 = vmatpush1.msra.mxu0 0.0
    %1824 = vmatprep.subr.mxu0 0.0
    %1825 = vmatpush1.msra.mxu0 0.0
    %1826 = vmatprep.subr.mxu0 0.0
    %1827 = vmatpush1.msra.mxu0 0.0
    %1828 = vmatprep.subr.mxu0 0.0
    %1829 = vmatpush1.msra.mxu0 0.0
    %1830 = vmatprep.subr.mxu0 0.0
    %1831 = vmatpush1.msra.mxu0 0.0
    %1832 = vmatprep.subr.mxu0 0.0
    %1833 = vmatpush1.msra.mxu0 0.0
    %1834 = vmatprep.subr.mxu0 0.0
    %1835 = vmatpush1.msra.mxu0 0.0
    %1836 = vmatprep.subr.mxu0 0.0
    %1837 = vmatpush1.msra.mxu0 0.0
    %1838 = vmatprep.subr.mxu0 0.0
    %1839 = vmatpush1.msra.mxu0 0.0
    %1840 = vmatprep.subr.mxu0 0.0
    %1841 = vmatpush1.msra.mxu0 0.0
    %1842 = vmatprep.subr.mxu0 0.0
    %1843 = vmatpush1.msra.mxu0 0.0
    %1844 = vmatprep.subr.mxu0 0.0
    %1845 = vmatpush1.msra.mxu0 0.0
    %1846 = vmatprep.subr.mxu0 0.0
    %1847 = vmatpush1.msra.mxu0 0.0
    %1848 = vmatprep.subr.mxu0 0.0
    %1849 = vmatpush1.msra.mxu0 0.0
    %1850 = vmatprep.mubr.f32.mxu0 0.0
    %1851 = vmatmul.mubr.f32.gmra.mrb[0].mxu0 %v1784
    %v1852 = vpop.f32.mrb[0].mxu0
    %v1853 = vadd.f32 %v114, %v1852
    %v1854 = vpop.f32.mrb[0].mxu0
    %1855 = vdwg.mxu0
    %v1856 = vadd.f32 %v1778, %v1853
    %v1857 = vxor.u32 %v1856, 2147483648
    %v1858 = vmul.f32 %v1857, 1.442695
    %v1859 = vpow.pop %v1858
    %v1860 = vadd.f32 %v1859, 1.0
    %v1861 = vrcp.pop %v1860
    %v1862 = vmul.f32 1.0, %v1861
    %1864 = vrot.lane.b32.xlu0 %v1853, 64
    %v1865 = vpop.permute.xlu0 %1864
    %v1867 = vmul.f32 %v1862, %v1865
    %1869 = vrot.lane.b32.xlu0 %v1867, 64
    %v1870 = vpop.permute.xlu0 %1869
    %v1872 = vadd.f32 %v1778, %v1870
    %v1873 = vtanh.pop %v1872
    %v1874 = vsub.f32 1.0, %v1862
    %1876 = vrot.lane.b32.xlu0 %v1873, 96
    %v1877 = vpop.permute.xlu0 %1876
    %v1879 = vmul.f32 %v1874, %v1877
    %v1880 = vmul.f32 %v1862, %v1572
    %v1881 = vadd.f32 %v1879, %v1880
    %v1884 = vrot.slane %v1709, 5
    %v1885 = vrot.slane %v1710, 4
    %v1886 = vsel %vm348, %v1885, %v1884
    %1887 = vrot.lane.b32.xlu0 %v1886, 96
    %v1888 = vpop.permute.xlu0 %1887
    %v1889 = vsel %vm136, %v1888, 0
    %1891 = vmatprep.subr.mxu0 0.0
    %1892 = vmatpush1.msra.mxu0 %v90
    %1893 = vmatprep.subr.mxu0 0.0
    %1894 = vmatpush1.msra.mxu0 %v91
    %1895 = vmatprep.subr.mxu0 0.0
    %1896 = vmatpush1.msra.mxu0 %v92
    %1897 = vmatprep.subr.mxu0 0.0
    %1898 = vmatpush1.msra.mxu0 %v93
    %1899 = vmatprep.subr.mxu0 0.0
    %1900 = vmatpush1.msra.mxu0 0.0
    %1901 = vmatprep.subr.mxu0 0.0
    %1902 = vmatpush1.msra.mxu0 0.0
    %1903 = vmatprep.subr.mxu0 0.0
    %1904 = vmatpush1.msra.mxu0 0.0
    %1905 = vmatprep.subr.mxu0 0.0
    %1906 = vmatpush1.msra.mxu0 0.0
    %1907 = vmatprep.subr.mxu0 0.0
    %1908 = vmatpush1.msra.mxu0 0.0
    %1909 = vmatprep.subr.mxu0 0.0
    %1910 = vmatpush1.msra.mxu0 0.0
    %1911 = vmatprep.subr.mxu0 0.0
    %1912 = vmatpush1.msra.mxu0 0.0
    %1913 = vmatprep.subr.mxu0 0.0
    %1914 = vmatpush1.msra.mxu0 0.0
    %1915 = vmatprep.subr.mxu0 0.0
    %1916 = vmatpush1.msra.mxu0 0.0
    %1917 = vmatprep.subr.mxu0 0.0
    %1918 = vmatpush1.msra.mxu0 0.0
    %1919 = vmatprep.subr.mxu0 0.0
    %1920 = vmatpush1.msra.mxu0 0.0
    %1921 = vmatprep.subr.mxu0 0.0
    %1922 = vmatpush1.msra.mxu0 0.0
    %1923 = vmatprep.subr.mxu0 0.0
    %1924 = vmatpush1.msra.mxu0 0.0
    %1925 = vmatprep.subr.mxu0 0.0
    %1926 = vmatpush1.msra.mxu0 0.0
    %1927 = vmatprep.subr.mxu0 0.0
    %1928 = vmatpush1.msra.mxu0 0.0
    %1929 = vmatprep.subr.mxu0 0.0
    %1930 = vmatpush1.msra.mxu0 0.0
    %1931 = vmatprep.subr.mxu0 0.0
    %1932 = vmatpush1.msra.mxu0 0.0
    %1933 = vmatprep.subr.mxu0 0.0
    %1934 = vmatpush1.msra.mxu0 0.0
    %1935 = vmatprep.subr.mxu0 0.0
    %1936 = vmatpush1.msra.mxu0 0.0
    %1937 = vmatprep.subr.mxu0 0.0
    %1938 = vmatpush1.msra.mxu0 0.0
    %1939 = vmatprep.subr.mxu0 0.0
    %1940 = vmatpush1.msra.mxu0 0.0
    %1941 = vmatprep.subr.mxu0 0.0
    %1942 = vmatpush1.msra.mxu0 0.0
    %1943 = vmatprep.subr.mxu0 0.0
    %1944 = vmatpush1.msra.mxu0 0.0
    %1945 = vmatprep.subr.mxu0 0.0
    %1946 = vmatpush1.msra.mxu0 0.0
    %1947 = vmatprep.subr.mxu0 0.0
    %1948 = vmatpush1.msra.mxu0 0.0
    %1949 = vmatprep.subr.mxu0 0.0
    %1950 = vmatpush1.msra.mxu0 0.0
    %1951 = vmatprep.subr.mxu0 0.0
    %1952 = vmatpush1.msra.mxu0 0.0
    %1953 = vmatprep.subr.mxu0 0.0
    %1954 = vmatpush1.msra.mxu0 0.0
    %1955 = vmatprep.mubr.f32.mxu0 0.0
    %1956 = vmatmul.mubr.f32.gmra.mrb[0].mxu0 %v1889
    %v1957 = vpop.f32.mrb[0].mxu0
    %v1958 = vadd.f32 %v107, %v1957
    %v1959 = vpop.f32.mrb[0].mxu0
    %1960 = vdwg.mxu0
    %v1962 = vrot.slane %v1958, 2
    %v1963 = vrot.slane %v1958, 3
    %v1966 = vadd.f32 %v210, %v1962
    %v1967 = vadd.f32 %v215, %v1963
    %v1968 = vxor.u32 %v1966, 2147483648
    %v1969 = vxor.u32 %v1967, 2147483648
    %v1970 = vmul.f32 %v1968, 1.442695
    %v1971 = vpow.pop %v1970
    %v1972 = vmul.f32 %v1969, 1.442695
    %v1973 = vpow.pop %v1972
    %v1974 = vadd.f32 %v1971, 1.0
    %v1975 = vadd.f32 %v1973, 1.0
    %v1976 = vrcp.pop %v1974
    %v1977 = vmul.f32 1.0, %v1976
    %v1978 = vrcp.pop %v1975
    %v1979 = vmul.f32 1.0, %v1978
    %1980 = vrot.lane.b32.xlu0 %v1962, 64
    %v1981 = vpop.permute.xlu0 %1980
    %1982 = vrot.lane.b32.xlu0 %v1963, 64
    %v1983 = vpop.permute.xlu0 %1982
    %v1986 = vmul.f32 %v1977, %v1981
    %v1987 = vmul.f32 %v1979, %v1983
    %1990 = vrot.lane.b32.xlu0 %v1986, 64
    %v1991 = vpop.permute.xlu0 %1990
    %1992 = vrot.lane.b32.xlu0 %v1987, 64
    %v1993 = vpop.permute.xlu0 %1992
    %v1996 = vadd.f32 %v210, %v1991
    %v1997 = vadd.f32 %v215, %v1993
    %v1998 = vtanh.pop %v1996
    %v1999 = vtanh.pop %v1997
    %v2000 = vsub.f32 1.0, %v1977
    %v2001 = vsub.f32 1.0, %v1979
    %2004 = vrot.lane.b32.xlu0 %v1998, 96
    %v2005 = vpop.permute.xlu0 %2004
    %2006 = vrot.lane.b32.xlu0 %v1999, 96
    %v2007 = vpop.permute.xlu0 %2006
    %v2010 = vmul.f32 %v2000, %v2005
    %v2011 = vmul.f32 %v2001, %v2007
    %v2012 = vrot.slane %v1709, 7
    %v2013 = vrot.slane %v1710, 7
    %v2016 = vmul.f32 %v1977, %v2012
    %v2017 = vmul.f32 %v1979, %v2013
    %v2018 = vadd.f32 %v2010, %v2016
    %v2019 = vadd.f32 %v2011, %v2017
    %2020 = vmatprep.subr.mxu0 0.0
    %2021 = vmatpush1.msra.mxu0 %v98
    %2022 = vmatprep.subr.mxu0 0.0
    %2023 = vmatpush1.msra.mxu0 %v99
    %2024 = vmatprep.subr.mxu0 0.0
    %2025 = vmatpush1.msra.mxu0 %v100
    %2026 = vmatprep.subr.mxu0 0.0
    %2027 = vmatpush1.msra.mxu0 %v101
    %2028 = vmatprep.subr.mxu0 0.0
    %2029 = vmatpush1.msra.mxu0 0.0
    %2030 = vmatprep.subr.mxu0 0.0
    %2031 = vmatpush1.msra.mxu0 0.0
    %2032 = vmatprep.subr.mxu0 0.0
    %2033 = vmatpush1.msra.mxu0 0.0
    %2034 = vmatprep.subr.mxu0 0.0
    %2035 = vmatpush1.msra.mxu0 0.0
    %2036 = vmatprep.subr.mxu0 0.0
    %2037 = vmatpush1.msra.mxu0 0.0
    %2038 = vmatprep.subr.mxu0 0.0
    %2039 = vmatpush1.msra.mxu0 0.0
    %2040 = vmatprep.subr.mxu0 0.0
    %2041 = vmatpush1.msra.mxu0 0.0
    %2042 = vmatprep.subr.mxu0 0.0
    %2043 = vmatpush1.msra.mxu0 0.0
    %2044 = vmatprep.subr.mxu0 0.0
    %2045 = vmatpush1.msra.mxu0 0.0
    %2046 = vmatprep.subr.mxu0 0.0
    %2047 = vmatpush1.msra.mxu0 0.0
    %2048 = vmatprep.subr.mxu0 0.0
    %2049 = vmatpush1.msra.mxu0 0.0
    %2050 = vmatprep.subr.mxu0 0.0
    %2051 = vmatpush1.msra.mxu0 0.0
    %2052 = vmatprep.subr.mxu0 0.0
    %2053 = vmatpush1.msra.mxu0 0.0
    %2054 = vmatprep.subr.mxu0 0.0
    %2055 = vmatpush1.msra.mxu0 0.0
    %2056 = vmatprep.subr.mxu0 0.0
    %2057 = vmatpush1.msra.mxu0 0.0
    %2058 = vmatprep.subr.mxu0 0.0
    %2059 = vmatpush1.msra.mxu0 0.0
    %2060 = vmatprep.subr.mxu0 0.0
    %2061 = vmatpush1.msra.mxu0 0.0
    %2062 = vmatprep.subr.mxu0 0.0
    %2063 = vmatpush1.msra.mxu0 0.0
    %2064 = vmatprep.subr.mxu0 0.0
    %2065 = vmatpush1.msra.mxu0 0.0
    %2066 = vmatprep.subr.mxu0 0.0
    %2067 = vmatpush1.msra.mxu0 0.0
    %2068 = vmatprep.subr.mxu0 0.0
    %2069 = vmatpush1.msra.mxu0 0.0
    %2070 = vmatprep.subr.mxu0 0.0
    %2071 = vmatpush1.msra.mxu0 0.0
    %2072 = vmatprep.subr.mxu0 0.0
    %2073 = vmatpush1.msra.mxu0 0.0
    %2074 = vmatprep.subr.mxu0 0.0
    %2075 = vmatpush1.msra.mxu0 0.0
    %2076 = vmatprep.subr.mxu0 0.0
    %2077 = vmatpush1.msra.mxu0 0.0
    %2078 = vmatprep.subr.mxu0 0.0
    %2079 = vmatpush1.msra.mxu0 0.0
    %2080 = vmatprep.subr.mxu0 0.0
    %2081 = vmatpush1.msra.mxu0 0.0
    %2082 = vmatprep.subr.mxu0 0.0
    %2083 = vmatpush1.msra.mxu0 0.0
    %2084 = vmatprep.mubr.f32.mxu0 0.0
    %2085 = vmatmul.mubr.f32.gmra.mrb[0].mxu0 %v1889
    %v2086 = vpop.f32.mrb[0].mxu0
    %v2087 = vadd.f32 %v121, %v2086
    %v2088 = vpop.f32.mrb[0].mxu0
    %2089 = vdwg.mxu0
    %2091 = vrot.lane.b32.xlu0 %v1881, 96
    %v2092 = vpop.permute.xlu0 %2091
    %v2093 = vsel %vm136, %v2092, 0
    %2095 = vmatprep.subr.mxu0 0.0
    %2096 = vmatpush1.msra.mxu0 %v94
    %2097 = vmatprep.subr.mxu0 0.0
    %2098 = vmatpush1.msra.mxu0 %v95
    %2099 = vmatprep.subr.mxu0 0.0
    %2100 = vmatpush1.msra.mxu0 %v96
    %2101 = vmatprep.subr.mxu0 0.0
    %2102 = vmatpush1.msra.mxu0 %v97
    %2103 = vmatprep.subr.mxu0 0.0
    %2104 = vmatpush1.msra.mxu0 0.0
    %2105 = vmatprep.subr.mxu0 0.0
    %2106 = vmatpush1.msra.mxu0 0.0
    %2107 = vmatprep.subr.mxu0 0.0
    %2108 = vmatpush1.msra.mxu0 0.0
    %2109 = vmatprep.subr.mxu0 0.0
    %2110 = vmatpush1.msra.mxu0 0.0
    %2111 = vmatprep.subr.mxu0 0.0
    %2112 = vmatpush1.msra.mxu0 0.0
    %2113 = vmatprep.subr.mxu0 0.0
    %2114 = vmatpush1.msra.mxu0 0.0
    %2115 = vmatprep.subr.mxu0 0.0
    %2116 = vmatpush1.msra.mxu0 0.0
    %2117 = vmatprep.subr.mxu0 0.0
    %2118 = vmatpush1.msra.mxu0 0.0
    %2119 = vmatprep.subr.mxu0 0.0
    %2120 = vmatpush1.msra.mxu0 0.0
    %2121 = vmatprep.subr.mxu0 0.0
    %2122 = vmatpush1.msra.mxu0 0.0
    %2123 = vmatprep.subr.mxu0 0.0
    %2124 = vmatpush1.msra.mxu0 0.0
    %2125 = vmatprep.subr.mxu0 0.0
    %2126 = vmatpush1.msra.mxu0 0.0
    %2127 = vmatprep.subr.mxu0 0.0
    %2128 = vmatpush1.msra.mxu0 0.0
    %2129 = vmatprep.subr.mxu0 0.0
    %2130 = vmatpush1.msra.mxu0 0.0
    %2131 = vmatprep.subr.mxu0 0.0
    %2132 = vmatpush1.msra.mxu0 0.0
    %2133 = vmatprep.subr.mxu0 0.0
    %2134 = vmatpush1.msra.mxu0 0.0
    %2135 = vmatprep.subr.mxu0 0.0
    %2136 = vmatpush1.msra.mxu0 0.0
    %2137 = vmatprep.subr.mxu0 0.0
    %2138 = vmatpush1.msra.mxu0 0.0
    %2139 = vmatprep.subr.mxu0 0.0
    %2140 = vmatpush1.msra.mxu0 0.0
    %2141 = vmatprep.subr.mxu0 0.0
    %2142 = vmatpush1.msra.mxu0 0.0
    %2143 = vmatprep.subr.mxu0 0.0
    %2144 = vmatpush1.msra.mxu0 0.0
    %2145 = vmatprep.subr.mxu0 0.0
    %2146 = vmatpush1.msra.mxu0 0.0
    %2147 = vmatprep.subr.mxu0 0.0
    %2148 = vmatpush1.msra.mxu0 0.0
    %2149 = vmatprep.subr.mxu0 0.0
    %2150 = vmatpush1.msra.mxu0 0.0
    %2151 = vmatprep.subr.mxu0 0.0
    %2152 = vmatpush1.msra.mxu0 0.0
    %2153 = vmatprep.subr.mxu0 0.0
    %2154 = vmatpush1.msra.mxu0 0.0
    %2155 = vmatprep.subr.mxu0 0.0
    %2156 = vmatpush1.msra.mxu0 0.0
    %2157 = vmatprep.subr.mxu0 0.0
    %2158 = vmatpush1.msra.mxu0 0.0
    %2159 = vmatprep.mubr.f32.mxu0 0.0
    %2160 = vmatmul.mubr.f32.gmra.mrb[0].mxu0 %v2093
    %v2161 = vpop.f32.mrb[0].mxu0
    %v2162 = vadd.f32 %v114, %v2161
    %v2163 = vpop.f32.mrb[0].mxu0
    %2164 = vdwg.mxu0
    %v2165 = vadd.f32 %v2087, %v2162
    %v2166 = vxor.u32 %v2165, 2147483648
    %v2167 = vmul.f32 %v2166, 1.442695
    %v2168 = vpow.pop %v2167
    %v2169 = vadd.f32 %v2168, 1.0
    %v2170 = vrcp.pop %v2169
    %v2171 = vmul.f32 1.0, %v2170
    %2173 = vrot.lane.b32.xlu0 %v2162, 64
    %v2174 = vpop.permute.xlu0 %2173
    %v2176 = vmul.f32 %v2171, %v2174
    %2178 = vrot.lane.b32.xlu0 %v2176, 64
    %v2179 = vpop.permute.xlu0 %2178
    %v2181 = vadd.f32 %v2087, %v2179
    %v2182 = vtanh.pop %v2181
    %v2183 = vsub.f32 1.0, %v2171
    %2185 = vrot.lane.b32.xlu0 %v2182, 96
    %v2186 = vpop.permute.xlu0 %2185
    %v2188 = vmul.f32 %v2183, %v2186
    %v2189 = vmul.f32 %v2171, %v1881
    %v2190 = vadd.f32 %v2188, %v2189
    %v2193 = vrot.slane %v2018, 6
    %v2194 = vrot.slane %v2019, 5
    %v2195 = vsel %vm348, %v2194, %v2193
    %2196 = vrot.lane.b32.xlu0 %v2195, 96
    %v2197 = vpop.permute.xlu0 %2196
    %v2198 = vsel %vm136, %v2197, 0
    %2200 = vmatprep.subr.mxu0 0.0
    %2201 = vmatpush1.msra.mxu0 %v90
    %2202 = vmatprep.subr.mxu0 0.0
    %2203 = vmatpush1.msra.mxu0 %v91
    %2204 = vmatprep.subr.mxu0 0.0
    %2205 = vmatpush1.msra.mxu0 %v92
    %2206 = vmatprep.subr.mxu0 0.0
    %2207 = vmatpush1.msra.mxu0 %v93
    %2208 = vmatprep.subr.mxu0 0.0
    %2209 = vmatpush1.msra.mxu0 0.0
    %2210 = vmatprep.subr.mxu0 0.0
    %2211 = vmatpush1.msra.mxu0 0.0
    %2212 = vmatprep.subr.mxu0 0.0
    %2213 = vmatpush1.msra.mxu0 0.0
    %2214 = vmatprep.subr.mxu0 0.0
    %2215 = vmatpush1.msra.mxu0 0.0
    %2216 = vmatprep.subr.mxu0 0.0
    %2217 = vmatpush1.msra.mxu0 0.0
    %2218 = vmatprep.subr.mxu0 0.0
    %2219 = vmatpush1.msra.mxu0 0.0
    %2220 = vmatprep.subr.mxu0 0.0
    %2221 = vmatpush1.msra.mxu0 0.0
    %2222 = vmatprep.subr.mxu0 0.0
    %2223 = vmatpush1.msra.mxu0 0.0
    %2224 = vmatprep.subr.mxu0 0.0
    %2225 = vmatpush1.msra.mxu0 0.0
    %2226 = vmatprep.subr.mxu0 0.0
    %2227 = vmatpush1.msra.mxu0 0.0
    %2228 = vmatprep.subr.mxu0 0.0
    %2229 = vmatpush1.msra.mxu0 0.0
    %2230 = vmatprep.subr.mxu0 0.0
    %2231 = vmatpush1.msra.mxu0 0.0
    %2232 = vmatprep.subr.mxu0 0.0
    %2233 = vmatpush1.msra.mxu0 0.0
    %2234 = vmatprep.subr.mxu0 0.0
    %2235 = vmatpush1.msra.mxu0 0.0
    %2236 = vmatprep.subr.mxu0 0.0
    %2237 = vmatpush1.msra.mxu0 0.0
    %2238 = vmatprep.subr.mxu0 0.0
    %2239 = vmatpush1.msra.mxu0 0.0
    %2240 = vmatprep.subr.mxu0 0.0
    %2241 = vmatpush1.msra.mxu0 0.0
    %2242 = vmatprep.subr.mxu0 0.0
    %2243 = vmatpush1.msra.mxu0 0.0
    %2244 = vmatprep.subr.mxu0 0.0
    %2245 = vmatpush1.msra.mxu0 0.0
    %2246 = vmatprep.subr.mxu0 0.0
    %2247 = vmatpush1.msra.mxu0 0.0
    %2248 = vmatprep.subr.mxu0 0.0
    %2249 = vmatpush1.msra.mxu0 0.0
    %2250 = vmatprep.subr.mxu0 0.0
    %2251 = vmatpush1.msra.mxu0 0.0
    %2252 = vmatprep.subr.mxu0 0.0
    %2253 = vmatpush1.msra.mxu0 0.0
    %2254 = vmatprep.subr.mxu0 0.0
    %2255 = vmatpush1.msra.mxu0 0.0
    %2256 = vmatprep.subr.mxu0 0.0
    %2257 = vmatpush1.msra.mxu0 0.0
    %2258 = vmatprep.subr.mxu0 0.0
    %2259 = vmatpush1.msra.mxu0 0.0
    %2260 = vmatprep.subr.mxu0 0.0
    %2261 = vmatpush1.msra.mxu0 0.0
    %2262 = vmatprep.subr.mxu0 0.0
    %2263 = vmatpush1.msra.mxu0 0.0
    %2264 = vmatprep.mubr.f32.mxu0 0.0
    %2265 = vmatmul.mubr.f32.gmra.mrb[0].mxu0 %v2198
    %v2266 = vpop.f32.mrb[0].mxu0
    %v2267 = vadd.f32 %v107, %v2266
    %v2268 = vpop.f32.mrb[0].mxu0
    %2269 = vdwg.mxu0
    %v2271 = vrot.slane %v2267, 1
    %v2272 = vrot.slane %v2267, 2
    %v2275 = vadd.f32 %v210, %v2271
    %v2276 = vadd.f32 %v215, %v2272
    %v2277 = vxor.u32 %v2275, 2147483648
    %v2278 = vxor.u32 %v2276, 2147483648
    %v2279 = vmul.f32 %v2277, 1.442695
    %v2280 = vpow.pop %v2279
    %v2281 = vmul.f32 %v2278, 1.442695
    %v2282 = vpow.pop %v2281
    %v2283 = vadd.f32 %v2280, 1.0
    %v2284 = vadd.f32 %v2282, 1.0
    %v2285 = vrcp.pop %v2283
    %v2286 = vmul.f32 1.0, %v2285
    %v2287 = vrcp.pop %v2284
    %v2288 = vmul.f32 1.0, %v2287
    %2289 = vrot.lane.b32.xlu0 %v2271, 64
    %v2290 = vpop.permute.xlu0 %2289
    %2291 = vrot.lane.b32.xlu0 %v2272, 64
    %v2292 = vpop.permute.xlu0 %2291
    %v2295 = vmul.f32 %v2286, %v2290
    %v2296 = vmul.f32 %v2288, %v2292
    %2299 = vrot.lane.b32.xlu0 %v2295, 64
    %v2300 = vpop.permute.xlu0 %2299
    %2301 = vrot.lane.b32.xlu0 %v2296, 64
    %v2302 = vpop.permute.xlu0 %2301
    %v2305 = vadd.f32 %v210, %v2300
    %v2306 = vadd.f32 %v215, %v2302
    %v2307 = vtanh.pop %v2305
    %v2308 = vtanh.pop %v2306
    %v2309 = vsub.f32 1.0, %v2286
    %v2310 = vsub.f32 1.0, %v2288
    %2313 = vrot.lane.b32.xlu0 %v2307, 96
    %v2314 = vpop.permute.xlu0 %2313
    %2315 = vrot.lane.b32.xlu0 %v2308, 96
    %v2316 = vpop.permute.xlu0 %2315
    %v2319 = vmul.f32 %v2309, %v2314
    %v2320 = vmul.f32 %v2310, %v2316
    %v2321 = vrot.slane %v2018, 7
    %v2322 = vrot.slane %v2019, 7
    %v2325 = vmul.f32 %v2286, %v2321
    %v2326 = vmul.f32 %v2288, %v2322
    %v2327 = vadd.f32 %v2319, %v2325
    %v2328 = vadd.f32 %v2320, %v2326
    %2329 = vmatprep.subr.mxu0 0.0
    %2330 = vmatpush1.msra.mxu0 %v98
    %2331 = vmatprep.subr.mxu0 0.0
    %2332 = vmatpush1.msra.mxu0 %v99
    %2333 = vmatprep.subr.mxu0 0.0
    %2334 = vmatpush1.msra.mxu0 %v100
    %2335 = vmatprep.subr.mxu0 0.0
    %2336 = vmatpush1.msra.mxu0 %v101
    %2337 = vmatprep.subr.mxu0 0.0
    %2338 = vmatpush1.msra.mxu0 0.0
    %2339 = vmatprep.subr.mxu0 0.0
    %2340 = vmatpush1.msra.mxu0 0.0
    %2341 = vmatprep.subr.mxu0 0.0
    %2342 = vmatpush1.msra.mxu0 0.0
    %2343 = vmatprep.subr.mxu0 0.0
    %2344 = vmatpush1.msra.mxu0 0.0
    %2345 = vmatprep.subr.mxu0 0.0
    %2346 = vmatpush1.msra.mxu0 0.0
    %2347 = vmatprep.subr.mxu0 0.0
    %2348 = vmatpush1.msra.mxu0 0.0
    %2349 = vmatprep.subr.mxu0 0.0
    %2350 = vmatpush1.msra.mxu0 0.0
    %2351 = vmatprep.subr.mxu0 0.0
    %2352 = vmatpush1.msra.mxu0 0.0
    %2353 = vmatprep.subr.mxu0 0.0
    %2354 = vmatpush1.msra.mxu0 0.0
    %2355 = vmatprep.subr.mxu0 0.0
    %2356 = vmatpush1.msra.mxu0 0.0
    %2357 = vmatprep.subr.mxu0 0.0
    %2358 = vmatpush1.msra.mxu0 0.0
    %2359 = vmatprep.subr.mxu0 0.0
    %2360 = vmatpush1.msra.mxu0 0.0
    %2361 = vmatprep.subr.mxu0 0.0
    %2362 = vmatpush1.msra.mxu0 0.0
    %2363 = vmatprep.subr.mxu0 0.0
    %2364 = vmatpush1.msra.mxu0 0.0
    %2365 = vmatprep.subr.mxu0 0.0
    %2366 = vmatpush1.msra.mxu0 0.0
    %2367 = vmatprep.subr.mxu0 0.0
    %2368 = vmatpush1.msra.mxu0 0.0
    %2369 = vmatprep.subr.mxu0 0.0
    %2370 = vmatpush1.msra.mxu0 0.0
    %2371 = vmatprep.subr.mxu0 0.0
    %2372 = vmatpush1.msra.mxu0 0.0
    %2373 = vmatprep.subr.mxu0 0.0
    %2374 = vmatpush1.msra.mxu0 0.0
    %2375 = vmatprep.subr.mxu0 0.0
    %2376 = vmatpush1.msra.mxu0 0.0
    %2377 = vmatprep.subr.mxu0 0.0
    %2378 = vmatpush1.msra.mxu0 0.0
    %2379 = vmatprep.subr.mxu0 0.0
    %2380 = vmatpush1.msra.mxu0 0.0
    %2381 = vmatprep.subr.mxu0 0.0
    %2382 = vmatpush1.msra.mxu0 0.0
    %2383 = vmatprep.subr.mxu0 0.0
    %2384 = vmatpush1.msra.mxu0 0.0
    %2385 = vmatprep.subr.mxu0 0.0
    %2386 = vmatpush1.msra.mxu0 0.0
    %2387 = vmatprep.subr.mxu0 0.0
    %2388 = vmatpush1.msra.mxu0 0.0
    %2389 = vmatprep.subr.mxu0 0.0
    %2390 = vmatpush1.msra.mxu0 0.0
    %2391 = vmatprep.subr.mxu0 0.0
    %2392 = vmatpush1.msra.mxu0 0.0
    %2393 = vmatprep.mubr.f32.mxu0 0.0
    %2394 = vmatmul.mubr.f32.gmra.mrb[0].mxu0 %v2198
    %v2395 = vpop.f32.mrb[0].mxu0
    %v2396 = vadd.f32 %v121, %v2395
    %v2397 = vpop.f32.mrb[0].mxu0
    %2398 = vdwg.mxu0
    %2400 = vrot.lane.b32.xlu0 %v2190, 96
    %v2401 = vpop.permute.xlu0 %2400
    %v2402 = vsel %vm136, %v2401, 0
    %2404 = vmatprep.subr.mxu0 0.0
    %2405 = vmatpush1.msra.mxu0 %v94
    %2406 = vmatprep.subr.mxu0 0.0
    %2407 = vmatpush1.msra.mxu0 %v95
    %2408 = vmatprep.subr.mxu0 0.0
    %2409 = vmatpush1.msra.mxu0 %v96
    %2410 = vmatprep.subr.mxu0 0.0
    %2411 = vmatpush1.msra.mxu0 %v97
    %2412 = vmatprep.subr.mxu0 0.0
    %2413 = vmatpush1.msra.mxu0 0.0
    %2414 = vmatprep.subr.mxu0 0.0
    %2415 = vmatpush1.msra.mxu0 0.0
    %2416 = vmatprep.subr.mxu0 0.0
    %2417 = vmatpush1.msra.mxu0 0.0
    %2418 = vmatprep.subr.mxu0 0.0
    %2419 = vmatpush1.msra.mxu0 0.0
    %2420 = vmatprep.subr.mxu0 0.0
    %2421 = vmatpush1.msra.mxu0 0.0
    %2422 = vmatprep.subr.mxu0 0.0
    %2423 = vmatpush1.msra.mxu0 0.0
    %2424 = vmatprep.subr.mxu0 0.0
    %2425 = vmatpush1.msra.mxu0 0.0
    %2426 = vmatprep.subr.mxu0 0.0
    %2427 = vmatpush1.msra.mxu0 0.0
    %2428 = vmatprep.subr.mxu0 0.0
    %2429 = vmatpush1.msra.mxu0 0.0
    %2430 = vmatprep.subr.mxu0 0.0
    %2431 = vmatpush1.msra.mxu0 0.0
    %2432 = vmatprep.subr.mxu0 0.0
    %2433 = vmatpush1.msra.mxu0 0.0
    %2434 = vmatprep.subr.mxu0 0.0
    %2435 = vmatpush1.msra.mxu0 0.0
    %2436 = vmatprep.subr.mxu0 0.0
    %2437 = vmatpush1.msra.mxu0 0.0
    %2438 = vmatprep.subr.mxu0 0.0
    %2439 = vmatpush1.msra.mxu0 0.0
    %2440 = vmatprep.subr.mxu0 0.0
    %2441 = vmatpush1.msra.mxu0 0.0
    %2442 = vmatprep.subr.mxu0 0.0
    %2443 = vmatpush1.msra.mxu0 0.0
    %2444 = vmatprep.subr.mxu0 0.0
    %2445 = vmatpush1.msra.mxu0 0.0
    %2446 = vmatprep.subr.mxu0 0.0
    %2447 = vmatpush1.msra.mxu0 0.0
    %2448 = vmatprep.subr.mxu0 0.0
    %2449 = vmatpush1.msra.mxu0 0.0
    %2450 = vmatprep.subr.mxu0 0.0
    %2451 = vmatpush1.msra.mxu0 0.0
    %2452 = vmatprep.subr.mxu0 0.0
    %2453 = vmatpush1.msra.mxu0 0.0
    %2454 = vmatprep.subr.mxu0 0.0
    %2455 = vmatpush1.msra.mxu0 0.0
    %2456 = vmatprep.subr.mxu0 0.0
    %2457 = vmatpush1.msra.mxu0 0.0
    %2458 = vmatprep.subr.mxu0 0.0
    %2459 = vmatpush1.msra.mxu0 0.0
    %2460 = vmatprep.subr.mxu0 0.0
    %2461 = vmatpush1.msra.mxu0 0.0
    %2462 = vmatprep.subr.mxu0 0.0
    %2463 = vmatpush1.msra.mxu0 0.0
    %2464 = vmatprep.subr.mxu0 0.0
    %2465 = vmatpush1.msra.mxu0 0.0
    %2466 = vmatprep.subr.mxu0 0.0
    %2467 = vmatpush1.msra.mxu0 0.0
    %2468 = vmatprep.mubr.f32.mxu0 0.0
    %2469 = vmatmul.mubr.f32.gmra.mrb[0].mxu0 %v2402
    %v2470 = vpop.f32.mrb[0].mxu0
    %v2471 = vadd.f32 %v114, %v2470
    %v2472 = vpop.f32.mrb[0].mxu0
    %2473 = vdwg.mxu0
    %v2474 = vadd.f32 %v2396, %v2471
    %v2475 = vxor.u32 %v2474, 2147483648
    %v2476 = vmul.f32 %v2475, 1.442695
    %v2477 = vpow.pop %v2476
    %v2478 = vadd.f32 %v2477, 1.0
    %v2479 = vrcp.pop %v2478
    %v2480 = vmul.f32 1.0, %v2479
    %2482 = vrot.lane.b32.xlu0 %v2471, 64
    %v2483 = vpop.permute.xlu0 %2482
    %v2485 = vmul.f32 %v2480, %v2483
    %2487 = vrot.lane.b32.xlu0 %v2485, 64
    %v2488 = vpop.permute.xlu0 %2487
    %v2490 = vadd.f32 %v2396, %v2488
    %v2491 = vtanh.pop %v2490
    %v2492 = vsub.f32 1.0, %v2480
    %2494 = vrot.lane.b32.xlu0 %v2491, 96
    %v2495 = vpop.permute.xlu0 %2494
    %v2497 = vmul.f32 %v2492, %v2495
    %v2498 = vmul.f32 %v2480, %v2190
    %v2499 = vadd.f32 %v2497, %v2498
    %v2502 = vrot.slane %v2327, 7
    %v2503 = vrot.slane %v2328, 6
    %v2504 = vsel %vm348, %v2503, %v2502
    %2505 = vrot.lane.b32.xlu0 %v2504, 96
    %v2506 = vpop.permute.xlu0 %2505
    %v2507 = vsel %vm136, %v2506, 0
    %2509 = vmatprep.subr.mxu0 0.0
    %2510 = vmatpush1.msra.mxu0 %v98
    %2511 = vmatprep.subr.mxu0 0.0
    %2512 = vmatpush1.msra.mxu0 %v99
    %2513 = vmatprep.subr.mxu0 0.0
    %2514 = vmatpush1.msra.mxu0 %v100
    %2515 = vmatprep.subr.mxu0 0.0
    %2516 = vmatpush1.msra.mxu0 %v101
    %2517 = vmatprep.subr.mxu0 0.0
    %2518 = vmatpush1.msra.mxu0 0.0
    %2519 = vmatprep.subr.mxu0 0.0
    %2520 = vmatpush1.msra.mxu0 0.0
    %2521 = vmatprep.subr.mxu0 0.0
    %2522 = vmatpush1.msra.mxu0 0.0
    %2523 = vmatprep.subr.mxu0 0.0
    %2524 = vmatpush1.msra.mxu0 0.0
    %2525 = vmatprep.subr.mxu0 0.0
    %2526 = vmatpush1.msra.mxu0 0.0
    %2527 = vmatprep.subr.mxu0 0.0
    %2528 = vmatpush1.msra.mxu0 0.0
    %2529 = vmatprep.subr.mxu0 0.0
    %2530 = vmatpush1.msra.mxu0 0.0
    %2531 = vmatprep.subr.mxu0 0.0
    %2532 = vmatpush1.msra.mxu0 0.0
    %2533 = vmatprep.subr.mxu0 0.0
    %2534 = vmatpush1.msra.mxu0 0.0
    %2535 = vmatprep.subr.mxu0 0.0
    %2536 = vmatpush1.msra.mxu0 0.0
    %2537 = vmatprep.subr.mxu0 0.0
    %2538 = vmatpush1.msra.mxu0 0.0
    %2539 = vmatprep.subr.mxu0 0.0
    %2540 = vmatpush1.msra.mxu0 0.0
    %2541 = vmatprep.subr.mxu0 0.0
    %2542 = vmatpush1.msra.mxu0 0.0
    %2543 = vmatprep.subr.mxu0 0.0
    %2544 = vmatpush1.msra.mxu0 0.0
    %2545 = vmatprep.subr.mxu0 0.0
    %2546 = vmatpush1.msra.mxu0 0.0
    %2547 = vmatprep.subr.mxu0 0.0
    %2548 = vmatpush1.msra.mxu0 0.0
    %2549 = vmatprep.subr.mxu0 0.0
    %2550 = vmatpush1.msra.mxu0 0.0
    %2551 = vmatprep.subr.mxu0 0.0
    %2552 = vmatpush1.msra.mxu0 0.0
    %2553 = vmatprep.subr.mxu0 0.0
    %2554 = vmatpush1.msra.mxu0 0.0
    %2555 = vmatprep.subr.mxu0 0.0
    %2556 = vmatpush1.msra.mxu0 0.0
    %2557 = vmatprep.subr.mxu0 0.0
    %2558 = vmatpush1.msra.mxu0 0.0
    %2559 = vmatprep.subr.mxu0 0.0
    %2560 = vmatpush1.msra.mxu0 0.0
    %2561 = vmatprep.subr.mxu0 0.0
    %2562 = vmatpush1.msra.mxu0 0.0
    %2563 = vmatprep.subr.mxu0 0.0
    %2564 = vmatpush1.msra.mxu0 0.0
    %2565 = vmatprep.subr.mxu0 0.0
    %2566 = vmatpush1.msra.mxu0 0.0
    %2567 = vmatprep.subr.mxu0 0.0
    %2568 = vmatpush1.msra.mxu0 0.0
    %2569 = vmatprep.subr.mxu0 0.0
    %2570 = vmatpush1.msra.mxu0 0.0
    %2571 = vmatprep.subr.mxu0 0.0
    %2572 = vmatpush1.msra.mxu0 0.0
    %2573 = vmatprep.mubr.f32.mxu0 0.0
    %2574 = vmatmul.mubr.f32.gmra.mrb[0].mxu0 %v2507
    %v2575 = vpop.f32.mrb[0].mxu0
    %v2576 = vadd.f32 %v121, %v2575
    %v2577 = vpop.f32.mrb[0].mxu0
    %2578 = vdwg.mxu0
    %2580 = vrot.lane.b32.xlu0 %v2499, 96
    %v2581 = vpop.permute.xlu0 %2580
    %v2582 = vsel %vm136, %v2581, 0
    %2584 = vmatprep.subr.mxu0 0.0
    %2585 = vmatpush1.msra.mxu0 %v94
    %2586 = vmatprep.subr.mxu0 0.0
    %2587 = vmatpush1.msra.mxu0 %v95
    %2588 = vmatprep.subr.mxu0 0.0
    %2589 = vmatpush1.msra.mxu0 %v96
    %2590 = vmatprep.subr.mxu0 0.0
    %2591 = vmatpush1.msra.mxu0 %v97
    %2592 = vmatprep.subr.mxu0 0.0
    %2593 = vmatpush1.msra.mxu0 0.0
    %2594 = vmatprep.subr.mxu0 0.0
    %2595 = vmatpush1.msra.mxu0 0.0
    %2596 = vmatprep.subr.mxu0 0.0
    %2597 = vmatpush1.msra.mxu0 0.0
    %2598 = vmatprep.subr.mxu0 0.0
    %2599 = vmatpush1.msra.mxu0 0.0
    %2600 = vmatprep.subr.mxu0 0.0
    %2601 = vmatpush1.msra.mxu0 0.0
    %2602 = vmatprep.subr.mxu0 0.0
    %2603 = vmatpush1.msra.mxu0 0.0
    %2604 = vmatprep.subr.mxu0 0.0
    %2605 = vmatpush1.msra.mxu0 0.0
    %2606 = vmatprep.subr.mxu0 0.0
    %2607 = vmatpush1.msra.mxu0 0.0
    %2608 = vmatprep.subr.mxu0 0.0
    %2609 = vmatpush1.msra.mxu0 0.0
    %2610 = vmatprep.subr.mxu0 0.0
    %2611 = vmatpush1.msra.mxu0 0.0
    %2612 = vmatprep.subr.mxu0 0.0
    %2613 = vmatpush1.msra.mxu0 0.0
    %2614 = vmatprep.subr.mxu0 0.0
    %2615 = vmatpush1.msra.mxu0 0.0
    %2616 = vmatprep.subr.mxu0 0.0
    %2617 = vmatpush1.msra.mxu0 0.0
    %2618 = vmatprep.subr.mxu0 0.0
    %2619 = vmatpush1.msra.mxu0 0.0
    %2620 = vmatprep.subr.mxu0 0.0
    %2621 = vmatpush1.msra.mxu0 0.0
    %2622 = vmatprep.subr.mxu0 0.0
    %2623 = vmatpush1.msra.mxu0 0.0
    %2624 = vmatprep.subr.mxu0 0.0
    %2625 = vmatpush1.msra.mxu0 0.0
    %2626 = vmatprep.subr.mxu0 0.0
    %2627 = vmatpush1.msra.mxu0 0.0
    %2628 = vmatprep.subr.mxu0 0.0
    %2629 = vmatpush1.msra.mxu0 0.0
    %2630 = vmatprep.subr.mxu0 0.0
    %2631 = vmatpush1.msra.mxu0 0.0
    %2632 = vmatprep.subr.mxu0 0.0
    %2633 = vmatpush1.msra.mxu0 0.0
    %2634 = vmatprep.subr.mxu0 0.0
    %2635 = vmatpush1.msra.mxu0 0.0
    %2636 = vmatprep.subr.mxu0 0.0
    %2637 = vmatpush1.msra.mxu0 0.0
    %2638 = vmatprep.subr.mxu0 0.0
    %2639 = vmatpush1.msra.mxu0 0.0
    %2640 = vmatprep.subr.mxu0 0.0
    %2641 = vmatpush1.msra.mxu0 0.0
    %2642 = vmatprep.subr.mxu0 0.0
    %2643 = vmatpush1.msra.mxu0 0.0
    %2644 = vmatprep.subr.mxu0 0.0
    %2645 = vmatpush1.msra.mxu0 0.0
    %2646 = vmatprep.subr.mxu0 0.0
    %2647 = vmatpush1.msra.mxu0 0.0
    %2648 = vmatprep.mubr.f32.mxu0 0.0
    %2649 = vmatmul.mubr.f32.gmra.mrb[0].mxu0 %v2582
    %v2650 = vpop.f32.mrb[0].mxu0
    %v2651 = vadd.f32 %v114, %v2650
    %v2652 = vpop.f32.mrb[0].mxu0
    %2653 = vdwg.mxu0
    %v2654 = vadd.f32 %v2576, %v2651
    %v2655 = vxor.u32 %v2654, 2147483648
    %v2656 = vmul.f32 %v2655, 1.442695
    %v2657 = vpow.pop %v2656
    %v2658 = vadd.f32 %v2657, 1.0
    %v2659 = vrcp.pop %v2658
    %v2660 = vmul.f32 1.0, %v2659
    %2662 = vrot.lane.b32.xlu0 %v2651, 64
    %v2663 = vpop.permute.xlu0 %2662
    %v2665 = vmul.f32 %v2660, %v2663
    %2667 = vrot.lane.b32.xlu0 %v2665, 64
    %v2668 = vpop.permute.xlu0 %2667
    %v2670 = vadd.f32 %v2576, %v2668
    %v2671 = vtanh.pop %v2670
    %v2672 = vsub.f32 1.0, %v2660
    %2674 = vrot.lane.b32.xlu0 %v2671, 96
    %v2675 = vpop.permute.xlu0 %2674
    %v2677 = vmul.f32 %v2672, %v2675
    %v2678 = vmul.f32 %v2660, %v2499
    %v2679 = vadd.f32 %v2677, %v2678
    %2681 = vrot.lane.b32.xlu0 %v1263, 32
    %v2682 = vpop.permute.xlu0 %2681
    %2684 = vrot.lane.b32.xlu0 %v1572, 64
    %v2685 = vpop.permute.xlu0 %2684
    %2688 = vrot.lane.b32.xlu0 %v2499, 32
    %v2689 = vpop.permute.xlu0 %2688
    %2692 = vrot.lane.b32.xlu0 %v2679, 64
    %v2693 = vpop.permute.xlu0 %2692
    %v2695 = vsel %vm136, %v856, %v954
    %vm2696 = vcmask 523264
    %v2697 = vsel %vm2696, %v2695, %v2682
    %vm2698 = vcmask 785408
    %v2699 = vsel %vm2698, %v2697, %v2685
    %v2700 = vsel %vm136, %v2092, %v2190
    %v2701 = vsel %vm2696, %v2700, %v2689
    %v2702 = vsel %vm2698, %v2701, %v2693
    %v2705 = vcombine.low %v2699, %v2702
    %v2707 = vunpack.c.l.s4 1983009808
    %v2708 = vunpack.c.0.s8 %v2707
    %v2709 = vlaneseq
    %v2710 = vshrl.u32 %v2709, 7
    %v2711 = vsub.s32 %v2708, %v2710
    %v2712 = vrot.slane %v2705, %v2711
    %2714 = vst [vmem:[%s9] sm:$0xf] %v2712
    %v2715 = vrot.slane %v2328, 7
    %2716 = vrot.lane.b32.xlu0 %v2327, 96
    %v2717 = vpop.permute.xlu0 %2716
    %2718 = vrot.lane.b32.xlu0 %v2715, 96
    %v2719 = vpop.permute.xlu0 %2718
    %vm2722 = vcmask 261127
    %2723 = vst.msk [vmem:[#allocation10 - $0x7] sm:$0x80] %vm2722, %v2717
    %vm2724 = vcmask 253952
    %2725 = vst.msk [vmem:[#allocation10 + $0x1] sm:$0x1] %vm2724, %v2719
    %2726 = vrot.lane.b32.xlu0 %v2679, 96
    %v2727 = vpop.permute.xlu0 %2726
    %s2729 = scalar_lea.vmem [#allocation10], 2
    %vm2730 = vcmask 254976
    %2731 = vst.msk [vmem:[%s2729] sm:$0x3] %vm2730, %v2727
    // Predicated region
    $region54: #{encoder_forward.1} parent=1 // pred_check
      _
    $region55: #{encoder_forward.1} parent=1 // pred_check_branch
      %2733 = sbr.rel (0) target = $region57
    $region56: #{encoder_forward.1} parent=1 // pred_region
      _
    $region57: #{encoder_forward.1} parent=1 // pred_fallthru
      _
    // Predicated region
    $region58: #{encoder_forward.1} parent=1 // pred_check
      _
    $region59: #{encoder_forward.1} parent=1 // pred_check_branch
      %2735 = sbr.rel (0) target = $region61
    $region60: #{encoder_forward.1} parent=1 // pred_region
      %s2737 = ssub.s32 64, 64
      %2738 = vsyncadd [#allocation4], %s2737
      %s2739 = sshll.u32 [#allocation10], 4
      %s2740 = int_to_ptr.vmem [resolvable:$true] %s2739
      %2745 = dma.vmem_to_hbm [thread:$0]  %s2740, 64, %s10, [#allocation4], 32, 32, 2
    $region61: #{encoder_forward.1} parent=1 // pred_fallthru
      _
    // Predicated region
    $region62: #{encoder_forward.1} parent=1 // pred_check
      _
    $region63: #{encoder_forward.1} parent=1 // pred_check_branch
      %2747 = sbr.rel (0) target = $region65
    $region64: #{encoder_forward.1} parent=1 // pred_region
      _
    $region65: #{encoder_forward.1} parent=1 // pred_fallthru
      _
    // Predicated region
    $region66: #{encoder_forward.1} parent=1 // pred_check
      _
    $region67: #{encoder_forward.1} parent=1 // pred_check_branch
      %2749 = sbr.rel (0) target = $region69
    $region68: #{encoder_forward.1} parent=1 // pred_region
      %2750 = dma.done [#allocation4], 64
    $region69: #{encoder_forward.1} parent=1 // pred_fallthru
      _
    %2751 = vsyncpa [#allocation3], 1
    %2752 = vsyncpa [#allocation6], 1
    %2753 = vsyncpa [#allocation9], 1
    %2754 = vsyncpa [#allocation4], 1

</llo_original>
